<compile_context>
chip_gen: v6e
topology: v6e:2x2x1
jax: 0.10.0
libtpu: 0.0.40
codegen_flags: <defaults>
</compile_context>

<pallas_src>
import jax
import jax.numpy as jnp
from jax import lax
from jax.experimental import pallas as pl
from jax.experimental.pallas import tpu as pltpu

# ----- small roberta-style config (scaled-down roberta-base) -----
VOCAB = 100
MAX_POS = 40
HIDDEN = 32
N_HEADS = 2
HEAD_DIM = HIDDEN // N_HEADS
INTER = 64
N_LAYERS = 2
NUM_LABELS = 2
LOGIT_PAD = 128        # classifier output padded to 128 lanes (lane-dense store)
PAD_ID = 1             # roberta pad token id
LN_EPS = 1e-5
F32 = jnp.float32


# ---------------------------- fused Pallas kernel ----------------------------

def _encoder_head_kernel(h_ref, mask_ref,
                         eg_ref, eb_ref,
                         wqkv_ref, bqkv_ref, wo_ref, bo_ref,
                         ln1g_ref, ln1b_ref,
                         win_ref, bin_ref, wout_ref, bout_ref,
                         ln2g_ref, ln2b_ref,
                         a1w_ref, a1b_ref, a2w_ref, a2b_ref,
                         cw_ref, cb_ref,
                         o_ref):
    """One grid step = one sequence: embeddings-LN -> N encoder layers -> head."""
    h = h_ref[0]          # (S, H) summed word+pos+type embeddings
    bias = mask_ref[0]    # (1, S) additive attention-mask bias

    def layernorm(x, g, b):
        mu = jnp.mean(x, axis=-1, keepdims=True)
        xc = x - mu
        var = jnp.mean(xc * xc, axis=-1, keepdims=True)
        return xc * lax.rsqrt(var + LN_EPS) * g + b

    h = layernorm(h, eg_ref[...], eb_ref[...])
    # dropout is identity in eval mode

    scale = 1.0 / (HEAD_DIM ** 0.5)
    for l in range(N_LAYERS):                       # static unroll (L is small)
        # --- fused QKV projection: one MXU pass ---
        qkv = jnp.dot(h, wqkv_ref[l],
                      preferred_element_type=jnp.float32) + bqkv_ref[l]   # (S, 3H)
        # --- all heads inside the kernel body ---
        heads = []
        for n in range(N_HEADS):
            off = n * HEAD_DIM
            q = qkv[:, off:off + HEAD_DIM]                            # (S, Dh)
            k = qkv[:, HIDDEN + off:HIDDEN + off + HEAD_DIM]          # (S, Dh)
            v = qkv[:, 2 * HIDDEN + off:2 * HIDDEN + off + HEAD_DIM]  # (S, Dh)
            s = lax.dot_general(q, k, (((1,), (1,)), ((), ())),
                                preferred_element_type=jnp.float32)   # (S, S)
            s = s * scale + bias
            s = s - jnp.max(s, axis=-1, keepdims=True)
            p = jnp.exp(s)
            p = p * pl.reciprocal(jnp.sum(p, axis=-1, keepdims=True),
                                  approx=True)
            heads.append(jnp.dot(p, v, preferred_element_type=jnp.float32))
        ctx = jnp.concatenate(heads, axis=-1)                          # (S, H)

        attn_out = jnp.dot(ctx, wo_ref[l],
                           preferred_element_type=jnp.float32) + bo_ref[l]
        h = layernorm(attn_out + h, ln1g_ref[l], ln1b_ref[l])

        ff = jnp.dot(h, win_ref[l],
                     preferred_element_type=jnp.float32) + bin_ref[l]
        # TODO(synk): HF RoBERTa uses exact erf-GELU; tanh-approx GELU used here
        # (exp/tanh transcendentals lower to the EUP, erf may not).
        c = jnp.float32(0.7978845608028654)   # sqrt(2/pi)
        ff = 0.5 * ff * (1.0 + jnp.tanh(c * (ff + 0.044715 * ff * ff * ff)))
        ff = jnp.dot(ff, wout_ref[l],
                     preferred_element_type=jnp.float32) + bout_ref[l]
        h = layernorm(ff + h, ln2g_ref[l], ln2b_ref[l])

    # --- custom head on the [CLS] (position 0) token ---
    pooled = h[0:1, :]                                                 # (1, H)
    x = jnp.dot(pooled, a1w_ref[...],
                preferred_element_type=jnp.float32) + a1b_ref[...]
    x = jnp.maximum(x, 0.0)
    x = jnp.dot(x, a2w_ref[...],
                preferred_element_type=jnp.float32) + a2b_ref[...]
    x = jnp.maximum(x, 0.0)
    logits = jnp.dot(x, cw_ref[...],
                     preferred_element_type=jnp.float32) + cb_ref[...]  # (1, 128)
    o_ref[0] = logits.astype(o_ref.dtype)


# ---------------------------- parameters ----------------------------

def init_params(key):
    """Kernel-ready parameter layout: stacked layers, fused QKV, padded classifier."""
    def nrm(k, shape):
        return (jax.random.normal(k, shape, F32) * 0.02).astype(F32)

    keys = iter(jax.random.split(key, 64))
    L, H = N_LAYERS, HIDDEN
    p = {
        "word_emb": nrm(next(keys), (VOCAB, H)),
        "pos_emb": nrm(next(keys), (MAX_POS, H)),
        "type_emb": nrm(next(keys), (2, H)),
        "emb_ln_g": jnp.ones((1, H), F32),
        "emb_ln_b": jnp.zeros((1, H), F32),
        # encoder layers, stacked on a leading layer axis; q/k/v fused to 3H.
        "wqkv": nrm(next(keys), (L, H, 3 * H)),
        "bqkv": jnp.zeros((L, 1, 3 * H), F32),
        "wo": nrm(next(keys), (L, H, H)),
        "bo": jnp.zeros((L, 1, H), F32),
        "ln1_g": jnp.ones((L, 1, H), F32),
        "ln1_b": jnp.zeros((L, 1, H), F32),
        "w_in": nrm(next(keys), (L, H, INTER)),
        "b_in": jnp.zeros((L, 1, INTER), F32),
        "w_out": nrm(next(keys), (L, INTER, H)),
        "b_out": jnp.zeros((L, 1, H), F32),
        "ln2_g": jnp.ones((L, 1, H), F32),
        "ln2_b": jnp.zeros((L, 1, H), F32),
        # custom head: Linear(H,512) -> ReLU -> Linear(512,256) -> ReLU -> Linear(256,2)
        "add1_w": nrm(next(keys), (H, 512)),
        "add1_b": jnp.zeros((1, 512), F32),
        "add2_w": nrm(next(keys), (512, 256)),
        "add2_b": jnp.zeros((1, 256), F32),
    }
    # classifier zero-padded to 128 output lanes; real logits are cols [:NUM_LABELS]
    cls_w = nrm(next(keys), (256, NUM_LABELS))
    p["cls_w"] = jnp.zeros((256, LOGIT_PAD), F32).at[:, :NUM_LABELS].set(cls_w)
    p["cls_b"] = jnp.zeros((1, LOGIT_PAD), F32)
    return p


# ---------------------------- forward pass ----------------------------

_WEIGHT_NAMES = ("emb_ln_g", "emb_ln_b",
                 "wqkv", "bqkv", "wo", "bo", "ln1_g", "ln1_b",
                 "w_in", "b_in", "w_out", "b_out", "ln2_g", "ln2_b",
                 "add1_w", "add1_b", "add2_w", "add2_b", "cls_w", "cls_b")


def custom_roberta_forward(params, input_ids, attention_mask):
    B, S = input_ids.shape

    # --- embedding gathers are plain-JAX glue; everything else is in the kernel ---
    not_pad = (input_ids != PAD_ID).astype(jnp.int32)
    pos_ids = jnp.cumsum(not_pad, axis=1) * not_pad + PAD_ID  # roberta position ids
    h0 = (params["word_emb"][input_ids]
          + params["pos_emb"][pos_ids]
          + params["type_emb"][0]).astype(F32)                # (B, S, H)

    # large finite constant instead of finfo.min (safe if activations go bf16 later)
    mask_bias = ((1.0 - attention_mask.astype(F32)) * -1e9).reshape(B, 1, S)

    weights = [params[n] for n in _WEIGHT_NAMES]

    def const_spec(a):
        nd = a.ndim
        return pl.BlockSpec(a.shape, lambda b, _n=nd: (0,) * _n)

    out = pl.pallas_call(
        _encoder_head_kernel,
        out_shape=jax.ShapeDtypeStruct((B, 1, LOGIT_PAD), F32),
        grid=(B,),
        in_specs=[pl.BlockSpec((1, S, HIDDEN), lambda b: (b, 0, 0)),   # h0
                  pl.BlockSpec((1, 1, S), lambda b: (b, 0, 0))]        # mask bias
                 + [const_spec(a) for a in weights],                   # VMEM-resident weights
        out_specs=pl.BlockSpec((1, 1, LOGIT_PAD), lambda b: (b, 0, 0)),
        compiler_params=pltpu.CompilerParams(
            dimension_semantics=("parallel",)),   # lets v7x split batch across its 2 TCs
    )(h0, mask_bias, *weights)

    return out[:, 0, :NUM_LABELS]                 # (B, NUM_LABELS)


if __name__ == "__main__":
    key = jax.random.PRNGKey(0)
    pkey, dkey = jax.random.split(key)
    params = init_params(pkey)

    B, S = 2, 8
    input_ids = jax.random.randint(dkey, (B, S), 3, VOCAB, dtype=jnp.int32)
    attention_mask = jnp.ones((B, S), dtype=jnp.int32)

    logits = jax.jit(custom_roberta_forward)(params, input_ids, attention_mask)
    jax.block_until_ready(logits)
    assert logits.shape == (B, NUM_LABELS) and logits.dtype == F32
    print("KERNEL_OK")
</pallas_src>

<mosaic_0001>
module attributes {stable_mosaic.version = 11 : i64} {
  func.func @_encoder_head_kernel(%arg0: i32, %arg1: memref<1x8x32xf32, #tpu.memory_space<vmem>>, %arg2: memref<1x1x8xf32, #tpu.memory_space<vmem>>, %arg3: memref<1x32xf32, #tpu.memory_space<vmem>>, %arg4: memref<1x32xf32, #tpu.memory_space<vmem>>, %arg5: memref<2x32x96xf32, #tpu.memory_space<vmem>>, %arg6: memref<2x1x96xf32, #tpu.memory_space<vmem>>, %arg7: memref<2x32x32xf32, #tpu.memory_space<vmem>>, %arg8: memref<2x1x32xf32, #tpu.memory_space<vmem>>, %arg9: memref<2x1x32xf32, #tpu.memory_space<vmem>>, %arg10: memref<2x1x32xf32, #tpu.memory_space<vmem>>, %arg11: memref<2x32x64xf32, #tpu.memory_space<vmem>>, %arg12: memref<2x1x64xf32, #tpu.memory_space<vmem>>, %arg13: memref<2x64x32xf32, #tpu.memory_space<vmem>>, %arg14: memref<2x1x32xf32, #tpu.memory_space<vmem>>, %arg15: memref<2x1x32xf32, #tpu.memory_space<vmem>>, %arg16: memref<2x1x32xf32, #tpu.memory_space<vmem>>, %arg17: memref<32x512xf32, #tpu.memory_space<vmem>>, %arg18: memref<1x512xf32, #tpu.memory_space<vmem>>, %arg19: memref<512x256xf32, #tpu.memory_space<vmem>>, %arg20: memref<1x256xf32, #tpu.memory_space<vmem>>, %arg21: memref<256x128xf32, #tpu.memory_space<vmem>>, %arg22: memref<1x128xf32, #tpu.memory_space<vmem>>, %arg23: memref<1x1x128xf32, #tpu.memory_space<vmem>>) attributes {dimension_semantics = [#tpu.dimension_semantics<parallel>], iteration_bounds = array<i64: 2>, scalar_prefetch = 0 : i64, scratch_operands = 0 : i64, tpu.core_type = #tpu.core_type<tc>, window_params = [{transform_indices = @transform_0, window_bounds = array<i64: 1, 8, 32>}, {transform_indices = @transform_1, window_bounds = array<i64: 1, 1, 8>}, {pipeline_mode = #tpu.pipeline_mode<synchronous>, transform_indices = @transform_2, window_bounds = array<i64: 1, 32>}, {pipeline_mode = #tpu.pipeline_mode<synchronous>, transform_indices = @transform_3, window_bounds = array<i64: 1, 32>}, {pipeline_mode = #tpu.pipeline_mode<synchronous>, transform_indices = @transform_4, window_bounds = array<i64: 2, 32, 96>}, {pipeline_mode = #tpu.pipeline_mode<synchronous>, transform_indices = @transform_5, window_bounds = array<i64: 2, 1, 96>}, {pipeline_mode = #tpu.pipeline_mode<synchronous>, transform_indices = @transform_6, window_bounds = array<i64: 2, 32, 32>}, {pipeline_mode = #tpu.pipeline_mode<synchronous>, transform_indices = @transform_7, window_bounds = array<i64: 2, 1, 32>}, {pipeline_mode = #tpu.pipeline_mode<synchronous>, transform_indices = @transform_8, window_bounds = array<i64: 2, 1, 32>}, {pipeline_mode = #tpu.pipeline_mode<synchronous>, transform_indices = @transform_9, window_bounds = array<i64: 2, 1, 32>}, {pipeline_mode = #tpu.pipeline_mode<synchronous>, transform_indices = @transform_10, window_bounds = array<i64: 2, 32, 64>}, {pipeline_mode = #tpu.pipeline_mode<synchronous>, transform_indices = @transform_11, window_bounds = array<i64: 2, 1, 64>}, {pipeline_mode = #tpu.pipeline_mode<synchronous>, transform_indices = @transform_12, window_bounds = array<i64: 2, 64, 32>}, {pipeline_mode = #tpu.pipeline_mode<synchronous>, transform_indices = @transform_13, window_bounds = array<i64: 2, 1, 32>}, {pipeline_mode = #tpu.pipeline_mode<synchronous>, transform_indices = @transform_14, window_bounds = array<i64: 2, 1, 32>}, {pipeline_mode = #tpu.pipeline_mode<synchronous>, transform_indices = @transform_15, window_bounds = array<i64: 2, 1, 32>}, {pipeline_mode = #tpu.pipeline_mode<synchronous>, transform_indices = @transform_16, window_bounds = array<i64: 32, 512>}, {pipeline_mode = #tpu.pipeline_mode<synchronous>, transform_indices = @transform_17, window_bounds = array<i64: 1, 512>}, {pipeline_mode = #tpu.pipeline_mode<synchronous>, transform_indices = @transform_18, window_bounds = array<i64: 512, 256>}, {pipeline_mode = #tpu.pipeline_mode<synchronous>, transform_indices = @transform_19, window_bounds = array<i64: 1, 256>}, {pipeline_mode = #tpu.pipeline_mode<synchronous>, transform_indices = @transform_20, window_bounds = array<i64: 256, 128>}, {pipeline_mode = #tpu.pipeline_mode<synchronous>, transform_indices = @transform_21, window_bounds = array<i64: 1, 128>}, {transform_indices = @transform_22, window_bounds = array<i64: 1, 1, 128>}]} {
    %c0 = arith.constant 0 : index
    %c0_0 = arith.constant 0 : index
    %c0_1 = arith.constant 0 : index
    %0 = vector.load %arg1[%c0, %c0_0, %c0_1] : memref<1x8x32xf32, #tpu.memory_space<vmem>>, vector<1x8x32xf32>
    %1 = vector.shape_cast %0 : vector<1x8x32xf32> to vector<8x32xf32>
    %c0_2 = arith.constant 0 : index
    %c0_3 = arith.constant 0 : index
    %c0_4 = arith.constant 0 : index
    %2 = vector.load %arg2[%c0_2, %c0_3, %c0_4] : memref<1x1x8xf32, #tpu.memory_space<vmem>>, vector<1x1x8xf32>
    %3 = vector.shape_cast %2 : vector<1x1x8xf32> to vector<1x8xf32>
    %c0_5 = arith.constant 0 : index
    %c0_6 = arith.constant 0 : index
    %4 = vector.load %arg3[%c0_5, %c0_6] : memref<1x32xf32, #tpu.memory_space<vmem>>, vector<1x32xf32>
    %c0_7 = arith.constant 0 : index
    %c0_8 = arith.constant 0 : index
    %5 = vector.load %arg4[%c0_7, %c0_8] : memref<1x32xf32, #tpu.memory_space<vmem>>, vector<1x32xf32>
    %cst = arith.constant dense<0.000000e+00> : vector<8xf32>
    %6 = vector.multi_reduction <add>, %1, %cst [1] : vector<8x32xf32> to vector<8xf32>
    %7 = vector.shape_cast %6 : vector<8xf32> to vector<8x1xf32>
    %cst_9 = arith.constant 3.200000e+01 : f32
    %8 = vector.broadcast %cst_9 : f32 to vector<8x1xf32>
    %9 = arith.divf %7, %8 : vector<8x1xf32>
    %10 = vector.broadcast %9 : vector<8x1xf32> to vector<8x32xf32>
    %11 = arith.subf %1, %10 : vector<8x32xf32>
    %12 = arith.mulf %11, %11 : vector<8x32xf32>
    %cst_10 = arith.constant dense<0.000000e+00> : vector<8xf32>
    %13 = vector.multi_reduction <add>, %12, %cst_10 [1] : vector<8x32xf32> to vector<8xf32>
    %14 = vector.shape_cast %13 : vector<8xf32> to vector<8x1xf32>
    %cst_11 = arith.constant 3.200000e+01 : f32
    %15 = vector.broadcast %cst_11 : f32 to vector<8x1xf32>
    %16 = arith.divf %14, %15 : vector<8x1xf32>
    %cst_12 = arith.constant 9.99999974E-6 : f32
    %17 = vector.broadcast %cst_12 : f32 to vector<8x1xf32>
    %18 = arith.addf %16, %17 : vector<8x1xf32>
    %19 = math.rsqrt %18 : vector<8x1xf32>
    %20 = vector.broadcast %19 : vector<8x1xf32> to vector<8x32xf32>
    %21 = arith.mulf %11, %20 : vector<8x32xf32>
    %22 = vector.broadcast %4 : vector<1x32xf32> to vector<8x32xf32>
    %23 = arith.mulf %21, %22 : vector<8x32xf32>
    %24 = vector.broadcast %5 : vector<1x32xf32> to vector<8x32xf32>
    %25 = arith.addf %23, %24 : vector<8x32xf32>
    %c0_13 = arith.constant 0 : index
    %c0_14 = arith.constant 0 : index
    %c0_15 = arith.constant 0 : index
    %26 = vector.load %arg5[%c0_13, %c0_14, %c0_15] : memref<2x32x96xf32, #tpu.memory_space<vmem>>, vector<1x32x96xf32>
    %27 = vector.shape_cast %26 : vector<1x32x96xf32> to vector<32x96xf32>
    %cst_16 = arith.constant dense<0.000000e+00> : vector<8x96xf32>
    %28 = tpu.matmul %25, %27, %cst_16 {dimension_numbers = #tpu.dot_dimension_numbers<[1], [0], [0], [1], [0, 0, 1, 1], [], []>} : vector<8x32xf32>, vector<32x96xf32>, vector<8x96xf32> -> vector<8x96xf32>
    %c0_17 = arith.constant 0 : index
    %c0_18 = arith.constant 0 : index
    %c0_19 = arith.constant 0 : index
    %29 = vector.load %arg6[%c0_17, %c0_18, %c0_19] : memref<2x1x96xf32, #tpu.memory_space<vmem>>, vector<1x1x96xf32>
    %30 = vector.shape_cast %29 : vector<1x1x96xf32> to vector<1x96xf32>
    %31 = vector.broadcast %30 : vector<1x96xf32> to vector<8x96xf32>
    %32 = arith.addf %28, %31 : vector<8x96xf32>
    %33 = vector.extract_strided_slice %32 {offsets = [0, 0], sizes = [8, 16], strides = [1, 1]} : vector<8x96xf32> to vector<8x16xf32>
    %34 = vector.extract_strided_slice %32 {offsets = [0, 32], sizes = [8, 16], strides = [1, 1]} : vector<8x96xf32> to vector<8x16xf32>
    %35 = vector.extract_strided_slice %32 {offsets = [0, 64], sizes = [8, 16], strides = [1, 1]} : vector<8x96xf32> to vector<8x16xf32>
    %cst_20 = arith.constant dense<0.000000e+00> : vector<8x8xf32>
    %36 = tpu.matmul %33, %34, %cst_20 {dimension_numbers = #tpu.dot_dimension_numbers<[1], [1], [0], [0], [0, 0, 1, 0], [], []>} : vector<8x16xf32>, vector<8x16xf32>, vector<8x8xf32> -> vector<8x8xf32>
    %cst_21 = arith.constant 2.500000e-01 : f32
    %37 = vector.broadcast %cst_21 : f32 to vector<8x8xf32>
    %38 = arith.mulf %36, %37 : vector<8x8xf32>
    %39 = vector.broadcast %3 : vector<1x8xf32> to vector<8x8xf32>
    %40 = arith.addf %38, %39 : vector<8x8xf32>
    %cst_22 = arith.constant dense<0xFF800000> : vector<8xf32>
    %41 = vector.multi_reduction <maximumf>, %40, %cst_22 [1] : vector<8x8xf32> to vector<8xf32>
    %42 = vector.shape_cast %41 : vector<8xf32> to vector<8x1xf32>
    %43 = vector.broadcast %42 : vector<8x1xf32> to vector<8x8xf32>
    %44 = arith.subf %40, %43 : vector<8x8xf32>
    %45 = math.exp %44 : vector<8x8xf32>
    %cst_23 = arith.constant dense<0.000000e+00> : vector<8xf32>
    %46 = vector.multi_reduction <add>, %45, %cst_23 [1] : vector<8x8xf32> to vector<8xf32>
    %47 = vector.shape_cast %46 : vector<8xf32> to vector<8x1xf32>
    %48 = tpu.reciprocal %47 {approx = true} : vector<8x1xf32> -> vector<8x1xf32>
    %49 = vector.broadcast %48 : vector<8x1xf32> to vector<8x8xf32>
    %50 = arith.mulf %45, %49 : vector<8x8xf32>
    %cst_24 = arith.constant dense<0.000000e+00> : vector<8x16xf32>
    %51 = tpu.matmul %50, %35, %cst_24 {dimension_numbers = #tpu.dot_dimension_numbers<[1], [0], [0], [1], [0, 0, 1, 1], [], []>} : vector<8x8xf32>, vector<8x16xf32>, vector<8x16xf32> -> vector<8x16xf32>
    %52 = vector.extract_strided_slice %32 {offsets = [0, 16], sizes = [8, 16], strides = [1, 1]} : vector<8x96xf32> to vector<8x16xf32>
    %53 = vector.extract_strided_slice %32 {offsets = [0, 48], sizes = [8, 16], strides = [1, 1]} : vector<8x96xf32> to vector<8x16xf32>
    %54 = vector.extract_strided_slice %32 {offsets = [0, 80], sizes = [8, 16], strides = [1, 1]} : vector<8x96xf32> to vector<8x16xf32>
    %cst_25 = arith.constant dense<0.000000e+00> : vector<8x8xf32>
    %55 = tpu.matmul %52, %53, %cst_25 {dimension_numbers = #tpu.dot_dimension_numbers<[1], [1], [0], [0], [0, 0, 1, 0], [], []>} : vector<8x16xf32>, vector<8x16xf32>, vector<8x8xf32> -> vector<8x8xf32>
    %cst_26 = arith.constant 2.500000e-01 : f32
    %56 = vector.broadcast %cst_26 : f32 to vector<8x8xf32>
    %57 = arith.mulf %55, %56 : vector<8x8xf32>
    %58 = vector.broadcast %3 : vector<1x8xf32> to vector<8x8xf32>
    %59 = arith.addf %57, %58 : vector<8x8xf32>
    %cst_27 = arith.constant dense<0xFF800000> : vector<8xf32>
    %60 = vector.multi_reduction <maximumf>, %59, %cst_27 [1] : vector<8x8xf32> to vector<8xf32>
    %61 = vector.shape_cast %60 : vector<8xf32> to vector<8x1xf32>
    %62 = vector.broadcast %61 : vector<8x1xf32> to vector<8x8xf32>
    %63 = arith.subf %59, %62 : vector<8x8xf32>
    %64 = math.exp %63 : vector<8x8xf32>
    %cst_28 = arith.constant dense<0.000000e+00> : vector<8xf32>
    %65 = vector.multi_reduction <add>, %64, %cst_28 [1] : vector<8x8xf32> to vector<8xf32>
    %66 = vector.shape_cast %65 : vector<8xf32> to vector<8x1xf32>
    %67 = tpu.reciprocal %66 {approx = true} : vector<8x1xf32> -> vector<8x1xf32>
    %68 = vector.broadcast %67 : vector<8x1xf32> to vector<8x8xf32>
    %69 = arith.mulf %64, %68 : vector<8x8xf32>
    %cst_29 = arith.constant dense<0.000000e+00> : vector<8x16xf32>
    %70 = tpu.matmul %69, %54, %cst_29 {dimension_numbers = #tpu.dot_dimension_numbers<[1], [0], [0], [1], [0, 0, 1, 1], [], []>} : vector<8x8xf32>, vector<8x16xf32>, vector<8x16xf32> -> vector<8x16xf32>
    %71 = tpu.concatenate %51, %70 in 1 : vector<8x16xf32>, vector<8x16xf32> -> vector<8x32xf32>
    %c0_30 = arith.constant 0 : index
    %c0_31 = arith.constant 0 : index
    %c0_32 = arith.constant 0 : index
    %72 = vector.load %arg7[%c0_30, %c0_31, %c0_32] : memref<2x32x32xf32, #tpu.memory_space<vmem>>, vector<1x32x32xf32>
    %73 = vector.shape_cast %72 : vector<1x32x32xf32> to vector<32x32xf32>
    %cst_33 = arith.constant dense<0.000000e+00> : vector<8x32xf32>
    %74 = tpu.matmul %71, %73, %cst_33 {dimension_numbers = #tpu.dot_dimension_numbers<[1], [0], [0], [1], [0, 0, 1, 1], [], []>} : vector<8x32xf32>, vector<32x32xf32>, vector<8x32xf32> -> vector<8x32xf32>
    %c0_34 = arith.constant 0 : index
    %c0_35 = arith.constant 0 : index
    %c0_36 = arith.constant 0 : index
    %75 = vector.load %arg8[%c0_34, %c0_35, %c0_36] : memref<2x1x32xf32, #tpu.memory_space<vmem>>, vector<1x1x32xf32>
    %76 = vector.shape_cast %75 : vector<1x1x32xf32> to vector<1x32xf32>
    %77 = vector.broadcast %76 : vector<1x32xf32> to vector<8x32xf32>
    %78 = arith.addf %74, %77 : vector<8x32xf32>
    %79 = arith.addf %78, %25 : vector<8x32xf32>
    %c0_37 = arith.constant 0 : index
    %c0_38 = arith.constant 0 : index
    %c0_39 = arith.constant 0 : index
    %80 = vector.load %arg9[%c0_37, %c0_38, %c0_39] : memref<2x1x32xf32, #tpu.memory_space<vmem>>, vector<1x1x32xf32>
    %81 = vector.shape_cast %80 : vector<1x1x32xf32> to vector<1x32xf32>
    %c0_40 = arith.constant 0 : index
    %c0_41 = arith.constant 0 : index
    %c0_42 = arith.constant 0 : index
    %82 = vector.load %arg10[%c0_40, %c0_41, %c0_42] : memref<2x1x32xf32, #tpu.memory_space<vmem>>, vector<1x1x32xf32>
    %83 = vector.shape_cast %82 : vector<1x1x32xf32> to vector<1x32xf32>
    %cst_43 = arith.constant dense<0.000000e+00> : vector<8xf32>
    %84 = vector.multi_reduction <add>, %79, %cst_43 [1] : vector<8x32xf32> to vector<8xf32>
    %85 = vector.shape_cast %84 : vector<8xf32> to vector<8x1xf32>
    %cst_44 = arith.constant 3.200000e+01 : f32
    %86 = vector.broadcast %cst_44 : f32 to vector<8x1xf32>
    %87 = arith.divf %85, %86 : vector<8x1xf32>
    %88 = vector.broadcast %87 : vector<8x1xf32> to vector<8x32xf32>
    %89 = arith.subf %79, %88 : vector<8x32xf32>
    %90 = arith.mulf %89, %89 : vector<8x32xf32>
    %cst_45 = arith.constant dense<0.000000e+00> : vector<8xf32>
    %91 = vector.multi_reduction <add>, %90, %cst_45 [1] : vector<8x32xf32> to vector<8xf32>
    %92 = vector.shape_cast %91 : vector<8xf32> to vector<8x1xf32>
    %cst_46 = arith.constant 3.200000e+01 : f32
    %93 = vector.broadcast %cst_46 : f32 to vector<8x1xf32>
    %94 = arith.divf %92, %93 : vector<8x1xf32>
    %cst_47 = arith.constant 9.99999974E-6 : f32
    %95 = vector.broadcast %cst_47 : f32 to vector<8x1xf32>
    %96 = arith.addf %94, %95 : vector<8x1xf32>
    %97 = math.rsqrt %96 : vector<8x1xf32>
    %98 = vector.broadcast %97 : vector<8x1xf32> to vector<8x32xf32>
    %99 = arith.mulf %89, %98 : vector<8x32xf32>
    %100 = vector.broadcast %81 : vector<1x32xf32> to vector<8x32xf32>
    %101 = arith.mulf %99, %100 : vector<8x32xf32>
    %102 = vector.broadcast %83 : vector<1x32xf32> to vector<8x32xf32>
    %103 = arith.addf %101, %102 : vector<8x32xf32>
    %c0_48 = arith.constant 0 : index
    %c0_49 = arith.constant 0 : index
    %c0_50 = arith.constant 0 : index
    %104 = vector.load %arg11[%c0_48, %c0_49, %c0_50] : memref<2x32x64xf32, #tpu.memory_space<vmem>>, vector<1x32x64xf32>
    %105 = vector.shape_cast %104 : vector<1x32x64xf32> to vector<32x64xf32>
    %cst_51 = arith.constant dense<0.000000e+00> : vector<8x64xf32>
    %106 = tpu.matmul %103, %105, %cst_51 {dimension_numbers = #tpu.dot_dimension_numbers<[1], [0], [0], [1], [0, 0, 1, 1], [], []>} : vector<8x32xf32>, vector<32x64xf32>, vector<8x64xf32> -> vector<8x64xf32>
    %c0_52 = arith.constant 0 : index
    %c0_53 = arith.constant 0 : index
    %c0_54 = arith.constant 0 : index
    %107 = vector.load %arg12[%c0_52, %c0_53, %c0_54] : memref<2x1x64xf32, #tpu.memory_space<vmem>>, vector<1x1x64xf32>
    %108 = vector.shape_cast %107 : vector<1x1x64xf32> to vector<1x64xf32>
    %109 = vector.broadcast %108 : vector<1x64xf32> to vector<8x64xf32>
    %110 = arith.addf %106, %109 : vector<8x64xf32>
    %cst_55 = arith.constant 5.000000e-01 : f32
    %111 = vector.broadcast %cst_55 : f32 to vector<8x64xf32>
    %112 = arith.mulf %111, %110 : vector<8x64xf32>
    %cst_56 = arith.constant 4.471500e-02 : f32
    %113 = vector.broadcast %cst_56 : f32 to vector<8x64xf32>
    %114 = arith.mulf %113, %110 : vector<8x64xf32>
    %115 = arith.mulf %114, %110 : vector<8x64xf32>
    %116 = arith.mulf %115, %110 : vector<8x64xf32>
    %117 = arith.addf %110, %116 : vector<8x64xf32>
    %cst_57 = arith.constant 0.797884583 : f32
    %118 = vector.broadcast %cst_57 : f32 to vector<8x64xf32>
    %119 = arith.mulf %118, %117 : vector<8x64xf32>
    %120 = math.tanh %119 : vector<8x64xf32>
    %cst_58 = arith.constant 1.000000e+00 : f32
    %121 = vector.broadcast %cst_58 : f32 to vector<8x64xf32>
    %122 = arith.addf %121, %120 : vector<8x64xf32>
    %123 = arith.mulf %112, %122 : vector<8x64xf32>
    %c0_59 = arith.constant 0 : index
    %c0_60 = arith.constant 0 : index
    %c0_61 = arith.constant 0 : index
    %124 = vector.load %arg13[%c0_59, %c0_60, %c0_61] : memref<2x64x32xf32, #tpu.memory_space<vmem>>, vector<1x64x32xf32>
    %125 = vector.shape_cast %124 : vector<1x64x32xf32> to vector<64x32xf32>
    %cst_62 = arith.constant dense<0.000000e+00> : vector<8x32xf32>
    %126 = tpu.matmul %123, %125, %cst_62 {dimension_numbers = #tpu.dot_dimension_numbers<[1], [0], [0], [1], [0, 0, 1, 1], [], []>} : vector<8x64xf32>, vector<64x32xf32>, vector<8x32xf32> -> vector<8x32xf32>
    %c0_63 = arith.constant 0 : index
    %c0_64 = arith.constant 0 : index
    %c0_65 = arith.constant 0 : index
    %127 = vector.load %arg14[%c0_63, %c0_64, %c0_65] : memref<2x1x32xf32, #tpu.memory_space<vmem>>, vector<1x1x32xf32>
    %128 = vector.shape_cast %127 : vector<1x1x32xf32> to vector<1x32xf32>
    %129 = vector.broadcast %128 : vector<1x32xf32> to vector<8x32xf32>
    %130 = arith.addf %126, %129 : vector<8x32xf32>
    %131 = arith.addf %130, %103 : vector<8x32xf32>
    %c0_66 = arith.constant 0 : index
    %c0_67 = arith.constant 0 : index
    %c0_68 = arith.constant 0 : index
    %132 = vector.load %arg15[%c0_66, %c0_67, %c0_68] : memref<2x1x32xf32, #tpu.memory_space<vmem>>, vector<1x1x32xf32>
    %133 = vector.shape_cast %132 : vector<1x1x32xf32> to vector<1x32xf32>
    %c0_69 = arith.constant 0 : index
    %c0_70 = arith.constant 0 : index
    %c0_71 = arith.constant 0 : index
    %134 = vector.load %arg16[%c0_69, %c0_70, %c0_71] : memref<2x1x32xf32, #tpu.memory_space<vmem>>, vector<1x1x32xf32>
    %135 = vector.shape_cast %134 : vector<1x1x32xf32> to vector<1x32xf32>
    %cst_72 = arith.constant dense<0.000000e+00> : vector<8xf32>
    %136 = vector.multi_reduction <add>, %131, %cst_72 [1] : vector<8x32xf32> to vector<8xf32>
    %137 = vector.shape_cast %136 : vector<8xf32> to vector<8x1xf32>
    %cst_73 = arith.constant 3.200000e+01 : f32
    %138 = vector.broadcast %cst_73 : f32 to vector<8x1xf32>
    %139 = arith.divf %137, %138 : vector<8x1xf32>
    %140 = vector.broadcast %139 : vector<8x1xf32> to vector<8x32xf32>
    %141 = arith.subf %131, %140 : vector<8x32xf32>
    %142 = arith.mulf %141, %141 : vector<8x32xf32>
    %cst_74 = arith.constant dense<0.000000e+00> : vector<8xf32>
    %143 = vector.multi_reduction <add>, %142, %cst_74 [1] : vector<8x32xf32> to vector<8xf32>
    %144 = vector.shape_cast %143 : vector<8xf32> to vector<8x1xf32>
    %cst_75 = arith.constant 3.200000e+01 : f32
    %145 = vector.broadcast %cst_75 : f32 to vector<8x1xf32>
    %146 = arith.divf %144, %145 : vector<8x1xf32>
    %cst_76 = arith.constant 9.99999974E-6 : f32
    %147 = vector.broadcast %cst_76 : f32 to vector<8x1xf32>
    %148 = arith.addf %146, %147 : vector<8x1xf32>
    %149 = math.rsqrt %148 : vector<8x1xf32>
    %150 = vector.broadcast %149 : vector<8x1xf32> to vector<8x32xf32>
    %151 = arith.mulf %141, %150 : vector<8x32xf32>
    %152 = vector.broadcast %133 : vector<1x32xf32> to vector<8x32xf32>
    %153 = arith.mulf %151, %152 : vector<8x32xf32>
    %154 = vector.broadcast %135 : vector<1x32xf32> to vector<8x32xf32>
    %155 = arith.addf %153, %154 : vector<8x32xf32>
    %c1 = arith.constant 1 : index
    %c0_77 = arith.constant 0 : index
    %c0_78 = arith.constant 0 : index
    %156 = vector.load %arg5[%c1, %c0_77, %c0_78] : memref<2x32x96xf32, #tpu.memory_space<vmem>>, vector<1x32x96xf32>
    %157 = vector.shape_cast %156 : vector<1x32x96xf32> to vector<32x96xf32>
    %cst_79 = arith.constant dense<0.000000e+00> : vector<8x96xf32>
    %158 = tpu.matmul %155, %157, %cst_79 {dimension_numbers = #tpu.dot_dimension_numbers<[1], [0], [0], [1], [0, 0, 1, 1], [], []>} : vector<8x32xf32>, vector<32x96xf32>, vector<8x96xf32> -> vector<8x96xf32>
    %c1_80 = arith.constant 1 : index
    %c0_81 = arith.constant 0 : index
    %c0_82 = arith.constant 0 : index
    %159 = vector.load %arg6[%c1_80, %c0_81, %c0_82] : memref<2x1x96xf32, #tpu.memory_space<vmem>>, vector<1x1x96xf32>
    %160 = vector.shape_cast %159 : vector<1x1x96xf32> to vector<1x96xf32>
    %161 = vector.broadcast %160 : vector<1x96xf32> to vector<8x96xf32>
    %162 = arith.addf %158, %161 : vector<8x96xf32>
    %163 = vector.extract_strided_slice %162 {offsets = [0, 0], sizes = [8, 16], strides = [1, 1]} : vector<8x96xf32> to vector<8x16xf32>
    %164 = vector.extract_strided_slice %162 {offsets = [0, 32], sizes = [8, 16], strides = [1, 1]} : vector<8x96xf32> to vector<8x16xf32>
    %165 = vector.extract_strided_slice %162 {offsets = [0, 64], sizes = [8, 16], strides = [1, 1]} : vector<8x96xf32> to vector<8x16xf32>
    %cst_83 = arith.constant dense<0.000000e+00> : vector<8x8xf32>
    %166 = tpu.matmul %163, %164, %cst_83 {dimension_numbers = #tpu.dot_dimension_numbers<[1], [1], [0], [0], [0, 0, 1, 0], [], []>} : vector<8x16xf32>, vector<8x16xf32>, vector<8x8xf32> -> vector<8x8xf32>
    %cst_84 = arith.constant 2.500000e-01 : f32
    %167 = vector.broadcast %cst_84 : f32 to vector<8x8xf32>
    %168 = arith.mulf %166, %167 : vector<8x8xf32>
    %169 = vector.broadcast %3 : vector<1x8xf32> to vector<8x8xf32>
    %170 = arith.addf %168, %169 : vector<8x8xf32>
    %cst_85 = arith.constant dense<0xFF800000> : vector<8xf32>
    %171 = vector.multi_reduction <maximumf>, %170, %cst_85 [1] : vector<8x8xf32> to vector<8xf32>
    %172 = vector.shape_cast %171 : vector<8xf32> to vector<8x1xf32>
    %173 = vector.broadcast %172 : vector<8x1xf32> to vector<8x8xf32>
    %174 = arith.subf %170, %173 : vector<8x8xf32>
    %175 = math.exp %174 : vector<8x8xf32>
    %cst_86 = arith.constant dense<0.000000e+00> : vector<8xf32>
    %176 = vector.multi_reduction <add>, %175, %cst_86 [1] : vector<8x8xf32> to vector<8xf32>
    %177 = vector.shape_cast %176 : vector<8xf32> to vector<8x1xf32>
    %178 = tpu.reciprocal %177 {approx = true} : vector<8x1xf32> -> vector<8x1xf32>
    %179 = vector.broadcast %178 : vector<8x1xf32> to vector<8x8xf32>
    %180 = arith.mulf %175, %179 : vector<8x8xf32>
    %cst_87 = arith.constant dense<0.000000e+00> : vector<8x16xf32>
    %181 = tpu.matmul %180, %165, %cst_87 {dimension_numbers = #tpu.dot_dimension_numbers<[1], [0], [0], [1], [0, 0, 1, 1], [], []>} : vector<8x8xf32>, vector<8x16xf32>, vector<8x16xf32> -> vector<8x16xf32>
    %182 = vector.extract_strided_slice %162 {offsets = [0, 16], sizes = [8, 16], strides = [1, 1]} : vector<8x96xf32> to vector<8x16xf32>
    %183 = vector.extract_strided_slice %162 {offsets = [0, 48], sizes = [8, 16], strides = [1, 1]} : vector<8x96xf32> to vector<8x16xf32>
    %184 = vector.extract_strided_slice %162 {offsets = [0, 80], sizes = [8, 16], strides = [1, 1]} : vector<8x96xf32> to vector<8x16xf32>
    %cst_88 = arith.constant dense<0.000000e+00> : vector<8x8xf32>
    %185 = tpu.matmul %182, %183, %cst_88 {dimension_numbers = #tpu.dot_dimension_numbers<[1], [1], [0], [0], [0, 0, 1, 0], [], []>} : vector<8x16xf32>, vector<8x16xf32>, vector<8x8xf32> -> vector<8x8xf32>
    %cst_89 = arith.constant 2.500000e-01 : f32
    %186 = vector.broadcast %cst_89 : f32 to vector<8x8xf32>
    %187 = arith.mulf %185, %186 : vector<8x8xf32>
    %188 = vector.broadcast %3 : vector<1x8xf32> to vector<8x8xf32>
    %189 = arith.addf %187, %188 : vector<8x8xf32>
    %cst_90 = arith.constant dense<0xFF800000> : vector<8xf32>
    %190 = vector.multi_reduction <maximumf>, %189, %cst_90 [1] : vector<8x8xf32> to vector<8xf32>
    %191 = vector.shape_cast %190 : vector<8xf32> to vector<8x1xf32>
    %192 = vector.broadcast %191 : vector<8x1xf32> to vector<8x8xf32>
    %193 = arith.subf %189, %192 : vector<8x8xf32>
    %194 = math.exp %193 : vector<8x8xf32>
    %cst_91 = arith.constant dense<0.000000e+00> : vector<8xf32>
    %195 = vector.multi_reduction <add>, %194, %cst_91 [1] : vector<8x8xf32> to vector<8xf32>
    %196 = vector.shape_cast %195 : vector<8xf32> to vector<8x1xf32>
    %197 = tpu.reciprocal %196 {approx = true} : vector<8x1xf32> -> vector<8x1xf32>
    %198 = vector.broadcast %197 : vector<8x1xf32> to vector<8x8xf32>
    %199 = arith.mulf %194, %198 : vector<8x8xf32>
    %cst_92 = arith.constant dense<0.000000e+00> : vector<8x16xf32>
    %200 = tpu.matmul %199, %184, %cst_92 {dimension_numbers = #tpu.dot_dimension_numbers<[1], [0], [0], [1], [0, 0, 1, 1], [], []>} : vector<8x8xf32>, vector<8x16xf32>, vector<8x16xf32> -> vector<8x16xf32>
    %201 = tpu.concatenate %181, %200 in 1 : vector<8x16xf32>, vector<8x16xf32> -> vector<8x32xf32>
    %c1_93 = arith.constant 1 : index
    %c0_94 = arith.constant 0 : index
    %c0_95 = arith.constant 0 : index
    %202 = vector.load %arg7[%c1_93, %c0_94, %c0_95] : memref<2x32x32xf32, #tpu.memory_space<vmem>>, vector<1x32x32xf32>
    %203 = vector.shape_cast %202 : vector<1x32x32xf32> to vector<32x32xf32>
    %cst_96 = arith.constant dense<0.000000e+00> : vector<8x32xf32>
    %204 = tpu.matmul %201, %203, %cst_96 {dimension_numbers = #tpu.dot_dimension_numbers<[1], [0], [0], [1], [0, 0, 1, 1], [], []>} : vector<8x32xf32>, vector<32x32xf32>, vector<8x32xf32> -> vector<8x32xf32>
    %c1_97 = arith.constant 1 : index
    %c0_98 = arith.constant 0 : index
    %c0_99 = arith.constant 0 : index
    %205 = vector.load %arg8[%c1_97, %c0_98, %c0_99] : memref<2x1x32xf32, #tpu.memory_space<vmem>>, vector<1x1x32xf32>
    %206 = vector.shape_cast %205 : vector<1x1x32xf32> to vector<1x32xf32>
    %207 = vector.broadcast %206 : vector<1x32xf32> to vector<8x32xf32>
    %208 = arith.addf %204, %207 : vector<8x32xf32>
    %209 = arith.addf %208, %155 : vector<8x32xf32>
    %c1_100 = arith.constant 1 : index
    %c0_101 = arith.constant 0 : index
    %c0_102 = arith.constant 0 : index
    %210 = vector.load %arg9[%c1_100, %c0_101, %c0_102] : memref<2x1x32xf32, #tpu.memory_space<vmem>>, vector<1x1x32xf32>
    %211 = vector.shape_cast %210 : vector<1x1x32xf32> to vector<1x32xf32>
    %c1_103 = arith.constant 1 : index
    %c0_104 = arith.constant 0 : index
    %c0_105 = arith.constant 0 : index
    %212 = vector.load %arg10[%c1_103, %c0_104, %c0_105] : memref<2x1x32xf32, #tpu.memory_space<vmem>>, vector<1x1x32xf32>
    %213 = vector.shape_cast %212 : vector<1x1x32xf32> to vector<1x32xf32>
    %cst_106 = arith.constant dense<0.000000e+00> : vector<8xf32>
    %214 = vector.multi_reduction <add>, %209, %cst_106 [1] : vector<8x32xf32> to vector<8xf32>
    %215 = vector.shape_cast %214 : vector<8xf32> to vector<8x1xf32>
    %cst_107 = arith.constant 3.200000e+01 : f32
    %216 = vector.broadcast %cst_107 : f32 to vector<8x1xf32>
    %217 = arith.divf %215, %216 : vector<8x1xf32>
    %218 = vector.broadcast %217 : vector<8x1xf32> to vector<8x32xf32>
    %219 = arith.subf %209, %218 : vector<8x32xf32>
    %220 = arith.mulf %219, %219 : vector<8x32xf32>
    %cst_108 = arith.constant dense<0.000000e+00> : vector<8xf32>
    %221 = vector.multi_reduction <add>, %220, %cst_108 [1] : vector<8x32xf32> to vector<8xf32>
    %222 = vector.shape_cast %221 : vector<8xf32> to vector<8x1xf32>
    %cst_109 = arith.constant 3.200000e+01 : f32
    %223 = vector.broadcast %cst_109 : f32 to vector<8x1xf32>
    %224 = arith.divf %222, %223 : vector<8x1xf32>
    %cst_110 = arith.constant 9.99999974E-6 : f32
    %225 = vector.broadcast %cst_110 : f32 to vector<8x1xf32>
    %226 = arith.addf %224, %225 : vector<8x1xf32>
    %227 = math.rsqrt %226 : vector<8x1xf32>
    %228 = vector.broadcast %227 : vector<8x1xf32> to vector<8x32xf32>
    %229 = arith.mulf %219, %228 : vector<8x32xf32>
    %230 = vector.broadcast %211 : vector<1x32xf32> to vector<8x32xf32>
    %231 = arith.mulf %229, %230 : vector<8x32xf32>
    %232 = vector.broadcast %213 : vector<1x32xf32> to vector<8x32xf32>
    %233 = arith.addf %231, %232 : vector<8x32xf32>
    %c1_111 = arith.constant 1 : index
    %c0_112 = arith.constant 0 : index
    %c0_113 = arith.constant 0 : index
    %234 = vector.load %arg11[%c1_111, %c0_112, %c0_113] : memref<2x32x64xf32, #tpu.memory_space<vmem>>, vector<1x32x64xf32>
    %235 = vector.shape_cast %234 : vector<1x32x64xf32> to vector<32x64xf32>
    %cst_114 = arith.constant dense<0.000000e+00> : vector<8x64xf32>
    %236 = tpu.matmul %233, %235, %cst_114 {dimension_numbers = #tpu.dot_dimension_numbers<[1], [0], [0], [1], [0, 0, 1, 1], [], []>} : vector<8x32xf32>, vector<32x64xf32>, vector<8x64xf32> -> vector<8x64xf32>
    %c1_115 = arith.constant 1 : index
    %c0_116 = arith.constant 0 : index
    %c0_117 = arith.constant 0 : index
    %237 = vector.load %arg12[%c1_115, %c0_116, %c0_117] : memref<2x1x64xf32, #tpu.memory_space<vmem>>, vector<1x1x64xf32>
    %238 = vector.shape_cast %237 : vector<1x1x64xf32> to vector<1x64xf32>
    %239 = vector.broadcast %238 : vector<1x64xf32> to vector<8x64xf32>
    %240 = arith.addf %236, %239 : vector<8x64xf32>
    %cst_118 = arith.constant 5.000000e-01 : f32
    %241 = vector.broadcast %cst_118 : f32 to vector<8x64xf32>
    %242 = arith.mulf %241, %240 : vector<8x64xf32>
    %cst_119 = arith.constant 4.471500e-02 : f32
    %243 = vector.broadcast %cst_119 : f32 to vector<8x64xf32>
    %244 = arith.mulf %243, %240 : vector<8x64xf32>
    %245 = arith.mulf %244, %240 : vector<8x64xf32>
    %246 = arith.mulf %245, %240 : vector<8x64xf32>
    %247 = arith.addf %240, %246 : vector<8x64xf32>
    %cst_120 = arith.constant 0.797884583 : f32
    %248 = vector.broadcast %cst_120 : f32 to vector<8x64xf32>
    %249 = arith.mulf %248, %247 : vector<8x64xf32>
    %250 = math.tanh %249 : vector<8x64xf32>
    %cst_121 = arith.constant 1.000000e+00 : f32
    %251 = vector.broadcast %cst_121 : f32 to vector<8x64xf32>
    %252 = arith.addf %251, %250 : vector<8x64xf32>
    %253 = arith.mulf %242, %252 : vector<8x64xf32>
    %c1_122 = arith.constant 1 : index
    %c0_123 = arith.constant 0 : index
    %c0_124 = arith.constant 0 : index
    %254 = vector.load %arg13[%c1_122, %c0_123, %c0_124] : memref<2x64x32xf32, #tpu.memory_space<vmem>>, vector<1x64x32xf32>
    %255 = vector.shape_cast %254 : vector<1x64x32xf32> to vector<64x32xf32>
    %cst_125 = arith.constant dense<0.000000e+00> : vector<8x32xf32>
    %256 = tpu.matmul %253, %255, %cst_125 {dimension_numbers = #tpu.dot_dimension_numbers<[1], [0], [0], [1], [0, 0, 1, 1], [], []>} : vector<8x64xf32>, vector<64x32xf32>, vector<8x32xf32> -> vector<8x32xf32>
    %c1_126 = arith.constant 1 : index
    %c0_127 = arith.constant 0 : index
    %c0_128 = arith.constant 0 : index
    %257 = vector.load %arg14[%c1_126, %c0_127, %c0_128] : memref<2x1x32xf32, #tpu.memory_space<vmem>>, vector<1x1x32xf32>
    %258 = vector.shape_cast %257 : vector<1x1x32xf32> to vector<1x32xf32>
    %259 = vector.broadcast %258 : vector<1x32xf32> to vector<8x32xf32>
    %260 = arith.addf %256, %259 : vector<8x32xf32>
    %261 = arith.addf %260, %233 : vector<8x32xf32>
    %c1_129 = arith.constant 1 : index
    %c0_130 = arith.constant 0 : index
    %c0_131 = arith.constant 0 : index
    %262 = vector.load %arg15[%c1_129, %c0_130, %c0_131] : memref<2x1x32xf32, #tpu.memory_space<vmem>>, vector<1x1x32xf32>
    %263 = vector.shape_cast %262 : vector<1x1x32xf32> to vector<1x32xf32>
    %c1_132 = arith.constant 1 : index
    %c0_133 = arith.constant 0 : index
    %c0_134 = arith.constant 0 : index
    %264 = vector.load %arg16[%c1_132, %c0_133, %c0_134] : memref<2x1x32xf32, #tpu.memory_space<vmem>>, vector<1x1x32xf32>
    %265 = vector.shape_cast %264 : vector<1x1x32xf32> to vector<1x32xf32>
    %cst_135 = arith.constant dense<0.000000e+00> : vector<8xf32>
    %266 = vector.multi_reduction <add>, %261, %cst_135 [1] : vector<8x32xf32> to vector<8xf32>
    %267 = vector.shape_cast %266 : vector<8xf32> to vector<8x1xf32>
    %cst_136 = arith.constant 3.200000e+01 : f32
    %268 = vector.broadcast %cst_136 : f32 to vector<8x1xf32>
    %269 = arith.divf %267, %268 : vector<8x1xf32>
    %270 = vector.broadcast %269 : vector<8x1xf32> to vector<8x32xf32>
    %271 = arith.subf %261, %270 : vector<8x32xf32>
    %272 = arith.mulf %271, %271 : vector<8x32xf32>
    %cst_137 = arith.constant dense<0.000000e+00> : vector<8xf32>
    %273 = vector.multi_reduction <add>, %272, %cst_137 [1] : vector<8x32xf32> to vector<8xf32>
    %274 = vector.shape_cast %273 : vector<8xf32> to vector<8x1xf32>
    %cst_138 = arith.constant 3.200000e+01 : f32
    %275 = vector.broadcast %cst_138 : f32 to vector<8x1xf32>
    %276 = arith.divf %274, %275 : vector<8x1xf32>
    %cst_139 = arith.constant 9.99999974E-6 : f32
    %277 = vector.broadcast %cst_139 : f32 to vector<8x1xf32>
    %278 = arith.addf %276, %277 : vector<8x1xf32>
    %279 = math.rsqrt %278 : vector<8x1xf32>
    %280 = vector.broadcast %279 : vector<8x1xf32> to vector<8x32xf32>
    %281 = arith.mulf %271, %280 : vector<8x32xf32>
    %282 = vector.broadcast %263 : vector<1x32xf32> to vector<8x32xf32>
    %283 = arith.mulf %281, %282 : vector<8x32xf32>
    %284 = vector.broadcast %265 : vector<1x32xf32> to vector<8x32xf32>
    %285 = arith.addf %283, %284 : vector<8x32xf32>
    %286 = vector.extract_strided_slice %285 {offsets = [0, 0], sizes = [1, 32], strides = [1, 1]} : vector<8x32xf32> to vector<1x32xf32>
    %c0_140 = arith.constant 0 : index
    %c0_141 = arith.constant 0 : index
    %287 = vector.load %arg17[%c0_140, %c0_141] : memref<32x512xf32, #tpu.memory_space<vmem>>, vector<32x512xf32>
    %cst_142 = arith.constant dense<0.000000e+00> : vector<1x512xf32>
    %288 = tpu.matmul %286, %287, %cst_142 {dimension_numbers = #tpu.dot_dimension_numbers<[1], [0], [0], [1], [0, 0, 1, 1], [], []>} : vector<1x32xf32>, vector<32x512xf32>, vector<1x512xf32> -> vector<1x512xf32>
    %c0_143 = arith.constant 0 : index
    %c0_144 = arith.constant 0 : index
    %289 = vector.load %arg18[%c0_143, %c0_144] : memref<1x512xf32, #tpu.memory_space<vmem>>, vector<1x512xf32>
    %290 = arith.addf %288, %289 : vector<1x512xf32>
    %cst_145 = arith.constant 0.000000e+00 : f32
    %291 = vector.broadcast %cst_145 : f32 to vector<1x512xf32>
    %292 = arith.maximumf %290, %291 : vector<1x512xf32>
    %c0_146 = arith.constant 0 : index
    %c0_147 = arith.constant 0 : index
    %293 = vector.load %arg19[%c0_146, %c0_147] : memref<512x256xf32, #tpu.memory_space<vmem>>, vector<512x256xf32>
    %cst_148 = arith.constant dense<0.000000e+00> : vector<1x256xf32>
    %294 = tpu.matmul %292, %293, %cst_148 {dimension_numbers = #tpu.dot_dimension_numbers<[1], [0], [0], [1], [0, 0, 1, 1], [], []>} : vector<1x512xf32>, vector<512x256xf32>, vector<1x256xf32> -> vector<1x256xf32>
    %c0_149 = arith.constant 0 : index
    %c0_150 = arith.constant 0 : index
    %295 = vector.load %arg20[%c0_149, %c0_150] : memref<1x256xf32, #tpu.memory_space<vmem>>, vector<1x256xf32>
    %296 = arith.addf %294, %295 : vector<1x256xf32>
    %cst_151 = arith.constant 0.000000e+00 : f32
    %297 = vector.broadcast %cst_151 : f32 to vector<1x256xf32>
    %298 = arith.maximumf %296, %297 : vector<1x256xf32>
    %c0_152 = arith.constant 0 : index
    %c0_153 = arith.constant 0 : index
    %299 = vector.load %arg21[%c0_152, %c0_153] : memref<256x128xf32, #tpu.memory_space<vmem>>, vector<256x128xf32>
    %cst_154 = arith.constant dense<0.000000e+00> : vector<1x128xf32>
    %300 = tpu.matmul %298, %299, %cst_154 {dimension_numbers = #tpu.dot_dimension_numbers<[1], [0], [0], [1], [0, 0, 1, 1], [], []>} : vector<1x256xf32>, vector<256x128xf32>, vector<1x128xf32> -> vector<1x128xf32>
    %c0_155 = arith.constant 0 : index
    %c0_156 = arith.constant 0 : index
    %301 = vector.load %arg22[%c0_155, %c0_156] : memref<1x128xf32, #tpu.memory_space<vmem>>, vector<1x128xf32>
    %302 = arith.addf %300, %301 : vector<1x128xf32>
    %c0_157 = arith.constant 0 : index
    %c0_158 = arith.constant 0 : index
    %c0_159 = arith.constant 0 : index
    %303 = vector.load %arg23[%c0_157, %c0_158, %c0_159] : memref<1x1x128xf32, #tpu.memory_space<vmem>>, vector<1x1x128xf32>
    %304 = vector.shape_cast %303 : vector<1x1x128xf32> to vector<1x128xf32>
    %305 = vector.shape_cast %302 : vector<1x128xf32> to vector<1x1x128xf32>
    tpu.vector_store %arg23[%c0_157, %c0_158, %c0_159], %305 {strides = array<i32>} : memref<1x1x128xf32, #tpu.memory_space<vmem>>, vector<1x1x128xf32>,
    return
  }
  func.func @transform_0(%arg0: i32) -> (i32, i32, i32) {
    %c0_i32 = arith.constant 0 : i32
    %c0_i32_0 = arith.constant 0 : i32
    %c0_i32_1 = arith.constant 0 : i32
    return %arg0, %c0_i32, %c0_i32_0 : i32, i32, i32
  }
  func.func @transform_1(%arg0: i32) -> (i32, i32, i32) {
    %c0_i32 = arith.constant 0 : i32
    %c0_i32_0 = arith.constant 0 : i32
    %c0_i32_1 = arith.constant 0 : i32
    return %arg0, %c0_i32, %c0_i32_0 : i32, i32, i32
  }
  func.func @transform_2(%arg0: i32) -> (i32, i32) {
    %c0_i32 = arith.constant 0 : i32
    %c0_i32_0 = arith.constant 0 : i32
    %c0_i32_1 = arith.constant 0 : i32
    return %c0_i32, %c0_i32_0 : i32, i32
  }
  func.func @transform_3(%arg0: i32) -> (i32, i32) {
    %c0_i32 = arith.constant 0 : i32
    %c0_i32_0 = arith.constant 0 : i32
    %c0_i32_1 = arith.constant 0 : i32
    return %c0_i32, %c0_i32_0 : i32, i32
  }
  func.func @transform_4(%arg0: i32) -> (i32, i32, i32) {
    %c0_i32 = arith.constant 0 : i32
    %c0_i32_0 = arith.constant 0 : i32
    %c0_i32_1 = arith.constant 0 : i32
    %c0_i32_2 = arith.constant 0 : i32
    return %c0_i32, %c0_i32_0, %c0_i32_1 : i32, i32, i32
  }
  func.func @transform_5(%arg0: i32) -> (i32, i32, i32) {
    %c0_i32 = arith.constant 0 : i32
    %c0_i32_0 = arith.constant 0 : i32
    %c0_i32_1 = arith.constant 0 : i32
    %c0_i32_2 = arith.constant 0 : i32
    return %c0_i32, %c0_i32_0, %c0_i32_1 : i32, i32, i32
  }
  func.func @transform_6(%arg0: i32) -> (i32, i32, i32) {
    %c0_i32 = arith.constant 0 : i32
    %c0_i32_0 = arith.constant 0 : i32
    %c0_i32_1 = arith.constant 0 : i32
    %c0_i32_2 = arith.constant 0 : i32
    return %c0_i32, %c0_i32_0, %c0_i32_1 : i32, i32, i32
  }
  func.func @transform_7(%arg0: i32) -> (i32, i32, i32) {
    %c0_i32 = arith.constant 0 : i32
    %c0_i32_0 = arith.constant 0 : i32
    %c0_i32_1 = arith.constant 0 : i32
    %c0_i32_2 = arith.constant 0 : i32
    return %c0_i32, %c0_i32_0, %c0_i32_1 : i32, i32, i32
  }
  func.func @transform_8(%arg0: i32) -> (i32, i32, i32) {
    %c0_i32 = arith.constant 0 : i32
    %c0_i32_0 = arith.constant 0 : i32
    %c0_i32_1 = arith.constant 0 : i32
    %c0_i32_2 = arith.constant 0 : i32
    return %c0_i32, %c0_i32_0, %c0_i32_1 : i32, i32, i32
  }
  func.func @transform_9(%arg0: i32) -> (i32, i32, i32) {
    %c0_i32 = arith.constant 0 : i32
    %c0_i32_0 = arith.constant 0 : i32
    %c0_i32_1 = arith.constant 0 : i32
    %c0_i32_2 = arith.constant 0 : i32
    return %c0_i32, %c0_i32_0, %c0_i32_1 : i32, i32, i32
  }
  func.func @transform_10(%arg0: i32) -> (i32, i32, i32) {
    %c0_i32 = arith.constant 0 : i32
    %c0_i32_0 = arith.constant 0 : i32
    %c0_i32_1 = arith.constant 0 : i32
    %c0_i32_2 = arith.constant 0 : i32
    return %c0_i32, %c0_i32_0, %c0_i32_1 : i32, i32, i32
  }
  func.func @transform_11(%arg0: i32) -> (i32, i32, i32) {
    %c0_i32 = arith.constant 0 : i32
    %c0_i32_0 = arith.constant 0 : i32
    %c0_i32_1 = arith.constant 0 : i32
    %c0_i32_2 = arith.constant 0 : i32
    return %c0_i32, %c0_i32_0, %c0_i32_1 : i32, i32, i32
  }
  func.func @transform_12(%arg0: i32) -> (i32, i32, i32) {
    %c0_i32 = arith.constant 0 : i32
    %c0_i32_0 = arith.constant 0 : i32
    %c0_i32_1 = arith.constant 0 : i32
    %c0_i32_2 = arith.constant 0 : i32
    return %c0_i32, %c0_i32_0, %c0_i32_1 : i32, i32, i32
  }
  func.func @transform_13(%arg0: i32) -> (i32, i32, i32) {
    %c0_i32 = arith.constant 0 : i32
    %c0_i32_0 = arith.constant 0 : i32
    %c0_i32_1 = arith.constant 0 : i32
    %c0_i32_2 = arith.constant 0 : i32
    return %c0_i32, %c0_i32_0, %c0_i32_1 : i32, i32, i32
  }
  func.func @transform_14(%arg0: i32) -> (i32, i32, i32) {
    %c0_i32 = arith.constant 0 : i32
    %c0_i32_0 = arith.constant 0 : i32
    %c0_i32_1 = arith.constant 0 : i32
    %c0_i32_2 = arith.constant 0 : i32
    return %c0_i32, %c0_i32_0, %c0_i32_1 : i32, i32, i32
  }
  func.func @transform_15(%arg0: i32) -> (i32, i32, i32) {
    %c0_i32 = arith.constant 0 : i32
    %c0_i32_0 = arith.constant 0 : i32
    %c0_i32_1 = arith.constant 0 : i32
    %c0_i32_2 = arith.constant 0 : i32
    return %c0_i32, %c0_i32_0, %c0_i32_1 : i32, i32, i32
  }
  func.func @transform_16(%arg0: i32) -> (i32, i32) {
    %c0_i32 = arith.constant 0 : i32
    %c0_i32_0 = arith.constant 0 : i32
    %c0_i32_1 = arith.constant 0 : i32
    return %c0_i32, %c0_i32_0 : i32, i32
  }
  func.func @transform_17(%arg0: i32) -> (i32, i32) {
    %c0_i32 = arith.constant 0 : i32
    %c0_i32_0 = arith.constant 0 : i32
    %c0_i32_1 = arith.constant 0 : i32
    return %c0_i32, %c0_i32_0 : i32, i32
  }
  func.func @transform_18(%arg0: i32) -> (i32, i32) {
    %c0_i32 = arith.constant 0 : i32
    %c0_i32_0 = arith.constant 0 : i32
    %c0_i32_1 = arith.constant 0 : i32
    return %c0_i32, %c0_i32_0 : i32, i32
  }
  func.func @transform_19(%arg0: i32) -> (i32, i32) {
    %c0_i32 = arith.constant 0 : i32
    %c0_i32_0 = arith.constant 0 : i32
    %c0_i32_1 = arith.constant 0 : i32
    return %c0_i32, %c0_i32_0 : i32, i32
  }
  func.func @transform_20(%arg0: i32) -> (i32, i32) {
    %c0_i32 = arith.constant 0 : i32
    %c0_i32_0 = arith.constant 0 : i32
    %c0_i32_1 = arith.constant 0 : i32
    return %c0_i32, %c0_i32_0 : i32, i32
  }
  func.func @transform_21(%arg0: i32) -> (i32, i32) {
    %c0_i32 = arith.constant 0 : i32
    %c0_i32_0 = arith.constant 0 : i32
    %c0_i32_1 = arith.constant 0 : i32
    return %c0_i32, %c0_i32_0 : i32, i32
  }
  func.func @transform_22(%arg0: i32) -> (i32, i32, i32) {
    %c0_i32 = arith.constant 0 : i32
    %c0_i32_0 = arith.constant 0 : i32
    %c0_i32_1 = arith.constant 0 : i32
    return %arg0, %c0_i32, %c0_i32_0 : i32, i32, i32
  }
}

</mosaic_0001>

<llo_original>
// kernel: custom_roberta_forward.1
$region0: #{custom_roberta_forward.1}
  #allocation0 [shape = 'u32[]', space=smem, size = 0x4, offset = 0x4, fixed_abs, tag = 'smem constant byte address 0x4 - core index']
  #allocation1 [shape = 'u32[144,128]{1,0:T(1,128)}', space=vmem, size = 0x12000, scoped, tag = 'internal scratch']
  %s0 = inlined_call_operand.vmem [shape: f32[2,8,32], index: 0, kind: input, shape index: {}]
  %s1 = inlined_call_operand.vmem [shape: f32[2,1,8], index: 1, kind: input, shape index: {}]
  %s2 = inlined_call_operand.vmem [shape: f32[1,32], index: 2, kind: input, shape index: {}]
  %s3 = inlined_call_operand.vmem [shape: f32[1,32], index: 3, kind: input, shape index: {}]
  %s4 = inlined_call_operand.vmem [shape: f32[2,32,96], index: 4, kind: input, shape index: {}]
  %s5 = inlined_call_operand.vmem [shape: f32[2,1,96], index: 5, kind: input, shape index: {}]
  %s6 = inlined_call_operand.vmem [shape: f32[2,32,32], index: 6, kind: input, shape index: {}]
  %s7 = inlined_call_operand.vmem [shape: f32[2,1,32], index: 7, kind: input, shape index: {}]
  %s8 = inlined_call_operand.vmem [shape: f32[2,1,32], index: 8, kind: input, shape index: {}]
  %s9 = inlined_call_operand.vmem [shape: f32[2,1,32], index: 9, kind: input, shape index: {}]
  %s10 = inlined_call_operand.vmem [shape: f32[2,32,64], index: 10, kind: input, shape index: {}]
  %s11 = inlined_call_operand.vmem [shape: f32[2,1,64], index: 11, kind: input, shape index: {}]
  %s12 = inlined_call_operand.vmem [shape: f32[2,64,32], index: 12, kind: input, shape index: {}]
  %s13 = inlined_call_operand.vmem [shape: f32[2,1,32], index: 13, kind: input, shape index: {}]
  %s14 = inlined_call_operand.vmem [shape: f32[2,1,32], index: 14, kind: input, shape index: {}]
  %s15 = inlined_call_operand.vmem [shape: f32[2,1,32], index: 15, kind: input, shape index: {}]
  %s16 = inlined_call_operand.vmem [shape: f32[32,512], index: 16, kind: input, shape index: {}]
  %s17 = inlined_call_operand.vmem [shape: f32[1,512], index: 17, kind: input, shape index: {}]
  %s18 = inlined_call_operand.hbm [shape: f32[512,256], index: 18, kind: input, shape index: {}]
  %s19 = inlined_call_operand.vmem [shape: f32[1,256], index: 19, kind: input, shape index: {}]
  %s20 = inlined_call_operand.vmem [shape: f32[256,128], index: 20, kind: input, shape index: {}]
  %s21 = inlined_call_operand.vmem [shape: f32[1,128], index: 21, kind: input, shape index: {}]
  %s22 = inlined_call_operand.hbm [shape: f32[2,1,128], index: 22, kind: output, shape index: {}]
  %s23 = sld [smem:[#allocation0]]
  $region125: #{custom_roberta_forward.1} parent=0
    _
  %s25 = ssub.s32 1, %s23
  %s26 = scalar_select 0, %s25, %s23
  $region1: #{custom_roberta_forward.1} parent=0
    #allocation2 [shape = 'u8[524288]{0}', space=vmem, size = 0x80000, scoped, tag = 'input window, operand 18, single buffered']
    #allocation3 [shape = 's32[2]{0}', space=sflag, size = 0x8, scoped, tag = 'scoped memory for custom_roberta_forward.1']
    #allocation4 [shape = 's32[2]{0}', space=sflag, size = 0x8, scoped, tag = 'scoped memory for custom_roberta_forward.1']
    #allocation5 [shape = 'u8[1024]{0}', space=vmem, size = 0x400, scoped, tag = 'output window, operand 0']
    %27 = vsyncpa [#allocation3], 0
    %28 = vsyncpa [#allocation4], 0
    %s29 = scalar_lea.sflag [#allocation4], 1
    %30 = vsyncpa %s29, 0
    loop: start=0, step=1, limit=4
    $region2: #{custom_roberta_forward.1} parent=1 // loop_pre_header
      _
    $region3: #{custom_roberta_forward.1} parent=1 // loop_header
      %s32 = sphi 0, %s36
      %p33 = scmp.ge.s32.totalorder %s32, 4
      %s42 = sphi 0, %s44
      %s45 = sphi 0, %s42
      %s46 = sphi 0, %s45
      %s62 = sphi 0, %s46
      %s68 = sphi 0, %s70
      %s71 = sphi 0, %s68
      %s72 = sphi 0, %s71
      %s88 = sphi 0, %s72
      %s92 = sphi 0, %s92
      %s94 = sphi 0, %s92
      %s95 = sphi 0, %s94
      %s109 = sphi 0, %s95
      %s113 = sphi 0, %s113
      %s115 = sphi 0, %s113
      %s116 = sphi 0, %s115
      %s130 = sphi 0, %s116
      %s134 = sphi 0, %s134
      %s136 = sphi 0, %s134
      %s137 = sphi 0, %s136
      %s151 = sphi 0, %s137
      %s155 = sphi 0, %s155
      %s157 = sphi 0, %s155
      %s158 = sphi 0, %s157
      %s172 = sphi 0, %s158
      %s176 = sphi 0, %s176
      %s178 = sphi 0, %s176
      %s179 = sphi 0, %s178
      %s193 = sphi 0, %s179
      %s197 = sphi 0, %s197
      %s199 = sphi 0, %s197
      %s200 = sphi 0, %s199
      %s214 = sphi 0, %s200
      %s218 = sphi 0, %s218
      %s220 = sphi 0, %s218
      %s221 = sphi 0, %s220
      %s235 = sphi 0, %s221
      %s239 = sphi 0, %s239
      %s241 = sphi 0, %s239
      %s242 = sphi 0, %s241
      %s256 = sphi 0, %s242
      %s260 = sphi 0, %s260
      %s262 = sphi 0, %s260
      %s263 = sphi 0, %s262
      %s277 = sphi 0, %s263
      %s281 = sphi 0, %s281
      %s283 = sphi 0, %s281
      %s284 = sphi 0, %s283
      %s298 = sphi 0, %s284
      %s302 = sphi 0, %s302
      %s304 = sphi 0, %s302
      %s305 = sphi 0, %s304
      %s319 = sphi 0, %s305
      %s323 = sphi 0, %s323
      %s325 = sphi 0, %s323
      %s326 = sphi 0, %s325
      %s340 = sphi 0, %s326
      %s344 = sphi 0, %s344
      %s346 = sphi 0, %s344
      %s347 = sphi 0, %s346
      %s361 = sphi 0, %s347
      %s365 = sphi 0, %s365
      %s367 = sphi 0, %s365
      %s368 = sphi 0, %s367
      %s382 = sphi 0, %s368
      %s386 = sphi 0, %s386
      %s388 = sphi 0, %s386
      %s389 = sphi 0, %s388
      %s403 = sphi 0, %s389
      %s407 = sphi 0, %s407
      %s409 = sphi 0, %s407
      %s410 = sphi 0, %s409
      %s424 = sphi 0, %s410
      %s428 = sphi 0, %s428
      %s430 = sphi 0, %s428
      %s431 = sphi 0, %s430
      %s445 = sphi 0, %s431
      %s449 = sphi 0, %s449
      %s451 = sphi 0, %s449
      %s452 = sphi 0, %s451
      %s466 = sphi 0, %s452
      %s470 = sphi 0, %s470
      %s472 = sphi 0, %s470
      %s473 = sphi 0, %s472
      %s487 = sphi 0, %s473
      %s491 = sphi 0, %s491
      %s493 = sphi 0, %s491
      %s494 = sphi 0, %s493
      %s508 = sphi 0, %s494
      %s514 = sphi 0, %s516
      %s517 = sphi 0, %s514
      %s518 = sphi 0, %s517
      %s534 = sphi 0, %s518
    $region4: #{custom_roberta_forward.1} parent=1 // loop_header_branch
      %35 = sbr.rel (%p33) target = $region8
    $region5: #{custom_roberta_forward.1} parent=1 // loop_body
      %s37 = ssub.s32 %s32, 1
      %s38 = ssub.s32 %s32, 2
      %s39 = sadd.s32 %s32, 1
      %s40 = ssub.s32 %s32, %s39
      %p41 = scmp.eq.s32.totalorder %s40, 0
      %s43 = sadd.s32 %s42, 1
      %s44 = scalar_select %p41, %s42, %s43
      %p47 = pneg %p41
      %p48 = scmp.eq.s32.totalorder %s32, 1
      %p49 = por %p47, %p48
      %p50 = scmp.ne.s32.totalorder %s42, %s45
      %p51 = scmp.eq.s32.totalorder %s32, 0
      %p52 = por %p50, %p51
      %p53 = scmp.ne.s32.totalorder %s42, %s45
      %p54 = scmp.eq.s32.totalorder %s37, 1
      %p55 = por %p53, %p54
      %p56 = scmp.ne.s32.totalorder %s45, %s46
      %p57 = scmp.eq.s32.totalorder %s37, 0
      %p58 = por %p56, %p57
      %p59 = scmp.ne.s32.totalorder %s45, %s46
      %p60 = scmp.eq.s32.totalorder %s38, 1
      %p61 = por %p59, %p60
      %p63 = scmp.ne.s32.totalorder %s46, %s62
      %p64 = scmp.eq.s32.totalorder %s38, 0
      %p65 = por %p63, %p64
      %s66 = ssub.s32 %s32, %s39
      %p67 = scmp.eq.s32.totalorder %s66, 0
      %s69 = sadd.s32 %s68, 1
      %s70 = scalar_select %p67, %s68, %s69
      %p73 = pneg %p67
      %p74 = scmp.eq.s32.totalorder %s32, 1
      %p75 = por %p73, %p74
      %p76 = scmp.ne.s32.totalorder %s68, %s71
      %p77 = scmp.eq.s32.totalorder %s32, 0
      %p78 = por %p76, %p77
      %p79 = scmp.ne.s32.totalorder %s68, %s71
      %p80 = scmp.eq.s32.totalorder %s37, 1
      %p81 = por %p79, %p80
      %p82 = scmp.ne.s32.totalorder %s71, %s72
      %p83 = scmp.eq.s32.totalorder %s37, 0
      %p84 = por %p82, %p83
      %p85 = scmp.ne.s32.totalorder %s71, %s72
      %p86 = scmp.eq.s32.totalorder %s38, 1
      %p87 = por %p85, %p86
      %p89 = scmp.ne.s32.totalorder %s72, %s88
      %p90 = scmp.eq.s32.totalorder %s38, 0
      %p91 = por %p89, %p90
      %s93 = sadd.s32 %s92, 1
      %p96 = scmp.eq.s32.totalorder %s32, 1
      %p97 = scmp.ne.s32.totalorder %s92, %s94
      %p98 = scmp.eq.s32.totalorder %s32, 0
      %p99 = por %p97, %p98
      %p100 = scmp.ne.s32.totalorder %s92, %s94
      %p101 = scmp.eq.s32.totalorder %s37, 1
      %p102 = por %p100, %p101
      %p103 = scmp.ne.s32.totalorder %s94, %s95
      %p104 = scmp.eq.s32.totalorder %s37, 0
      %p105 = por %p103, %p104
      %p106 = scmp.ne.s32.totalorder %s94, %s95
      %p107 = scmp.eq.s32.totalorder %s38, 1
      %p108 = por %p106, %p107
      %p110 = scmp.ne.s32.totalorder %s95, %s109
      %p111 = scmp.eq.s32.totalorder %s38, 0
      %p112 = por %p110, %p111
      %s114 = sadd.s32 %s113, 1
      %p117 = scmp.eq.s32.totalorder %s32, 1
      %p118 = scmp.ne.s32.totalorder %s113, %s115
      %p119 = scmp.eq.s32.totalorder %s32, 0
      %p120 = por %p118, %p119
      %p121 = scmp.ne.s32.totalorder %s113, %s115
      %p122 = scmp.eq.s32.totalorder %s37, 1
      %p123 = por %p121, %p122
      %p124 = scmp.ne.s32.totalorder %s115, %s116
      %p125 = scmp.eq.s32.totalorder %s37, 0
      %p126 = por %p124, %p125
      %p127 = scmp.ne.s32.totalorder %s115, %s116
      %p128 = scmp.eq.s32.totalorder %s38, 1
      %p129 = por %p127, %p128
      %p131 = scmp.ne.s32.totalorder %s116, %s130
      %p132 = scmp.eq.s32.totalorder %s38, 0
      %p133 = por %p131, %p132
      %s135 = sadd.s32 %s134, 1
      %p138 = scmp.eq.s32.totalorder %s32, 1
      %p139 = scmp.ne.s32.totalorder %s134, %s136
      %p140 = scmp.eq.s32.totalorder %s32, 0
      %p141 = por %p139, %p140
      %p142 = scmp.ne.s32.totalorder %s134, %s136
      %p143 = scmp.eq.s32.totalorder %s37, 1
      %p144 = por %p142, %p143
      %p145 = scmp.ne.s32.totalorder %s136, %s137
      %p146 = scmp.eq.s32.totalorder %s37, 0
      %p147 = por %p145, %p146
      %p148 = scmp.ne.s32.totalorder %s136, %s137
      %p149 = scmp.eq.s32.totalorder %s38, 1
      %p150 = por %p148, %p149
      %p152 = scmp.ne.s32.totalorder %s137, %s151
      %p153 = scmp.eq.s32.totalorder %s38, 0
      %p154 = por %p152, %p153
      %s156 = sadd.s32 %s155, 1
      %p159 = scmp.eq.s32.totalorder %s32, 1
      %p160 = scmp.ne.s32.totalorder %s155, %s157
      %p161 = scmp.eq.s32.totalorder %s32, 0
      %p162 = por %p160, %p161
      %p163 = scmp.ne.s32.totalorder %s155, %s157
      %p164 = scmp.eq.s32.totalorder %s37, 1
      %p165 = por %p163, %p164
      %p166 = scmp.ne.s32.totalorder %s157, %s158
      %p167 = scmp.eq.s32.totalorder %s37, 0
      %p168 = por %p166, %p167
      %p169 = scmp.ne.s32.totalorder %s157, %s158
      %p170 = scmp.eq.s32.totalorder %s38, 1
      %p171 = por %p169, %p170
      %p173 = scmp.ne.s32.totalorder %s158, %s172
      %p174 = scmp.eq.s32.totalorder %s38, 0
      %p175 = por %p173, %p174
      %s177 = sadd.s32 %s176, 1
      %p180 = scmp.eq.s32.totalorder %s32, 1
      %p181 = scmp.ne.s32.totalorder %s176, %s178
      %p182 = scmp.eq.s32.totalorder %s32, 0
      %p183 = por %p181, %p182
      %p184 = scmp.ne.s32.totalorder %s176, %s178
      %p185 = scmp.eq.s32.totalorder %s37, 1
      %p186 = por %p184, %p185
      %p187 = scmp.ne.s32.totalorder %s178, %s179
      %p188 = scmp.eq.s32.totalorder %s37, 0
      %p189 = por %p187, %p188
      %p190 = scmp.ne.s32.totalorder %s178, %s179
      %p191 = scmp.eq.s32.totalorder %s38, 1
      %p192 = por %p190, %p191
      %p194 = scmp.ne.s32.totalorder %s179, %s193
      %p195 = scmp.eq.s32.totalorder %s38, 0
      %p196 = por %p194, %p195
      %s198 = sadd.s32 %s197, 1
      %p201 = scmp.eq.s32.totalorder %s32, 1
      %p202 = scmp.ne.s32.totalorder %s197, %s199
      %p203 = scmp.eq.s32.totalorder %s32, 0
      %p204 = por %p202, %p203
      %p205 = scmp.ne.s32.totalorder %s197, %s199
      %p206 = scmp.eq.s32.totalorder %s37, 1
      %p207 = por %p205, %p206
      %p208 = scmp.ne.s32.totalorder %s199, %s200
      %p209 = scmp.eq.s32.totalorder %s37, 0
      %p210 = por %p208, %p209
      %p211 = scmp.ne.s32.totalorder %s199, %s200
      %p212 = scmp.eq.s32.totalorder %s38, 1
      %p213 = por %p211, %p212
      %p215 = scmp.ne.s32.totalorder %s200, %s214
      %p216 = scmp.eq.s32.totalorder %s38, 0
      %p217 = por %p215, %p216
      %s219 = sadd.s32 %s218, 1
      %p222 = scmp.eq.s32.totalorder %s32, 1
      %p223 = scmp.ne.s32.totalorder %s218, %s220
      %p224 = scmp.eq.s32.totalorder %s32, 0
      %p225 = por %p223, %p224
      %p226 = scmp.ne.s32.totalorder %s218, %s220
      %p227 = scmp.eq.s32.totalorder %s37, 1
      %p228 = por %p226, %p227
      %p229 = scmp.ne.s32.totalorder %s220, %s221
      %p230 = scmp.eq.s32.totalorder %s37, 0
      %p231 = por %p229, %p230
      %p232 = scmp.ne.s32.totalorder %s220, %s221
      %p233 = scmp.eq.s32.totalorder %s38, 1
      %p234 = por %p232, %p233
      %p236 = scmp.ne.s32.totalorder %s221, %s235
      %p237 = scmp.eq.s32.totalorder %s38, 0
      %p238 = por %p236, %p237
      %s240 = sadd.s32 %s239, 1
      %p243 = scmp.eq.s32.totalorder %s32, 1
      %p244 = scmp.ne.s32.totalorder %s239, %s241
      %p245 = scmp.eq.s32.totalorder %s32, 0
      %p246 = por %p244, %p245
      %p247 = scmp.ne.s32.totalorder %s239, %s241
      %p248 = scmp.eq.s32.totalorder %s37, 1
      %p249 = por %p247, %p248
      %p250 = scmp.ne.s32.totalorder %s241, %s242
      %p251 = scmp.eq.s32.totalorder %s37, 0
      %p252 = por %p250, %p251
      %p253 = scmp.ne.s32.totalorder %s241, %s242
      %p254 = scmp.eq.s32.totalorder %s38, 1
      %p255 = por %p253, %p254
      %p257 = scmp.ne.s32.totalorder %s242, %s256
      %p258 = scmp.eq.s32.totalorder %s38, 0
      %p259 = por %p257, %p258
      %s261 = sadd.s32 %s260, 1
      %p264 = scmp.eq.s32.totalorder %s32, 1
      %p265 = scmp.ne.s32.totalorder %s260, %s262
      %p266 = scmp.eq.s32.totalorder %s32, 0
      %p267 = por %p265, %p266
      %p268 = scmp.ne.s32.totalorder %s260, %s262
      %p269 = scmp.eq.s32.totalorder %s37, 1
      %p270 = por %p268, %p269
      %p271 = scmp.ne.s32.totalorder %s262, %s263
      %p272 = scmp.eq.s32.totalorder %s37, 0
      %p273 = por %p271, %p272
      %p274 = scmp.ne.s32.totalorder %s262, %s263
      %p275 = scmp.eq.s32.totalorder %s38, 1
      %p276 = por %p274, %p275
      %p278 = scmp.ne.s32.totalorder %s263, %s277
      %p279 = scmp.eq.s32.totalorder %s38, 0
      %p280 = por %p278, %p279
      %s282 = sadd.s32 %s281, 1
      %p285 = scmp.eq.s32.totalorder %s32, 1
      %p286 = scmp.ne.s32.totalorder %s281, %s283
      %p287 = scmp.eq.s32.totalorder %s32, 0
      %p288 = por %p286, %p287
      %p289 = scmp.ne.s32.totalorder %s281, %s283
      %p290 = scmp.eq.s32.totalorder %s37, 1
      %p291 = por %p289, %p290
      %p292 = scmp.ne.s32.totalorder %s283, %s284
      %p293 = scmp.eq.s32.totalorder %s37, 0
      %p294 = por %p292, %p293
      %p295 = scmp.ne.s32.totalorder %s283, %s284
      %p296 = scmp.eq.s32.totalorder %s38, 1
      %p297 = por %p295, %p296
      %p299 = scmp.ne.s32.totalorder %s284, %s298
      %p300 = scmp.eq.s32.totalorder %s38, 0
      %p301 = por %p299, %p300
      %s303 = sadd.s32 %s302, 1
      %p306 = scmp.eq.s32.totalorder %s32, 1
      %p307 = scmp.ne.s32.totalorder %s302, %s304
      %p308 = scmp.eq.s32.totalorder %s32, 0
      %p309 = por %p307, %p308
      %p310 = scmp.ne.s32.totalorder %s302, %s304
      %p311 = scmp.eq.s32.totalorder %s37, 1
      %p312 = por %p310, %p311
      %p313 = scmp.ne.s32.totalorder %s304, %s305
      %p314 = scmp.eq.s32.totalorder %s37, 0
      %p315 = por %p313, %p314
      %p316 = scmp.ne.s32.totalorder %s304, %s305
      %p317 = scmp.eq.s32.totalorder %s38, 1
      %p318 = por %p316, %p317
      %p320 = scmp.ne.s32.totalorder %s305, %s319
      %p321 = scmp.eq.s32.totalorder %s38, 0
      %p322 = por %p320, %p321
      %s324 = sadd.s32 %s323, 1
      %p327 = scmp.eq.s32.totalorder %s32, 1
      %p328 = scmp.ne.s32.totalorder %s323, %s325
      %p329 = scmp.eq.s32.totalorder %s32, 0
      %p330 = por %p328, %p329
      %p331 = scmp.ne.s32.totalorder %s323, %s325
      %p332 = scmp.eq.s32.totalorder %s37, 1
      %p333 = por %p331, %p332
      %p334 = scmp.ne.s32.totalorder %s325, %s326
      %p335 = scmp.eq.s32.totalorder %s37, 0
      %p336 = por %p334, %p335
      %p337 = scmp.ne.s32.totalorder %s325, %s326
      %p338 = scmp.eq.s32.totalorder %s38, 1
      %p339 = por %p337, %p338
      %p341 = scmp.ne.s32.totalorder %s326, %s340
      %p342 = scmp.eq.s32.totalorder %s38, 0
      %p343 = por %p341, %p342
      %s345 = sadd.s32 %s344, 1
      %p348 = scmp.eq.s32.totalorder %s32, 1
      %p349 = scmp.ne.s32.totalorder %s344, %s346
      %p350 = scmp.eq.s32.totalorder %s32, 0
      %p351 = por %p349, %p350
      %p352 = scmp.ne.s32.totalorder %s344, %s346
      %p353 = scmp.eq.s32.totalorder %s37, 1
      %p354 = por %p352, %p353
      %p355 = scmp.ne.s32.totalorder %s346, %s347
      %p356 = scmp.eq.s32.totalorder %s37, 0
      %p357 = por %p355, %p356
      %p358 = scmp.ne.s32.totalorder %s346, %s347
      %p359 = scmp.eq.s32.totalorder %s38, 1
      %p360 = por %p358, %p359
      %p362 = scmp.ne.s32.totalorder %s347, %s361
      %p363 = scmp.eq.s32.totalorder %s38, 0
      %p364 = por %p362, %p363
      %s366 = sadd.s32 %s365, 1
      %p369 = scmp.eq.s32.totalorder %s32, 1
      %p370 = scmp.ne.s32.totalorder %s365, %s367
      %p371 = scmp.eq.s32.totalorder %s32, 0
      %p372 = por %p370, %p371
      %p373 = scmp.ne.s32.totalorder %s365, %s367
      %p374 = scmp.eq.s32.totalorder %s37, 1
      %p375 = por %p373, %p374
      %p376 = scmp.ne.s32.totalorder %s367, %s368
      %p377 = scmp.eq.s32.totalorder %s37, 0
      %p378 = por %p376, %p377
      %p379 = scmp.ne.s32.totalorder %s367, %s368
      %p380 = scmp.eq.s32.totalorder %s38, 1
      %p381 = por %p379, %p380
      %p383 = scmp.ne.s32.totalorder %s368, %s382
      %p384 = scmp.eq.s32.totalorder %s38, 0
      %p385 = por %p383, %p384
      %s387 = sadd.s32 %s386, 1
      %p390 = scmp.eq.s32.totalorder %s32, 1
      %p391 = scmp.ne.s32.totalorder %s386, %s388
      %p392 = scmp.eq.s32.totalorder %s32, 0
      %p393 = por %p391, %p392
      %p394 = scmp.ne.s32.totalorder %s386, %s388
      %p395 = scmp.eq.s32.totalorder %s37, 1
      %p396 = por %p394, %p395
      %p397 = scmp.ne.s32.totalorder %s388, %s389
      %p398 = scmp.eq.s32.totalorder %s37, 0
      %p399 = por %p397, %p398
      %p400 = scmp.ne.s32.totalorder %s388, %s389
      %p401 = scmp.eq.s32.totalorder %s38, 1
      %p402 = por %p400, %p401
      %p404 = scmp.ne.s32.totalorder %s389, %s403
      %p405 = scmp.eq.s32.totalorder %s38, 0
      %p406 = por %p404, %p405
      %s408 = sadd.s32 %s407, 1
      %p411 = scmp.eq.s32.totalorder %s32, 1
      %p412 = scmp.ne.s32.totalorder %s407, %s409
      %p413 = scmp.eq.s32.totalorder %s32, 0
      %p414 = por %p412, %p413
      %p415 = scmp.ne.s32.totalorder %s407, %s409
      %p416 = scmp.eq.s32.totalorder %s37, 1
      %p417 = por %p415, %p416
      %p418 = scmp.ne.s32.totalorder %s409, %s410
      %p419 = scmp.eq.s32.totalorder %s37, 0
      %p420 = por %p418, %p419
      %p421 = scmp.ne.s32.totalorder %s409, %s410
      %p422 = scmp.eq.s32.totalorder %s38, 1
      %p423 = por %p421, %p422
      %p425 = scmp.ne.s32.totalorder %s410, %s424
      %p426 = scmp.eq.s32.totalorder %s38, 0
      %p427 = por %p425, %p426
      %s429 = sadd.s32 %s428, 1
      %p432 = scmp.eq.s32.totalorder %s32, 1
      %p433 = scmp.ne.s32.totalorder %s428, %s430
      %p434 = scmp.eq.s32.totalorder %s32, 0
      %p435 = por %p433, %p434
      %p436 = scmp.ne.s32.totalorder %s428, %s430
      %p437 = scmp.eq.s32.totalorder %s37, 1
      %p438 = por %p436, %p437
      %p439 = scmp.ne.s32.totalorder %s430, %s431
      %p440 = scmp.eq.s32.totalorder %s37, 0
      %p441 = por %p439, %p440
      %p442 = scmp.ne.s32.totalorder %s430, %s431
      %p443 = scmp.eq.s32.totalorder %s38, 1
      %p444 = por %p442, %p443
      %p446 = scmp.ne.s32.totalorder %s431, %s445
      %p447 = scmp.eq.s32.totalorder %s38, 0
      %p448 = por %p446, %p447
      %s450 = sadd.s32 %s449, 1
      %p453 = scmp.eq.s32.totalorder %s32, 1
      %p454 = scmp.ne.s32.totalorder %s449, %s451
      %p455 = scmp.eq.s32.totalorder %s32, 0
      %p456 = por %p454, %p455
      %p457 = scmp.ne.s32.totalorder %s449, %s451
      %p458 = scmp.eq.s32.totalorder %s37, 1
      %p459 = por %p457, %p458
      %p460 = scmp.ne.s32.totalorder %s451, %s452
      %p461 = scmp.eq.s32.totalorder %s37, 0
      %p462 = por %p460, %p461
      %p463 = scmp.ne.s32.totalorder %s451, %s452
      %p464 = scmp.eq.s32.totalorder %s38, 1
      %p465 = por %p463, %p464
      %p467 = scmp.ne.s32.totalorder %s452, %s466
      %p468 = scmp.eq.s32.totalorder %s38, 0
      %p469 = por %p467, %p468
      %s471 = sadd.s32 %s470, 1
      %p474 = scmp.eq.s32.totalorder %s32, 1
      %p475 = scmp.ne.s32.totalorder %s470, %s472
      %p476 = scmp.eq.s32.totalorder %s32, 0
      %p477 = por %p475, %p476
      %p478 = scmp.ne.s32.totalorder %s470, %s472
      %p479 = scmp.eq.s32.totalorder %s37, 1
      %p480 = por %p478, %p479
      %p481 = scmp.ne.s32.totalorder %s472, %s473
      %p482 = scmp.eq.s32.totalorder %s37, 0
      %p483 = por %p481, %p482
      %p484 = scmp.ne.s32.totalorder %s472, %s473
      %p485 = scmp.eq.s32.totalorder %s38, 1
      %p486 = por %p484, %p485
      %p488 = scmp.ne.s32.totalorder %s473, %s487
      %p489 = scmp.eq.s32.totalorder %s38, 0
      %p490 = por %p488, %p489
      %s492 = sadd.s32 %s491, 1
      %p495 = scmp.eq.s32.totalorder %s32, 1
      %p496 = scmp.ne.s32.totalorder %s491, %s493
      %p497 = scmp.eq.s32.totalorder %s32, 0
      %p498 = por %p496, %p497
      %p499 = scmp.ne.s32.totalorder %s491, %s493
      %p500 = scmp.eq.s32.totalorder %s37, 1
      %p501 = por %p499, %p500
      %p502 = scmp.ne.s32.totalorder %s493, %s494
      %p503 = scmp.eq.s32.totalorder %s37, 0
      %p504 = por %p502, %p503
      %p505 = scmp.ne.s32.totalorder %s493, %s494
      %p506 = scmp.eq.s32.totalorder %s38, 1
      %p507 = por %p505, %p506
      %p509 = scmp.ne.s32.totalorder %s494, %s508
      %p510 = scmp.eq.s32.totalorder %s38, 0
      %p511 = por %p509, %p510
      %s512 = ssub.s32 %s32, %s39
      %p513 = scmp.eq.s32.totalorder %s512, 0
      %s515 = sadd.s32 %s514, 1
      %s516 = scalar_select %p513, %s514, %s515
      %p519 = pneg %p513
      %p520 = scmp.eq.s32.totalorder %s32, 1
      %p521 = por %p519, %p520
      %p522 = scmp.ne.s32.totalorder %s514, %s517
      %p523 = scmp.eq.s32.totalorder %s32, 0
      %p524 = por %p522, %p523
      %p525 = scmp.ne.s32.totalorder %s514, %s517
      %p526 = scmp.eq.s32.totalorder %s37, 1
      %p527 = por %p525, %p526
      %p528 = scmp.ne.s32.totalorder %s517, %s518
      %p529 = scmp.eq.s32.totalorder %s37, 0
      %p530 = por %p528, %p529
      %p531 = scmp.ne.s32.totalorder %s517, %s518
      %p532 = scmp.eq.s32.totalorder %s38, 1
      %p533 = por %p531, %p532
      %p535 = scmp.ne.s32.totalorder %s518, %s534
      %p536 = scmp.eq.s32.totalorder %s38, 0
      %p537 = por %p535, %p536
      %p538 = scmp.le.s32.totalorder 1, %s32
      %p539 = scmp.lt.s32.totalorder %s32, 3
      %p540 = pnand %p538, %p539
      %p541 = pneg %p540
      // Predicated region
      $region9: #{custom_roberta_forward.1} parent=5 // pred_check
        _
      $region10: #{custom_roberta_forward.1} parent=5 // pred_check_branch
        %543 = sbr.rel (%p540) target = $region12
      $region11: #{custom_roberta_forward.1} parent=5 // pred_region
        %s544 = ssub.s32 %s32, 1
        // Predicated region
        $region13: #{custom_roberta_forward.1} parent=11 // pred_check
          %p545 = pneg %p105
        $region14: #{custom_roberta_forward.1} parent=11 // pred_check_branch
          %547 = sbr.rel (%p545) target = $region16
        $region15: #{custom_roberta_forward.1} parent=11 // pred_region
          _
        $region16: #{custom_roberta_forward.1} parent=11 // pred_fallthru
          _
        // Predicated region
        $region17: #{custom_roberta_forward.1} parent=11 // pred_check
          %p548 = pneg %p126
        $region18: #{custom_roberta_forward.1} parent=11 // pred_check_branch
          %550 = sbr.rel (%p548) target = $region20
        $region19: #{custom_roberta_forward.1} parent=11 // pred_region
          _
        $region20: #{custom_roberta_forward.1} parent=11 // pred_fallthru
          _
        // Predicated region
        $region21: #{custom_roberta_forward.1} parent=11 // pred_check
          %p551 = pneg %p147
        $region22: #{custom_roberta_forward.1} parent=11 // pred_check_branch
          %553 = sbr.rel (%p551) target = $region24
        $region23: #{custom_roberta_forward.1} parent=11 // pred_region
          _
        $region24: #{custom_roberta_forward.1} parent=11 // pred_fallthru
          _
        // Predicated region
        $region25: #{custom_roberta_forward.1} parent=11 // pred_check
          %p554 = pneg %p168
        $region26: #{custom_roberta_forward.1} parent=11 // pred_check_branch
          %556 = sbr.rel (%p554) target = $region28
        $region27: #{custom_roberta_forward.1} parent=11 // pred_region
          _
        $region28: #{custom_roberta_forward.1} parent=11 // pred_fallthru
          _
        // Predicated region
        $region29: #{custom_roberta_forward.1} parent=11 // pred_check
          %p557 = pneg %p189
        $region30: #{custom_roberta_forward.1} parent=11 // pred_check_branch
          %559 = sbr.rel (%p557) target = $region32
        $region31: #{custom_roberta_forward.1} parent=11 // pred_region
          _
        $region32: #{custom_roberta_forward.1} parent=11 // pred_fallthru
          _
        // Predicated region
        $region33: #{custom_roberta_forward.1} parent=11 // pred_check
          %p560 = pneg %p210
        $region34: #{custom_roberta_forward.1} parent=11 // pred_check_branch
          %562 = sbr.rel (%p560) target = $region36
        $region35: #{custom_roberta_forward.1} parent=11 // pred_region
          _
        $region36: #{custom_roberta_forward.1} parent=11 // pred_fallthru
          _
        // Predicated region
        $region37: #{custom_roberta_forward.1} parent=11 // pred_check
          %p563 = pneg %p231
        $region38: #{custom_roberta_forward.1} parent=11 // pred_check_branch
          %565 = sbr.rel (%p563) target = $region40
        $region39: #{custom_roberta_forward.1} parent=11 // pred_region
          _
        $region40: #{custom_roberta_forward.1} parent=11 // pred_fallthru
          _
        // Predicated region
        $region41: #{custom_roberta_forward.1} parent=11 // pred_check
          %p566 = pneg %p252
        $region42: #{custom_roberta_forward.1} parent=11 // pred_check_branch
          %568 = sbr.rel (%p566) target = $region44
        $region43: #{custom_roberta_forward.1} parent=11 // pred_region
          _
        $region44: #{custom_roberta_forward.1} parent=11 // pred_fallthru
          _
        // Predicated region
        $region45: #{custom_roberta_forward.1} parent=11 // pred_check
          %p569 = pneg %p273
        $region46: #{custom_roberta_forward.1} parent=11 // pred_check_branch
          %571 = sbr.rel (%p569) target = $region48
        $region47: #{custom_roberta_forward.1} parent=11 // pred_region
          _
        $region48: #{custom_roberta_forward.1} parent=11 // pred_fallthru
          _
        // Predicated region
        $region49: #{custom_roberta_forward.1} parent=11 // pred_check
          %p572 = pneg %p294
        $region50: #{custom_roberta_forward.1} parent=11 // pred_check_branch
          %574 = sbr.rel (%p572) target = $region52
        $region51: #{custom_roberta_forward.1} parent=11 // pred_region
          _
        $region52: #{custom_roberta_forward.1} parent=11 // pred_fallthru
          _
        // Predicated region
        $region53: #{custom_roberta_forward.1} parent=11 // pred_check
          %p575 = pneg %p315
        $region54: #{custom_roberta_forward.1} parent=11 // pred_check_branch
          %577 = sbr.rel (%p575) target = $region56
        $region55: #{custom_roberta_forward.1} parent=11 // pred_region
          _
        $region56: #{custom_roberta_forward.1} parent=11 // pred_fallthru
          _
        // Predicated region
        $region57: #{custom_roberta_forward.1} parent=11 // pred_check
          %p578 = pneg %p336
        $region58: #{custom_roberta_forward.1} parent=11 // pred_check_branch
          %580 = sbr.rel (%p578) target = $region60
        $region59: #{custom_roberta_forward.1} parent=11 // pred_region
          _
        $region60: #{custom_roberta_forward.1} parent=11 // pred_fallthru
          _
        // Predicated region
        $region61: #{custom_roberta_forward.1} parent=11 // pred_check
          %p581 = pneg %p357
        $region62: #{custom_roberta_forward.1} parent=11 // pred_check_branch
          %583 = sbr.rel (%p581) target = $region64
        $region63: #{custom_roberta_forward.1} parent=11 // pred_region
          _
        $region64: #{custom_roberta_forward.1} parent=11 // pred_fallthru
          _
        // Predicated region
        $region65: #{custom_roberta_forward.1} parent=11 // pred_check
          %p584 = pneg %p378
        $region66: #{custom_roberta_forward.1} parent=11 // pred_check_branch
          %586 = sbr.rel (%p584) target = $region68
        $region67: #{custom_roberta_forward.1} parent=11 // pred_region
          _
        $region68: #{custom_roberta_forward.1} parent=11 // pred_fallthru
          _
        // Predicated region
        $region69: #{custom_roberta_forward.1} parent=11 // pred_check
          %p587 = pneg %p399
        $region70: #{custom_roberta_forward.1} parent=11 // pred_check_branch
          %589 = sbr.rel (%p587) target = $region72
        $region71: #{custom_roberta_forward.1} parent=11 // pred_region
          _
        $region72: #{custom_roberta_forward.1} parent=11 // pred_fallthru
          _
        // Predicated region
        $region73: #{custom_roberta_forward.1} parent=11 // pred_check
          %p590 = pneg %p420
        $region74: #{custom_roberta_forward.1} parent=11 // pred_check_branch
          %592 = sbr.rel (%p590) target = $region76
        $region75: #{custom_roberta_forward.1} parent=11 // pred_region
          _
        $region76: #{custom_roberta_forward.1} parent=11 // pred_fallthru
          _
        // Predicated region
        $region77: #{custom_roberta_forward.1} parent=11 // pred_check
          %p593 = pneg %p441
        $region78: #{custom_roberta_forward.1} parent=11 // pred_check_branch
          %595 = sbr.rel (%p593) target = $region80
        $region79: #{custom_roberta_forward.1} parent=11 // pred_region
          %s597 = ssub.s32 16384, 16384
          %598 = vsyncadd [#allocation3], %s597
          %s599 = sshll.u32 [#allocation2], 4
          %s600 = int_to_ptr.vmem [resolvable:$true] %s599
          %605 = dma.hbm_to_vmem [thread:$0]  %s18, 16384, %s600, [#allocation3], 256, 256, 16
        $region80: #{custom_roberta_forward.1} parent=11 // pred_fallthru
          _
        // Predicated region
        $region81: #{custom_roberta_forward.1} parent=11 // pred_check
          %p606 = pneg %p462
        $region82: #{custom_roberta_forward.1} parent=11 // pred_check_branch
          %608 = sbr.rel (%p606) target = $region84
        $region83: #{custom_roberta_forward.1} parent=11 // pred_region
          _
        $region84: #{custom_roberta_forward.1} parent=11 // pred_fallthru
          _
        // Predicated region
        $region85: #{custom_roberta_forward.1} parent=11 // pred_check
          %p609 = pneg %p483
        $region86: #{custom_roberta_forward.1} parent=11 // pred_check_branch
          %611 = sbr.rel (%p609) target = $region88
        $region87: #{custom_roberta_forward.1} parent=11 // pred_region
          _
        $region88: #{custom_roberta_forward.1} parent=11 // pred_fallthru
          _
        // Predicated region
        $region89: #{custom_roberta_forward.1} parent=11 // pred_check
          %p612 = pneg %p504
        $region90: #{custom_roberta_forward.1} parent=11 // pred_check_branch
          %614 = sbr.rel (%p612) target = $region92
        $region91: #{custom_roberta_forward.1} parent=11 // pred_region
          _
        $region92: #{custom_roberta_forward.1} parent=11 // pred_fallthru
          _
      $region12: #{custom_roberta_forward.1} parent=5 // pred_fallthru
        _
      %p615 = scmp.lt.s32.totalorder %s32, 2
      // Predicated region
      $region93: #{custom_roberta_forward.1} parent=5 // pred_check
        %p616 = pneg %p615
      $region94: #{custom_roberta_forward.1} parent=5 // pred_check_branch
        %618 = sbr.rel (%p616) target = $region96
      $region95: #{custom_roberta_forward.1} parent=5 // pred_region
        // Predicated region
        $region97: #{custom_roberta_forward.1} parent=95 // pred_check
          %p619 = pneg %p52
        $region98: #{custom_roberta_forward.1} parent=95 // pred_check_branch
          %621 = sbr.rel (%p619) target = $region100
        $region99: #{custom_roberta_forward.1} parent=95 // pred_region
          %p622 = scmp.lt.s32.totalorder %s32, 1
          %s623 = scalar_select %p622, %s32, 1
          %s624 = smul.addr %s623, 8
          %s625 = scalar_lea.vmem %s0, %s624
        $region100: #{custom_roberta_forward.1} parent=95 // pred_fallthru
          _
        // Predicated region
        $region101: #{custom_roberta_forward.1} parent=95 // pred_check
          %p626 = pneg %p78
        $region102: #{custom_roberta_forward.1} parent=95 // pred_check_branch
          %628 = sbr.rel (%p626) target = $region104
        $region103: #{custom_roberta_forward.1} parent=95 // pred_region
          %p629 = scmp.lt.s32.totalorder %s32, 1
          %s630 = scalar_select %p629, %s32, 1
          %s631 = scalar_lea.vmem %s1, %s630
        $region104: #{custom_roberta_forward.1} parent=95 // pred_fallthru
          _
      $region96: #{custom_roberta_forward.1} parent=5 // pred_fallthru
        _
      %p632 = scmp.le.s32.totalorder 1, %s32
      %p633 = scmp.lt.s32.totalorder %s32, 3
      %p634 = pnand %p632, %p633
      %p635 = pneg %p634
      // Predicated region
      $region105: #{custom_roberta_forward.1} parent=5 // pred_check
        _
      $region106: #{custom_roberta_forward.1} parent=5 // pred_check_branch
        %637 = sbr.rel (%p634) target = $region108
      $region107: #{custom_roberta_forward.1} parent=5 // pred_region
        %s638 = ssub.s32 %s32, 1
        // Predicated region
        $region109: #{custom_roberta_forward.1} parent=107 // pred_check
          %p639 = pneg %p441
        $region110: #{custom_roberta_forward.1} parent=107 // pred_check_branch
          %641 = sbr.rel (%p639) target = $region112
        $region111: #{custom_roberta_forward.1} parent=107 // pred_region
          %642 = dma.done [#allocation3], 16384
        $region112: #{custom_roberta_forward.1} parent=107 // pred_fallthru
          _
        %p643 = scmp.lt.s32.totalorder %s37, 1
        %s644 = scalar_select %p643, %s37, 1
        %s645 = smul.addr %s644, 8
        %s646 = scalar_lea.vmem %s0, %s645
        %p647 = pneg %p58
        %p648 = pneg %p55
        %p649 = scmp.lt.s32.totalorder %s37, 1
        %s650 = scalar_select %p649, %s37, 1
        %s651 = scalar_lea.vmem %s1, %s650
        %p652 = pneg %p84
        %p653 = pneg %p81
        %p654 = pneg %p105
        %p655 = pneg %p102
        %p656 = pneg %p126
        %p657 = pneg %p123
        %p658 = pneg %p147
        %p659 = pneg %p144
        %p660 = pneg %p168
        %p661 = pneg %p165
        %p662 = pneg %p189
        %p663 = pneg %p186
        %p664 = pneg %p210
        %p665 = pneg %p207
        %p666 = pneg %p231
        %p667 = pneg %p228
        %p668 = pneg %p252
        %p669 = pneg %p249
        %p670 = pneg %p273
        %p671 = pneg %p270
        %p672 = pneg %p294
        %p673 = pneg %p291
        %p674 = pneg %p315
        %p675 = pneg %p312
        %p676 = pneg %p336
        %p677 = pneg %p333
        %p678 = pneg %p357
        %p679 = pneg %p354
        %p680 = pneg %p378
        %p681 = pneg %p375
        %p682 = pneg %p399
        %p683 = pneg %p396
        %p684 = pneg %p420
        %p685 = pneg %p417
        %p686 = pneg %p441
        %p687 = pneg %p438
        %p688 = pneg %p462
        %p689 = pneg %p459
        %p690 = pneg %p483
        %p691 = pneg %p480
        %p692 = pneg %p504
        %p693 = pneg %p501
        %p694 = pneg %p530
        %p695 = pneg %p527
        %s696 = sand.u32 %s517, 1
        %s697 = scalar_lea.sflag [#allocation4], %s696
        %s698 = sand.u32 %s517, 1
        %s699 = scalar_lea.vmem [#allocation5], %s698
        %p700 = scmp.lt.s32.totalorder %s37, 1
        %s701 = scalar_select %p700, %s37, 1
        %s702 = smul.addr %s701, 8
        %s703 = scalar_lea.vmem %s0, %s702
        %p704 = scmp.lt.s32.totalorder %s37, 1
        %s705 = scalar_select %p704, %s37, 1
        %s706 = scalar_lea.vmem %s1, %s705
        %v707 = vld [vmem:[%s703] sm:$0xff]
        %v708 = vld [vmem:[%s706] sm:$0x1]
        %v709 = vld [vmem:[%s2] sm:$0x1]
        %v710 = vld [vmem:[%s3] sm:$0x1]
        %vm711 = vcmask 261120
        %v712 = vsel %vm711, %v707, 0.0
        %713 = vadd.xlane.f32.xlu0 %v712
        %v714 = vpop.xlane.xlu0 %713
        %v715 = vrcp.pop 32.0
        %v716 = vmul.f32 %v714, %v715
        %v717 = vsub.f32 %v707, %v716
        %v718 = vmul.f32 %v717, %v717
        %v719 = vsel %vm711, %v718, 0.0
        %720 = vadd.xlane.f32.xlu0 %v719
        %v721 = vpop.xlane.xlu0 %720
        %v722 = vmul.f32 %v721, %v715
        %v723 = vadd.f32 %v722, 1e-05
        %v724 = vrsqrt.pop %v723
        %v725 = vmul.f32 %v717, %v724
        %v727 = vlaneseq
        %v728 = vshrl.u32 %v727, 7
        %v729 = vsub.s32 0, %v728
        %v730 = vrot.slane %v709, %v729
        %v732 = vmul.f32 %v725, %v730
        %v734 = vlaneseq
        %v735 = vshrl.u32 %v734, 7
        %v736 = vsub.s32 0, %v735
        %v737 = vrot.slane %v710, %v736
        %v739 = vadd.f32 %v732, %v737
        %v740 = vld [vmem:[%s4] sm:$0xff]
        %v741 = vld [vmem:[%s4 + $0x8] sm:$0xff]
        %v742 = vld [vmem:[%s4 + $0x10] sm:$0xff]
        %v743 = vld [vmem:[%s4 + $0x18] sm:$0xff]
        %v744 = vld [vmem:[%s5] sm:$0x1]
        %v746 = vlaneseq
        %v747 = vshrl.u32 %v746, 7
        %v748 = vsub.s32 0, %v747
        %v749 = vrot.slane %v744, %v748
        %v752 = vsel %vm711, %v739, 0
        %754 = vmatprep.subr.mxu0 0.0
        %755 = vmatpush1.msra.mxu0 0.0
        %756 = vmatprep.subr.mxu0 0.0
        %757 = vmatpush1.msra.mxu0 0.0
        %758 = vmatprep.subr.mxu0 0.0
        %759 = vmatpush1.msra.mxu0 0.0
        %760 = vmatprep.subr.mxu0 0.0
        %761 = vmatpush1.msra.mxu0 0.0
        %762 = vmatprep.subr.mxu0 0.0
        %763 = vmatpush1.msra.mxu0 0.0
        %764 = vmatprep.subr.mxu0 0.0
        %765 = vmatpush1.msra.mxu0 0.0
        %766 = vmatprep.subr.mxu0 0.0
        %767 = vmatpush1.msra.mxu0 0.0
        %768 = vmatprep.subr.mxu0 0.0
        %769 = vmatpush1.msra.mxu0 0.0
        %770 = vmatprep.subr.mxu0 0.0
        %771 = vmatpush1.msra.mxu0 0.0
        %772 = vmatprep.subr.mxu0 0.0
        %773 = vmatpush1.msra.mxu0 0.0
        %774 = vmatprep.subr.mxu0 0.0
        %775 = vmatpush1.msra.mxu0 0.0
        %776 = vmatprep.subr.mxu0 0.0
        %777 = vmatpush1.msra.mxu0 0.0
        %778 = vmatprep.subr.mxu0 0.0
        %779 = vmatpush1.msra.mxu0 %v743
        %780 = vmatprep.subr.mxu0 0.0
        %781 = vmatpush1.msra.mxu0 %v742
        %782 = vmatprep.subr.mxu0 0.0
        %783 = vmatpush1.msra.mxu0 %v741
        %784 = vmatprep.subr.mxu0 0.0
        %785 = vmatpush1.msra.mxu0 %v740
        %786 = vmatprep.subr.mxu0 0.0
        %787 = vmatpush2.msra.mxu0 0.0
        %788 = vmatprep.subr.mxu0 0.0
        %789 = vmatpush2.msra.mxu0 0.0
        %790 = vmatprep.subr.mxu0 0.0
        %791 = vmatpush2.msra.mxu0 0.0
        %792 = vmatprep.subr.mxu0 0.0
        %793 = vmatpush2.msra.mxu0 0.0
        %794 = vmatprep.subr.mxu0 0.0
        %795 = vmatpush2.msra.mxu0 0.0
        %796 = vmatprep.subr.mxu0 0.0
        %797 = vmatpush2.msra.mxu0 0.0
        %798 = vmatprep.subr.mxu0 0.0
        %799 = vmatpush2.msra.mxu0 0.0
        %800 = vmatprep.subr.mxu0 0.0
        %801 = vmatpush2.msra.mxu0 0.0
        %802 = vmatprep.subr.mxu0 0.0
        %803 = vmatpush2.msra.mxu0 0.0
        %804 = vmatprep.subr.mxu0 0.0
        %805 = vmatpush2.msra.mxu0 0.0
        %806 = vmatprep.subr.mxu0 0.0
        %807 = vmatpush2.msra.mxu0 0.0
        %808 = vmatprep.subr.mxu0 0.0
        %809 = vmatpush2.msra.mxu0 0.0
        %810 = vmatprep.subr.mxu0 0.0
        %811 = vmatpush2.msra.mxu0 0.0
        %812 = vmatprep.subr.mxu0 0.0
        %813 = vmatpush2.msra.mxu0 0.0
        %814 = vmatprep.subr.mxu0 0.0
        %815 = vmatpush2.msra.mxu0 0.0
        %816 = vmatprep.subr.mxu0 0.0
        %817 = vmatpush2.msra.mxu0 0.0
        %818 = vmatprep.mubr.f32.mxu0 0.0
        %819 = vmatmul.mubr.f32.gmra.mxu0 %v752
        %v820 = vpop.f32.mrf.mxu0
        %v821 = vadd.f32 %v749, %v820
        %v822 = vpop.f32.mrf.mxu0
        %823 = vdwg.mxu0
        %825 = vrot.lane.b32.xlu0 %v821, 96
        %v826 = vpop.permute.xlu0 %825
        %vm827 = vcmask 130048
        %v828 = vsel %vm827, %v821, 0
        %v830 = vsel %vm827, %v826, 0
        %832 = vmatprep.subr.mxu0 0.0
        %833 = vmatpush1.xpose.msra.mxu0 0.0
        %834 = vmatprep.subr.mxu0 0.0
        %835 = vmatpush1.xpose.msra.mxu0 0.0
        %836 = vmatprep.subr.mxu0 0.0
        %837 = vmatpush1.xpose.msra.mxu0 0.0
        %838 = vmatprep.subr.mxu0 0.0
        %839 = vmatpush1.xpose.msra.mxu0 0.0
        %840 = vmatprep.subr.mxu0 0.0
        %841 = vmatpush1.xpose.msra.mxu0 0.0
        %842 = vmatprep.subr.mxu0 0.0
        %843 = vmatpush1.xpose.msra.mxu0 0.0
        %844 = vmatprep.subr.mxu0 0.0
        %845 = vmatpush1.xpose.msra.mxu0 0.0
        %846 = vmatprep.subr.mxu0 0.0
        %847 = vmatpush1.xpose.msra.mxu0 0.0
        %848 = vmatprep.subr.mxu0 0.0
        %849 = vmatpush1.xpose.msra.mxu0 0.0
        %850 = vmatprep.subr.mxu0 0.0
        %851 = vmatpush1.xpose.msra.mxu0 0.0
        %852 = vmatprep.subr.mxu0 0.0
        %853 = vmatpush1.xpose.msra.mxu0 0.0
        %854 = vmatprep.subr.mxu0 0.0
        %855 = vmatpush1.xpose.msra.mxu0 0.0
        %856 = vmatprep.subr.mxu0 0.0
        %857 = vmatpush1.xpose.msra.mxu0 0.0
        %858 = vmatprep.subr.mxu0 0.0
        %859 = vmatpush1.xpose.msra.mxu0 0.0
        %860 = vmatprep.subr.mxu0 0.0
        %861 = vmatpush1.xpose.msra.mxu0 0.0
        %862 = vmatprep.subr.mxu0 0.0
        %863 = vmatpush1.xpose.msra.mxu0 %v830
        %864 = vmatprep.subr.mxu0 0.0
        %865 = vmatpush2.xpose.msra.mxu0 0.0
        %866 = vmatprep.subr.mxu0 0.0
        %867 = vmatpush2.xpose.msra.mxu0 0.0
        %868 = vmatprep.subr.mxu0 0.0
        %869 = vmatpush2.xpose.msra.mxu0 0.0
        %870 = vmatprep.subr.mxu0 0.0
        %871 = vmatpush2.xpose.msra.mxu0 0.0
        %872 = vmatprep.subr.mxu0 0.0
        %873 = vmatpush2.xpose.msra.mxu0 0.0
        %874 = vmatprep.subr.mxu0 0.0
        %875 = vmatpush2.xpose.msra.mxu0 0.0
        %876 = vmatprep.subr.mxu0 0.0
        %877 = vmatpush2.xpose.msra.mxu0 0.0
        %878 = vmatprep.subr.mxu0 0.0
        %879 = vmatpush2.xpose.msra.mxu0 0.0
        %880 = vmatprep.subr.mxu0 0.0
        %881 = vmatpush2.xpose.msra.mxu0 0.0
        %882 = vmatprep.subr.mxu0 0.0
        %883 = vmatpush2.xpose.msra.mxu0 0.0
        %884 = vmatprep.subr.mxu0 0.0
        %885 = vmatpush2.xpose.msra.mxu0 0.0
        %886 = vmatprep.subr.mxu0 0.0
        %887 = vmatpush2.xpose.msra.mxu0 0.0
        %888 = vmatprep.subr.mxu0 0.0
        %889 = vmatpush2.xpose.msra.mxu0 0.0
        %890 = vmatprep.subr.mxu0 0.0
        %891 = vmatpush2.xpose.msra.mxu0 0.0
        %892 = vmatprep.subr.mxu0 0.0
        %893 = vmatpush2.xpose.msra.mxu0 0.0
        %894 = vmatprep.subr.mxu0 0.0
        %895 = vmatpush2.xpose.msra.mxu0 0.0
        %896 = vmatprep.mubr.f32.mxu0 0.0
        %897 = vmatmul.mubr.f32.gmra.mxu0 %v828
        %v898 = vpop.f32.mrf.mxu0
        %v899 = vadd.f32 0.0, %v898
        %v900 = vpop.f32.mrf.mxu0
        %901 = vdwg.mxu0
        %v902 = vmul.f32 %v899, 0.25
        %v904 = vlaneseq
        %v905 = vshrl.u32 %v904, 7
        %v906 = vsub.s32 0, %v905
        %v907 = vrot.slane %v708, %v906
        %v909 = vadd.f32 %v902, %v907
        %vm910 = vcmask 64512
        %v911 = vsel %vm910, %v909, -inf
        %912 = vmax.xlane.f32.xlu0 %v911
        %v913 = vpop.xlane.xlu0 %912
        %v914 = vsub.f32 %v909, %v913
        %v915 = vmul.f32 %v914, 1.442695
        %v916 = vpow.pop %v915
        %v917 = vsel %vm910, %v916, 0.0
        %918 = vadd.xlane.f32.xlu0 %v917
        %v919 = vpop.xlane.xlu0 %918
        %v920 = vrcp.pop %v919
        %v921 = vmul.f32 %v916, %v920
        %922 = vrot.lane.b32.xlu0 %v821, 64
        %v923 = vpop.permute.xlu0 %922
        %v926 = vsel %vm910, %v921, 0
        %928 = vmatprep.subr.mxu0 0.0
        %929 = vmatpush1.msra.mxu0 0.0
        %930 = vmatprep.subr.mxu0 0.0
        %931 = vmatpush1.msra.mxu0 0.0
        %932 = vmatprep.subr.mxu0 0.0
        %933 = vmatpush1.msra.mxu0 0.0
        %934 = vmatprep.subr.mxu0 0.0
        %935 = vmatpush1.msra.mxu0 0.0
        %936 = vmatprep.subr.mxu0 0.0
        %937 = vmatpush1.msra.mxu0 0.0
        %938 = vmatprep.subr.mxu0 0.0
        %939 = vmatpush1.msra.mxu0 0.0
        %940 = vmatprep.subr.mxu0 0.0
        %941 = vmatpush1.msra.mxu0 0.0
        %942 = vmatprep.subr.mxu0 0.0
        %943 = vmatpush1.msra.mxu0 0.0
        %944 = vmatprep.subr.mxu0 0.0
        %945 = vmatpush1.msra.mxu0 0.0
        %946 = vmatprep.subr.mxu0 0.0
        %947 = vmatpush1.msra.mxu0 0.0
        %948 = vmatprep.subr.mxu0 0.0
        %949 = vmatpush1.msra.mxu0 0.0
        %950 = vmatprep.subr.mxu0 0.0
        %951 = vmatpush1.msra.mxu0 0.0
        %952 = vmatprep.subr.mxu0 0.0
        %953 = vmatpush1.msra.mxu0 0.0
        %954 = vmatprep.subr.mxu0 0.0
        %955 = vmatpush1.msra.mxu0 0.0
        %956 = vmatprep.subr.mxu0 0.0
        %957 = vmatpush1.msra.mxu0 0.0
        %958 = vmatprep.subr.mxu0 0.0
        %959 = vmatpush1.msra.mxu0 %v923
        %960 = vmatprep.subr.mxu0 0.0
        %961 = vmatpush2.msra.mxu0 0.0
        %962 = vmatprep.subr.mxu0 0.0
        %963 = vmatpush2.msra.mxu0 0.0
        %964 = vmatprep.subr.mxu0 0.0
        %965 = vmatpush2.msra.mxu0 0.0
        %966 = vmatprep.subr.mxu0 0.0
        %967 = vmatpush2.msra.mxu0 0.0
        %968 = vmatprep.subr.mxu0 0.0
        %969 = vmatpush2.msra.mxu0 0.0
        %970 = vmatprep.subr.mxu0 0.0
        %971 = vmatpush2.msra.mxu0 0.0
        %972 = vmatprep.subr.mxu0 0.0
        %973 = vmatpush2.msra.mxu0 0.0
        %974 = vmatprep.subr.mxu0 0.0
        %975 = vmatpush2.msra.mxu0 0.0
        %976 = vmatprep.subr.mxu0 0.0
        %977 = vmatpush2.msra.mxu0 0.0
        %978 = vmatprep.subr.mxu0 0.0
        %979 = vmatpush2.msra.mxu0 0.0
        %980 = vmatprep.subr.mxu0 0.0
        %981 = vmatpush2.msra.mxu0 0.0
        %982 = vmatprep.subr.mxu0 0.0
        %983 = vmatpush2.msra.mxu0 0.0
        %984 = vmatprep.subr.mxu0 0.0
        %985 = vmatpush2.msra.mxu0 0.0
        %986 = vmatprep.subr.mxu0 0.0
        %987 = vmatpush2.msra.mxu0 0.0
        %988 = vmatprep.subr.mxu0 0.0
        %989 = vmatpush2.msra.mxu0 0.0
        %990 = vmatprep.subr.mxu0 0.0
        %991 = vmatpush2.msra.mxu0 0.0
        %992 = vmatprep.mubr.f32.mxu0 0.0
        %993 = vmatmul.mubr.f32.gmra.mxu0 %v926
        %v994 = vpop.f32.mrf.mxu0
        %v995 = vadd.f32 0.0, %v994
        %v996 = vpop.f32.mrf.mxu0
        %997 = vdwg.mxu0
        %998 = vrot.lane.b32.xlu0 %v821, 112
        %v999 = vpop.permute.xlu0 %998
        %1000 = vrot.lane.b32.xlu0 %v821, 80
        %v1001 = vpop.permute.xlu0 %1000
        %v1002 = vsel %vm827, %v999, 0
        %v1004 = vsel %vm827, %v1001, 0
        %1006 = vmatprep.subr.mxu0 0.0
        %1007 = vmatpush1.xpose.msra.mxu0 0.0
        %1008 = vmatprep.subr.mxu0 0.0
        %1009 = vmatpush1.xpose.msra.mxu0 0.0
        %1010 = vmatprep.subr.mxu0 0.0
        %1011 = vmatpush1.xpose.msra.mxu0 0.0
        %1012 = vmatprep.subr.mxu0 0.0
        %1013 = vmatpush1.xpose.msra.mxu0 0.0
        %1014 = vmatprep.subr.mxu0 0.0
        %1015 = vmatpush1.xpose.msra.mxu0 0.0
        %1016 = vmatprep.subr.mxu0 0.0
        %1017 = vmatpush1.xpose.msra.mxu0 0.0
        %1018 = vmatprep.subr.mxu0 0.0
        %1019 = vmatpush1.xpose.msra.mxu0 0.0
        %1020 = vmatprep.subr.mxu0 0.0
        %1021 = vmatpush1.xpose.msra.mxu0 0.0
        %1022 = vmatprep.subr.mxu0 0.0
        %1023 = vmatpush1.xpose.msra.mxu0 0.0
        %1024 = vmatprep.subr.mxu0 0.0
        %1025 = vmatpush1.xpose.msra.mxu0 0.0
        %1026 = vmatprep.subr.mxu0 0.0
        %1027 = vmatpush1.xpose.msra.mxu0 0.0
        %1028 = vmatprep.subr.mxu0 0.0
        %1029 = vmatpush1.xpose.msra.mxu0 0.0
        %1030 = vmatprep.subr.mxu0 0.0
        %1031 = vmatpush1.xpose.msra.mxu0 0.0
        %1032 = vmatprep.subr.mxu0 0.0
        %1033 = vmatpush1.xpose.msra.mxu0 0.0
        %1034 = vmatprep.subr.mxu0 0.0
        %1035 = vmatpush1.xpose.msra.mxu0 0.0
        %1036 = vmatprep.subr.mxu0 0.0
        %1037 = vmatpush1.xpose.msra.mxu0 %v1004
        %1038 = vmatprep.subr.mxu0 0.0
        %1039 = vmatpush2.xpose.msra.mxu0 0.0
        %1040 = vmatprep.subr.mxu0 0.0
        %1041 = vmatpush2.xpose.msra.mxu0 0.0
        %1042 = vmatprep.subr.mxu0 0.0
        %1043 = vmatpush2.xpose.msra.mxu0 0.0
        %1044 = vmatprep.subr.mxu0 0.0
        %1045 = vmatpush2.xpose.msra.mxu0 0.0
        %1046 = vmatprep.subr.mxu0 0.0
        %1047 = vmatpush2.xpose.msra.mxu0 0.0
        %1048 = vmatprep.subr.mxu0 0.0
        %1049 = vmatpush2.xpose.msra.mxu0 0.0
        %1050 = vmatprep.subr.mxu0 0.0
        %1051 = vmatpush2.xpose.msra.mxu0 0.0
        %1052 = vmatprep.subr.mxu0 0.0
        %1053 = vmatpush2.xpose.msra.mxu0 0.0
        %1054 = vmatprep.subr.mxu0 0.0
        %1055 = vmatpush2.xpose.msra.mxu0 0.0
        %1056 = vmatprep.subr.mxu0 0.0
        %1057 = vmatpush2.xpose.msra.mxu0 0.0
        %1058 = vmatprep.subr.mxu0 0.0
        %1059 = vmatpush2.xpose.msra.mxu0 0.0
        %1060 = vmatprep.subr.mxu0 0.0
        %1061 = vmatpush2.xpose.msra.mxu0 0.0
        %1062 = vmatprep.subr.mxu0 0.0
        %1063 = vmatpush2.xpose.msra.mxu0 0.0
        %1064 = vmatprep.subr.mxu0 0.0
        %1065 = vmatpush2.xpose.msra.mxu0 0.0
        %1066 = vmatprep.subr.mxu0 0.0
        %1067 = vmatpush2.xpose.msra.mxu0 0.0
        %1068 = vmatprep.subr.mxu0 0.0
        %1069 = vmatpush2.xpose.msra.mxu0 0.0
        %1070 = vmatprep.mubr.f32.mxu0 0.0
        %1071 = vmatmul.mubr.f32.gmra.mxu0 %v1002
        %v1072 = vpop.f32.mrf.mxu0
        %v1073 = vadd.f32 0.0, %v1072
        %v1074 = vpop.f32.mrf.mxu0
        %1075 = vdwg.mxu0
        %v1076 = vmul.f32 %v1073, 0.25
        %v1077 = vadd.f32 %v1076, %v907
        %v1078 = vsel %vm910, %v1077, -inf
        %1079 = vmax.xlane.f32.xlu0 %v1078
        %v1080 = vpop.xlane.xlu0 %1079
        %v1081 = vsub.f32 %v1077, %v1080
        %v1082 = vmul.f32 %v1081, 1.442695
        %v1083 = vpow.pop %v1082
        %v1084 = vsel %vm910, %v1083, 0.0
        %1085 = vadd.xlane.f32.xlu0 %v1084
        %v1086 = vpop.xlane.xlu0 %1085
        %v1087 = vrcp.pop %v1086
        %v1088 = vmul.f32 %v1083, %v1087
        %1089 = vrot.lane.b32.xlu0 %v821, 48
        %v1090 = vpop.permute.xlu0 %1089
        %v1093 = vsel %vm910, %v1088, 0
        %1095 = vmatprep.subr.mxu0 0.0
        %1096 = vmatpush1.msra.mxu0 0.0
        %1097 = vmatprep.subr.mxu0 0.0
        %1098 = vmatpush1.msra.mxu0 0.0
        %1099 = vmatprep.subr.mxu0 0.0
        %1100 = vmatpush1.msra.mxu0 0.0
        %1101 = vmatprep.subr.mxu0 0.0
        %1102 = vmatpush1.msra.mxu0 0.0
        %1103 = vmatprep.subr.mxu0 0.0
        %1104 = vmatpush1.msra.mxu0 0.0
        %1105 = vmatprep.subr.mxu0 0.0
        %1106 = vmatpush1.msra.mxu0 0.0
        %1107 = vmatprep.subr.mxu0 0.0
        %1108 = vmatpush1.msra.mxu0 0.0
        %1109 = vmatprep.subr.mxu0 0.0
        %1110 = vmatpush1.msra.mxu0 0.0
        %1111 = vmatprep.subr.mxu0 0.0
        %1112 = vmatpush1.msra.mxu0 0.0
        %1113 = vmatprep.subr.mxu0 0.0
        %1114 = vmatpush1.msra.mxu0 0.0
        %1115 = vmatprep.subr.mxu0 0.0
        %1116 = vmatpush1.msra.mxu0 0.0
        %1117 = vmatprep.subr.mxu0 0.0
        %1118 = vmatpush1.msra.mxu0 0.0
        %1119 = vmatprep.subr.mxu0 0.0
        %1120 = vmatpush1.msra.mxu0 0.0
        %1121 = vmatprep.subr.mxu0 0.0
        %1122 = vmatpush1.msra.mxu0 0.0
        %1123 = vmatprep.subr.mxu0 0.0
        %1124 = vmatpush1.msra.mxu0 0.0
        %1125 = vmatprep.subr.mxu0 0.0
        %1126 = vmatpush1.msra.mxu0 %v1090
        %1127 = vmatprep.subr.mxu0 0.0
        %1128 = vmatpush2.msra.mxu0 0.0
        %1129 = vmatprep.subr.mxu0 0.0
        %1130 = vmatpush2.msra.mxu0 0.0
        %1131 = vmatprep.subr.mxu0 0.0
        %1132 = vmatpush2.msra.mxu0 0.0
        %1133 = vmatprep.subr.mxu0 0.0
        %1134 = vmatpush2.msra.mxu0 0.0
        %1135 = vmatprep.subr.mxu0 0.0
        %1136 = vmatpush2.msra.mxu0 0.0
        %1137 = vmatprep.subr.mxu0 0.0
        %1138 = vmatpush2.msra.mxu0 0.0
        %1139 = vmatprep.subr.mxu0 0.0
        %1140 = vmatpush2.msra.mxu0 0.0
        %1141 = vmatprep.subr.mxu0 0.0
        %1142 = vmatpush2.msra.mxu0 0.0
        %1143 = vmatprep.subr.mxu0 0.0
        %1144 = vmatpush2.msra.mxu0 0.0
        %1145 = vmatprep.subr.mxu0 0.0
        %1146 = vmatpush2.msra.mxu0 0.0
        %1147 = vmatprep.subr.mxu0 0.0
        %1148 = vmatpush2.msra.mxu0 0.0
        %1149 = vmatprep.subr.mxu0 0.0
        %1150 = vmatpush2.msra.mxu0 0.0
        %1151 = vmatprep.subr.mxu0 0.0
        %1152 = vmatpush2.msra.mxu0 0.0
        %1153 = vmatprep.subr.mxu0 0.0
        %1154 = vmatpush2.msra.mxu0 0.0
        %1155 = vmatprep.subr.mxu0 0.0
        %1156 = vmatpush2.msra.mxu0 0.0
        %1157 = vmatprep.subr.mxu0 0.0
        %1158 = vmatpush2.msra.mxu0 0.0
        %1159 = vmatprep.mubr.f32.mxu0 0.0
        %1160 = vmatmul.mubr.f32.gmra.mxu0 %v1093
        %v1161 = vpop.f32.mrf.mxu0
        %v1162 = vadd.f32 0.0, %v1161
        %v1163 = vpop.f32.mrf.mxu0
        %1164 = vdwg.mxu0
        %1166 = vrot.lane.b32.xlu0 %v1162, 16
        %v1167 = vpop.permute.xlu0 %1166
        %v1169 = vsel %vm827, %v995, %v1167
        %v1170 = vld [vmem:[%s6] sm:$0xff]
        %v1171 = vld [vmem:[%s6 + $0x8] sm:$0xff]
        %v1172 = vld [vmem:[%s6 + $0x10] sm:$0xff]
        %v1173 = vld [vmem:[%s6 + $0x18] sm:$0xff]
        %v1174 = vld [vmem:[%s7] sm:$0x1]
        %v1176 = vlaneseq
        %v1177 = vshrl.u32 %v1176, 7
        %v1178 = vsub.s32 0, %v1177
        %v1179 = vrot.slane %v1174, %v1178
        %v1182 = vsel %vm711, %v1169, 0
        %1184 = vmatprep.subr.mxu0 0.0
        %1185 = vmatpush1.msra.mxu0 0.0
        %1186 = vmatprep.subr.mxu0 0.0
        %1187 = vmatpush1.msra.mxu0 0.0
        %1188 = vmatprep.subr.mxu0 0.0
        %1189 = vmatpush1.msra.mxu0 0.0
        %1190 = vmatprep.subr.mxu0 0.0
        %1191 = vmatpush1.msra.mxu0 0.0
        %1192 = vmatprep.subr.mxu0 0.0
        %1193 = vmatpush1.msra.mxu0 0.0
        %1194 = vmatprep.subr.mxu0 0.0
        %1195 = vmatpush1.msra.mxu0 0.0
        %1196 = vmatprep.subr.mxu0 0.0
        %1197 = vmatpush1.msra.mxu0 0.0
        %1198 = vmatprep.subr.mxu0 0.0
        %1199 = vmatpush1.msra.mxu0 0.0
        %1200 = vmatprep.subr.mxu0 0.0
        %1201 = vmatpush1.msra.mxu0 0.0
        %1202 = vmatprep.subr.mxu0 0.0
        %1203 = vmatpush1.msra.mxu0 0.0
        %1204 = vmatprep.subr.mxu0 0.0
        %1205 = vmatpush1.msra.mxu0 0.0
        %1206 = vmatprep.subr.mxu0 0.0
        %1207 = vmatpush1.msra.mxu0 0.0
        %1208 = vmatprep.subr.mxu0 0.0
        %1209 = vmatpush1.msra.mxu0 %v1173
        %1210 = vmatprep.subr.mxu0 0.0
        %1211 = vmatpush1.msra.mxu0 %v1172
        %1212 = vmatprep.subr.mxu0 0.0
        %1213 = vmatpush1.msra.mxu0 %v1171
        %1214 = vmatprep.subr.mxu0 0.0
        %1215 = vmatpush1.msra.mxu0 %v1170
        %1216 = vmatprep.subr.mxu0 0.0
        %1217 = vmatpush2.msra.mxu0 0.0
        %1218 = vmatprep.subr.mxu0 0.0
        %1219 = vmatpush2.msra.mxu0 0.0
        %1220 = vmatprep.subr.mxu0 0.0
        %1221 = vmatpush2.msra.mxu0 0.0
        %1222 = vmatprep.subr.mxu0 0.0
        %1223 = vmatpush2.msra.mxu0 0.0
        %1224 = vmatprep.subr.mxu0 0.0
        %1225 = vmatpush2.msra.mxu0 0.0
        %1226 = vmatprep.subr.mxu0 0.0
        %1227 = vmatpush2.msra.mxu0 0.0
        %1228 = vmatprep.subr.mxu0 0.0
        %1229 = vmatpush2.msra.mxu0 0.0
        %1230 = vmatprep.subr.mxu0 0.0
        %1231 = vmatpush2.msra.mxu0 0.0
        %1232 = vmatprep.subr.mxu0 0.0
        %1233 = vmatpush2.msra.mxu0 0.0
        %1234 = vmatprep.subr.mxu0 0.0
        %1235 = vmatpush2.msra.mxu0 0.0
        %1236 = vmatprep.subr.mxu0 0.0
        %1237 = vmatpush2.msra.mxu0 0.0
        %1238 = vmatprep.subr.mxu0 0.0
        %1239 = vmatpush2.msra.mxu0 0.0
        %1240 = vmatprep.subr.mxu0 0.0
        %1241 = vmatpush2.msra.mxu0 0.0
        %1242 = vmatprep.subr.mxu0 0.0
        %1243 = vmatpush2.msra.mxu0 0.0
        %1244 = vmatprep.subr.mxu0 0.0
        %1245 = vmatpush2.msra.mxu0 0.0
        %1246 = vmatprep.subr.mxu0 0.0
        %1247 = vmatpush2.msra.mxu0 0.0
        %1248 = vmatprep.mubr.f32.mxu0 0.0
        %1249 = vmatmul.mubr.f32.gmra.mxu0 %v1182
        %v1250 = vpop.f32.mrf.mxu0
        %v1251 = vadd.f32 %v1179, %v1250
        %v1252 = vpop.f32.mrf.mxu0
        %1253 = vdwg.mxu0
        %v1254 = vadd.f32 %v1251, %v739
        %v1255 = vld [vmem:[%s8] sm:$0x1]
        %v1256 = vld [vmem:[%s9] sm:$0x1]
        %v1257 = vsel %vm711, %v1254, 0.0
        %1258 = vadd.xlane.f32.xlu0 %v1257
        %v1259 = vpop.xlane.xlu0 %1258
        %v1260 = vmul.f32 %v1259, %v715
        %v1261 = vsub.f32 %v1254, %v1260
        %v1262 = vmul.f32 %v1261, %v1261
        %v1263 = vsel %vm711, %v1262, 0.0
        %1264 = vadd.xlane.f32.xlu0 %v1263
        %v1265 = vpop.xlane.xlu0 %1264
        %v1266 = vmul.f32 %v1265, %v715
        %v1267 = vadd.f32 %v1266, 1e-05
        %v1268 = vrsqrt.pop %v1267
        %v1269 = vmul.f32 %v1261, %v1268
        %v1271 = vlaneseq
        %v1272 = vshrl.u32 %v1271, 7
        %v1273 = vsub.s32 0, %v1272
        %v1274 = vrot.slane %v1255, %v1273
        %v1276 = vmul.f32 %v1269, %v1274
        %v1278 = vlaneseq
        %v1279 = vshrl.u32 %v1278, 7
        %v1280 = vsub.s32 0, %v1279
        %v1281 = vrot.slane %v1256, %v1280
        %v1283 = vadd.f32 %v1276, %v1281
        %v1284 = vld [vmem:[%s10] sm:$0xff]
        %v1285 = vld [vmem:[%s10 + $0x8] sm:$0xff]
        %v1286 = vld [vmem:[%s10 + $0x10] sm:$0xff]
        %v1287 = vld [vmem:[%s10 + $0x18] sm:$0xff]
        %v1288 = vld [vmem:[%s11] sm:$0x1]
        %v1290 = vlaneseq
        %v1291 = vshrl.u32 %v1290, 7
        %v1292 = vsub.s32 0, %v1291
        %v1293 = vrot.slane %v1288, %v1292
        %v1296 = vsel %vm711, %v1283, 0
        %1298 = vmatprep.subr.mxu0 0.0
        %1299 = vmatpush1.msra.mxu0 0.0
        %1300 = vmatprep.subr.mxu0 0.0
        %1301 = vmatpush1.msra.mxu0 0.0
        %1302 = vmatprep.subr.mxu0 0.0
        %1303 = vmatpush1.msra.mxu0 0.0
        %1304 = vmatprep.subr.mxu0 0.0
        %1305 = vmatpush1.msra.mxu0 0.0
        %1306 = vmatprep.subr.mxu0 0.0
        %1307 = vmatpush1.msra.mxu0 0.0
        %1308 = vmatprep.subr.mxu0 0.0
        %1309 = vmatpush1.msra.mxu0 0.0
        %1310 = vmatprep.subr.mxu0 0.0
        %1311 = vmatpush1.msra.mxu0 0.0
        %1312 = vmatprep.subr.mxu0 0.0
        %1313 = vmatpush1.msra.mxu0 0.0
        %1314 = vmatprep.subr.mxu0 0.0
        %1315 = vmatpush1.msra.mxu0 0.0
        %1316 = vmatprep.subr.mxu0 0.0
        %1317 = vmatpush1.msra.mxu0 0.0
        %1318 = vmatprep.subr.mxu0 0.0
        %1319 = vmatpush1.msra.mxu0 0.0
        %1320 = vmatprep.subr.mxu0 0.0
        %1321 = vmatpush1.msra.mxu0 0.0
        %1322 = vmatprep.subr.mxu0 0.0
        %1323 = vmatpush1.msra.mxu0 %v1287
        %1324 = vmatprep.subr.mxu0 0.0
        %1325 = vmatpush1.msra.mxu0 %v1286
        %1326 = vmatprep.subr.mxu0 0.0
        %1327 = vmatpush1.msra.mxu0 %v1285
        %1328 = vmatprep.subr.mxu0 0.0
        %1329 = vmatpush1.msra.mxu0 %v1284
        %1330 = vmatprep.subr.mxu0 0.0
        %1331 = vmatpush2.msra.mxu0 0.0
        %1332 = vmatprep.subr.mxu0 0.0
        %1333 = vmatpush2.msra.mxu0 0.0
        %1334 = vmatprep.subr.mxu0 0.0
        %1335 = vmatpush2.msra.mxu0 0.0
        %1336 = vmatprep.subr.mxu0 0.0
        %1337 = vmatpush2.msra.mxu0 0.0
        %1338 = vmatprep.subr.mxu0 0.0
        %1339 = vmatpush2.msra.mxu0 0.0
        %1340 = vmatprep.subr.mxu0 0.0
        %1341 = vmatpush2.msra.mxu0 0.0
        %1342 = vmatprep.subr.mxu0 0.0
        %1343 = vmatpush2.msra.mxu0 0.0
        %1344 = vmatprep.subr.mxu0 0.0
        %1345 = vmatpush2.msra.mxu0 0.0
        %1346 = vmatprep.subr.mxu0 0.0
        %1347 = vmatpush2.msra.mxu0 0.0
        %1348 = vmatprep.subr.mxu0 0.0
        %1349 = vmatpush2.msra.mxu0 0.0
        %1350 = vmatprep.subr.mxu0 0.0
        %1351 = vmatpush2.msra.mxu0 0.0
        %1352 = vmatprep.subr.mxu0 0.0
        %1353 = vmatpush2.msra.mxu0 0.0
        %1354 = vmatprep.subr.mxu0 0.0
        %1355 = vmatpush2.msra.mxu0 0.0
        %1356 = vmatprep.subr.mxu0 0.0
        %1357 = vmatpush2.msra.mxu0 0.0
        %1358 = vmatprep.subr.mxu0 0.0
        %1359 = vmatpush2.msra.mxu0 0.0
        %1360 = vmatprep.subr.mxu0 0.0
        %1361 = vmatpush2.msra.mxu0 0.0
        %1362 = vmatprep.mubr.f32.mxu0 0.0
        %1363 = vmatmul.mubr.f32.gmra.mxu0 %v1296
        %v1364 = vpop.f32.mrf.mxu0
        %v1365 = vadd.f32 %v1293, %v1364
        %v1366 = vpop.f32.mrf.mxu0
        %1367 = vdwg.mxu0
        %v1368 = vmul.f32 %v1365, 0.5
        %v1369 = vmul.f32 %v1365, 0.044715
        %v1370 = vmul.f32 %v1369, %v1365
        %v1371 = vmul.f32 %v1370, %v1365
        %v1372 = vadd.f32 %v1365, %v1371
        %v1373 = vmul.f32 %v1372, 0.7978846
        %v1374 = vtanh.pop %v1373
        %v1375 = vadd.f32 %v1374, 1.0
        %v1376 = vmul.f32 %v1368, %v1375
        %v1377 = vld [vmem:[%s12] sm:$0xff]
        %v1378 = vld [vmem:[%s12 + $0x8] sm:$0xff]
        %v1379 = vld [vmem:[%s12 + $0x10] sm:$0xff]
        %v1380 = vld [vmem:[%s12 + $0x18] sm:$0xff]
        %v1381 = vld [vmem:[%s12 + $0x20] sm:$0xff]
        %v1382 = vld [vmem:[%s12 + $0x28] sm:$0xff]
        %v1383 = vld [vmem:[%s12 + $0x30] sm:$0xff]
        %v1384 = vld [vmem:[%s12 + $0x38] sm:$0xff]
        %v1385 = vld [vmem:[%s13] sm:$0x1]
        %v1387 = vlaneseq
        %v1388 = vshrl.u32 %v1387, 7
        %v1389 = vsub.s32 0, %v1388
        %v1390 = vrot.slane %v1385, %v1389
        %vm1392 = vcmask 523264
        %v1394 = vsel %vm1392, %v1376, 0
        %1396 = vmatprep.subr.mxu0 0.0
        %1397 = vmatpush1.msra.mxu0 0.0
        %1398 = vmatprep.subr.mxu0 0.0
        %1399 = vmatpush1.msra.mxu0 0.0
        %1400 = vmatprep.subr.mxu0 0.0
        %1401 = vmatpush1.msra.mxu0 0.0
        %1402 = vmatprep.subr.mxu0 0.0
        %1403 = vmatpush1.msra.mxu0 0.0
        %1404 = vmatprep.subr.mxu0 0.0
        %1405 = vmatpush1.msra.mxu0 0.0
        %1406 = vmatprep.subr.mxu0 0.0
        %1407 = vmatpush1.msra.mxu0 0.0
        %1408 = vmatprep.subr.mxu0 0.0
        %1409 = vmatpush1.msra.mxu0 0.0
        %1410 = vmatprep.subr.mxu0 0.0
        %1411 = vmatpush1.msra.mxu0 0.0
        %1412 = vmatprep.subr.mxu0 0.0
        %1413 = vmatpush1.msra.mxu0 %v1384
        %1414 = vmatprep.subr.mxu0 0.0
        %1415 = vmatpush1.msra.mxu0 %v1383
        %1416 = vmatprep.subr.mxu0 0.0
        %1417 = vmatpush1.msra.mxu0 %v1382
        %1418 = vmatprep.subr.mxu0 0.0
        %1419 = vmatpush1.msra.mxu0 %v1381
        %1420 = vmatprep.subr.mxu0 0.0
        %1421 = vmatpush1.msra.mxu0 %v1380
        %1422 = vmatprep.subr.mxu0 0.0
        %1423 = vmatpush1.msra.mxu0 %v1379
        %1424 = vmatprep.subr.mxu0 0.0
        %1425 = vmatpush1.msra.mxu0 %v1378
        %1426 = vmatprep.subr.mxu0 0.0
        %1427 = vmatpush1.msra.mxu0 %v1377
        %1428 = vmatprep.subr.mxu0 0.0
        %1429 = vmatpush2.msra.mxu0 0.0
        %1430 = vmatprep.subr.mxu0 0.0
        %1431 = vmatpush2.msra.mxu0 0.0
        %1432 = vmatprep.subr.mxu0 0.0
        %1433 = vmatpush2.msra.mxu0 0.0
        %1434 = vmatprep.subr.mxu0 0.0
        %1435 = vmatpush2.msra.mxu0 0.0
        %1436 = vmatprep.subr.mxu0 0.0
        %1437 = vmatpush2.msra.mxu0 0.0
        %1438 = vmatprep.subr.mxu0 0.0
        %1439 = vmatpush2.msra.mxu0 0.0
        %1440 = vmatprep.subr.mxu0 0.0
        %1441 = vmatpush2.msra.mxu0 0.0
        %1442 = vmatprep.subr.mxu0 0.0
        %1443 = vmatpush2.msra.mxu0 0.0
        %1444 = vmatprep.subr.mxu0 0.0
        %1445 = vmatpush2.msra.mxu0 0.0
        %1446 = vmatprep.subr.mxu0 0.0
        %1447 = vmatpush2.msra.mxu0 0.0
        %1448 = vmatprep.subr.mxu0 0.0
        %1449 = vmatpush2.msra.mxu0 0.0
        %1450 = vmatprep.subr.mxu0 0.0
        %1451 = vmatpush2.msra.mxu0 0.0
        %1452 = vmatprep.subr.mxu0 0.0
        %1453 = vmatpush2.msra.mxu0 0.0
        %1454 = vmatprep.subr.mxu0 0.0
        %1455 = vmatpush2.msra.mxu0 0.0
        %1456 = vmatprep.subr.mxu0 0.0
        %1457 = vmatpush2.msra.mxu0 0.0
        %1458 = vmatprep.subr.mxu0 0.0
        %1459 = vmatpush2.msra.mxu0 0.0
        %1460 = vmatprep.mubr.f32.mxu0 0.0
        %1461 = vmatmul.mubr.f32.gmra.mxu0 %v1394
        %v1462 = vpop.f32.mrf.mxu0
        %v1463 = vadd.f32 %v1390, %v1462
        %v1464 = vpop.f32.mrf.mxu0
        %1465 = vdwg.mxu0
        %v1466 = vadd.f32 %v1463, %v1283
        %v1467 = vld [vmem:[%s14] sm:$0x1]
        %v1468 = vld [vmem:[%s15] sm:$0x1]
        %v1469 = vsel %vm711, %v1466, 0.0
        %1470 = vadd.xlane.f32.xlu0 %v1469
        %v1471 = vpop.xlane.xlu0 %1470
        %v1472 = vmul.f32 %v1471, %v715
        %v1473 = vsub.f32 %v1466, %v1472
        %v1474 = vmul.f32 %v1473, %v1473
        %v1475 = vsel %vm711, %v1474, 0.0
        %1476 = vadd.xlane.f32.xlu0 %v1475
        %v1477 = vpop.xlane.xlu0 %1476
        %v1478 = vmul.f32 %v1477, %v715
        %v1479 = vadd.f32 %v1478, 1e-05
        %v1480 = vrsqrt.pop %v1479
        %v1481 = vmul.f32 %v1473, %v1480
        %v1483 = vlaneseq
        %v1484 = vshrl.u32 %v1483, 7
        %v1485 = vsub.s32 0, %v1484
        %v1486 = vrot.slane %v1467, %v1485
        %v1488 = vmul.f32 %v1481, %v1486
        %v1490 = vlaneseq
        %v1491 = vshrl.u32 %v1490, 7
        %v1492 = vsub.s32 0, %v1491
        %v1493 = vrot.slane %v1468, %v1492
        %v1495 = vadd.f32 %v1488, %v1493
        %s1496 = scalar_lea.vmem %s4, 32
        %v1497 = vld [vmem:[%s1496] sm:$0xff]
        %v1498 = vld [vmem:[%s1496 + $0x8] sm:$0xff]
        %v1499 = vld [vmem:[%s1496 + $0x10] sm:$0xff]
        %v1500 = vld [vmem:[%s1496 + $0x18] sm:$0xff]
        %s1501 = scalar_lea.vmem %s5, 1
        %v1502 = vld [vmem:[%s1501] sm:$0x1]
        %v1504 = vlaneseq
        %v1505 = vshrl.u32 %v1504, 7
        %v1506 = vsub.s32 0, %v1505
        %v1507 = vrot.slane %v1502, %v1506
        %v1510 = vsel %vm711, %v1495, 0
        %1512 = vmatprep.subr.mxu0 0.0
        %1513 = vmatpush1.msra.mxu0 0.0
        %1514 = vmatprep.subr.mxu0 0.0
        %1515 = vmatpush1.msra.mxu0 0.0
        %1516 = vmatprep.subr.mxu0 0.0
        %1517 = vmatpush1.msra.mxu0 0.0
        %1518 = vmatprep.subr.mxu0 0.0
        %1519 = vmatpush1.msra.mxu0 0.0
        %1520 = vmatprep.subr.mxu0 0.0
        %1521 = vmatpush1.msra.mxu0 0.0
        %1522 = vmatprep.subr.mxu0 0.0
        %1523 = vmatpush1.msra.mxu0 0.0
        %1524 = vmatprep.subr.mxu0 0.0
        %1525 = vmatpush1.msra.mxu0 0.0
        %1526 = vmatprep.subr.mxu0 0.0
        %1527 = vmatpush1.msra.mxu0 0.0
        %1528 = vmatprep.subr.mxu0 0.0
        %1529 = vmatpush1.msra.mxu0 0.0
        %1530 = vmatprep.subr.mxu0 0.0
        %1531 = vmatpush1.msra.mxu0 0.0
        %1532 = vmatprep.subr.mxu0 0.0
        %1533 = vmatpush1.msra.mxu0 0.0
        %1534 = vmatprep.subr.mxu0 0.0
        %1535 = vmatpush1.msra.mxu0 0.0
        %1536 = vmatprep.subr.mxu0 0.0
        %1537 = vmatpush1.msra.mxu0 %v1500
        %1538 = vmatprep.subr.mxu0 0.0
        %1539 = vmatpush1.msra.mxu0 %v1499
        %1540 = vmatprep.subr.mxu0 0.0
        %1541 = vmatpush1.msra.mxu0 %v1498
        %1542 = vmatprep.subr.mxu0 0.0
        %1543 = vmatpush1.msra.mxu0 %v1497
        %1544 = vmatprep.subr.mxu0 0.0
        %1545 = vmatpush2.msra.mxu0 0.0
        %1546 = vmatprep.subr.mxu0 0.0
        %1547 = vmatpush2.msra.mxu0 0.0
        %1548 = vmatprep.subr.mxu0 0.0
        %1549 = vmatpush2.msra.mxu0 0.0
        %1550 = vmatprep.subr.mxu0 0.0
        %1551 = vmatpush2.msra.mxu0 0.0
        %1552 = vmatprep.subr.mxu0 0.0
        %1553 = vmatpush2.msra.mxu0 0.0
        %1554 = vmatprep.subr.mxu0 0.0
        %1555 = vmatpush2.msra.mxu0 0.0
        %1556 = vmatprep.subr.mxu0 0.0
        %1557 = vmatpush2.msra.mxu0 0.0
        %1558 = vmatprep.subr.mxu0 0.0
        %1559 = vmatpush2.msra.mxu0 0.0
        %1560 = vmatprep.subr.mxu0 0.0
        %1561 = vmatpush2.msra.mxu0 0.0
        %1562 = vmatprep.subr.mxu0 0.0
        %1563 = vmatpush2.msra.mxu0 0.0
        %1564 = vmatprep.subr.mxu0 0.0
        %1565 = vmatpush2.msra.mxu0 0.0
        %1566 = vmatprep.subr.mxu0 0.0
        %1567 = vmatpush2.msra.mxu0 0.0
        %1568 = vmatprep.subr.mxu0 0.0
        %1569 = vmatpush2.msra.mxu0 0.0
        %1570 = vmatprep.subr.mxu0 0.0
        %1571 = vmatpush2.msra.mxu0 0.0
        %1572 = vmatprep.subr.mxu0 0.0
        %1573 = vmatpush2.msra.mxu0 0.0
        %1574 = vmatprep.subr.mxu0 0.0
        %1575 = vmatpush2.msra.mxu0 0.0
        %1576 = vmatprep.mubr.f32.mxu0 0.0
        %1577 = vmatmul.mubr.f32.gmra.mxu0 %v1510
        %v1578 = vpop.f32.mrf.mxu0
        %v1579 = vadd.f32 %v1507, %v1578
        %v1580 = vpop.f32.mrf.mxu0
        %1581 = vdwg.mxu0
        %1583 = vrot.lane.b32.xlu0 %v1579, 96
        %v1584 = vpop.permute.xlu0 %1583
        %v1585 = vsel %vm827, %v1579, 0
        %v1587 = vsel %vm827, %v1584, 0
        %1589 = vmatprep.subr.mxu0 0.0
        %1590 = vmatpush1.xpose.msra.mxu0 0.0
        %1591 = vmatprep.subr.mxu0 0.0
        %1592 = vmatpush1.xpose.msra.mxu0 0.0
        %1593 = vmatprep.subr.mxu0 0.0
        %1594 = vmatpush1.xpose.msra.mxu0 0.0
        %1595 = vmatprep.subr.mxu0 0.0
        %1596 = vmatpush1.xpose.msra.mxu0 0.0
        %1597 = vmatprep.subr.mxu0 0.0
        %1598 = vmatpush1.xpose.msra.mxu0 0.0
        %1599 = vmatprep.subr.mxu0 0.0
        %1600 = vmatpush1.xpose.msra.mxu0 0.0
        %1601 = vmatprep.subr.mxu0 0.0
        %1602 = vmatpush1.xpose.msra.mxu0 0.0
        %1603 = vmatprep.subr.mxu0 0.0
        %1604 = vmatpush1.xpose.msra.mxu0 0.0
        %1605 = vmatprep.subr.mxu0 0.0
        %1606 = vmatpush1.xpose.msra.mxu0 0.0
        %1607 = vmatprep.subr.mxu0 0.0
        %1608 = vmatpush1.xpose.msra.mxu0 0.0
        %1609 = vmatprep.subr.mxu0 0.0
        %1610 = vmatpush1.xpose.msra.mxu0 0.0
        %1611 = vmatprep.subr.mxu0 0.0
        %1612 = vmatpush1.xpose.msra.mxu0 0.0
        %1613 = vmatprep.subr.mxu0 0.0
        %1614 = vmatpush1.xpose.msra.mxu0 0.0
        %1615 = vmatprep.subr.mxu0 0.0
        %1616 = vmatpush1.xpose.msra.mxu0 0.0
        %1617 = vmatprep.subr.mxu0 0.0
        %1618 = vmatpush1.xpose.msra.mxu0 0.0
        %1619 = vmatprep.subr.mxu0 0.0
        %1620 = vmatpush1.xpose.msra.mxu0 %v1587
        %1621 = vmatprep.subr.mxu0 0.0
        %1622 = vmatpush2.xpose.msra.mxu0 0.0
        %1623 = vmatprep.subr.mxu0 0.0
        %1624 = vmatpush2.xpose.msra.mxu0 0.0
        %1625 = vmatprep.subr.mxu0 0.0
        %1626 = vmatpush2.xpose.msra.mxu0 0.0
        %1627 = vmatprep.subr.mxu0 0.0
        %1628 = vmatpush2.xpose.msra.mxu0 0.0
        %1629 = vmatprep.subr.mxu0 0.0
        %1630 = vmatpush2.xpose.msra.mxu0 0.0
        %1631 = vmatprep.subr.mxu0 0.0
        %1632 = vmatpush2.xpose.msra.mxu0 0.0
        %1633 = vmatprep.subr.mxu0 0.0
        %1634 = vmatpush2.xpose.msra.mxu0 0.0
        %1635 = vmatprep.subr.mxu0 0.0
        %1636 = vmatpush2.xpose.msra.mxu0 0.0
        %1637 = vmatprep.subr.mxu0 0.0
        %1638 = vmatpush2.xpose.msra.mxu0 0.0
        %1639 = vmatprep.subr.mxu0 0.0
        %1640 = vmatpush2.xpose.msra.mxu0 0.0
        %1641 = vmatprep.subr.mxu0 0.0
        %1642 = vmatpush2.xpose.msra.mxu0 0.0
        %1643 = vmatprep.subr.mxu0 0.0
        %1644 = vmatpush2.xpose.msra.mxu0 0.0
        %1645 = vmatprep.subr.mxu0 0.0
        %1646 = vmatpush2.xpose.msra.mxu0 0.0
        %1647 = vmatprep.subr.mxu0 0.0
        %1648 = vmatpush2.xpose.msra.mxu0 0.0
        %1649 = vmatprep.subr.mxu0 0.0
        %1650 = vmatpush2.xpose.msra.mxu0 0.0
        %1651 = vmatprep.subr.mxu0 0.0
        %1652 = vmatpush2.xpose.msra.mxu0 0.0
        %1653 = vmatprep.mubr.f32.mxu0 0.0
        %1654 = vmatmul.mubr.f32.gmra.mxu0 %v1585
        %v1655 = vpop.f32.mrf.mxu0
        %v1656 = vadd.f32 0.0, %v1655
        %v1657 = vpop.f32.mrf.mxu0
        %1658 = vdwg.mxu0
        %v1659 = vmul.f32 %v1656, 0.25
        %v1660 = vadd.f32 %v1659, %v907
        %v1661 = vsel %vm910, %v1660, -inf
        %1662 = vmax.xlane.f32.xlu0 %v1661
        %v1663 = vpop.xlane.xlu0 %1662
        %v1664 = vsub.f32 %v1660, %v1663
        %v1665 = vmul.f32 %v1664, 1.442695
        %v1666 = vpow.pop %v1665
        %v1667 = vsel %vm910, %v1666, 0.0
        %1668 = vadd.xlane.f32.xlu0 %v1667
        %v1669 = vpop.xlane.xlu0 %1668
        %v1670 = vrcp.pop %v1669
        %v1671 = vmul.f32 %v1666, %v1670
        %1672 = vrot.lane.b32.xlu0 %v1579, 64
        %v1673 = vpop.permute.xlu0 %1672
        %v1676 = vsel %vm910, %v1671, 0
        %1678 = vmatprep.subr.mxu0 0.0
        %1679 = vmatpush1.msra.mxu0 0.0
        %1680 = vmatprep.subr.mxu0 0.0
        %1681 = vmatpush1.msra.mxu0 0.0
        %1682 = vmatprep.subr.mxu0 0.0
        %1683 = vmatpush1.msra.mxu0 0.0
        %1684 = vmatprep.subr.mxu0 0.0
        %1685 = vmatpush1.msra.mxu0 0.0
        %1686 = vmatprep.subr.mxu0 0.0
        %1687 = vmatpush1.msra.mxu0 0.0
        %1688 = vmatprep.subr.mxu0 0.0
        %1689 = vmatpush1.msra.mxu0 0.0
        %1690 = vmatprep.subr.mxu0 0.0
        %1691 = vmatpush1.msra.mxu0 0.0
        %1692 = vmatprep.subr.mxu0 0.0
        %1693 = vmatpush1.msra.mxu0 0.0
        %1694 = vmatprep.subr.mxu0 0.0
        %1695 = vmatpush1.msra.mxu0 0.0
        %1696 = vmatprep.subr.mxu0 0.0
        %1697 = vmatpush1.msra.mxu0 0.0
        %1698 = vmatprep.subr.mxu0 0.0
        %1699 = vmatpush1.msra.mxu0 0.0
        %1700 = vmatprep.subr.mxu0 0.0
        %1701 = vmatpush1.msra.mxu0 0.0
        %1702 = vmatprep.subr.mxu0 0.0
        %1703 = vmatpush1.msra.mxu0 0.0
        %1704 = vmatprep.subr.mxu0 0.0
        %1705 = vmatpush1.msra.mxu0 0.0
        %1706 = vmatprep.subr.mxu0 0.0
        %1707 = vmatpush1.msra.mxu0 0.0
        %1708 = vmatprep.subr.mxu0 0.0
        %1709 = vmatpush1.msra.mxu0 %v1673
        %1710 = vmatprep.subr.mxu0 0.0
        %1711 = vmatpush2.msra.mxu0 0.0
        %1712 = vmatprep.subr.mxu0 0.0
        %1713 = vmatpush2.msra.mxu0 0.0
        %1714 = vmatprep.subr.mxu0 0.0
        %1715 = vmatpush2.msra.mxu0 0.0
        %1716 = vmatprep.subr.mxu0 0.0
        %1717 = vmatpush2.msra.mxu0 0.0
        %1718 = vmatprep.subr.mxu0 0.0
        %1719 = vmatpush2.msra.mxu0 0.0
        %1720 = vmatprep.subr.mxu0 0.0
        %1721 = vmatpush2.msra.mxu0 0.0
        %1722 = vmatprep.subr.mxu0 0.0
        %1723 = vmatpush2.msra.mxu0 0.0
        %1724 = vmatprep.subr.mxu0 0.0
        %1725 = vmatpush2.msra.mxu0 0.0
        %1726 = vmatprep.subr.mxu0 0.0
        %1727 = vmatpush2.msra.mxu0 0.0
        %1728 = vmatprep.subr.mxu0 0.0
        %1729 = vmatpush2.msra.mxu0 0.0
        %1730 = vmatprep.subr.mxu0 0.0
        %1731 = vmatpush2.msra.mxu0 0.0
        %1732 = vmatprep.subr.mxu0 0.0
        %1733 = vmatpush2.msra.mxu0 0.0
        %1734 = vmatprep.subr.mxu0 0.0
        %1735 = vmatpush2.msra.mxu0 0.0
        %1736 = vmatprep.subr.mxu0 0.0
        %1737 = vmatpush2.msra.mxu0 0.0
        %1738 = vmatprep.subr.mxu0 0.0
        %1739 = vmatpush2.msra.mxu0 0.0
        %1740 = vmatprep.subr.mxu0 0.0
        %1741 = vmatpush2.msra.mxu0 0.0
        %1742 = vmatprep.mubr.f32.mxu0 0.0
        %1743 = vmatmul.mubr.f32.gmra.mxu0 %v1676
        %v1744 = vpop.f32.mrf.mxu0
        %v1745 = vadd.f32 0.0, %v1744
        %v1746 = vpop.f32.mrf.mxu0
        %1747 = vdwg.mxu0
        %1748 = vrot.lane.b32.xlu0 %v1579, 112
        %v1749 = vpop.permute.xlu0 %1748
        %1750 = vrot.lane.b32.xlu0 %v1579, 80
        %v1751 = vpop.permute.xlu0 %1750
        %v1752 = vsel %vm827, %v1749, 0
        %v1754 = vsel %vm827, %v1751, 0
        %1756 = vmatprep.subr.mxu0 0.0
        %1757 = vmatpush1.xpose.msra.mxu0 0.0
        %1758 = vmatprep.subr.mxu0 0.0
        %1759 = vmatpush1.xpose.msra.mxu0 0.0
        %1760 = vmatprep.subr.mxu0 0.0
        %1761 = vmatpush1.xpose.msra.mxu0 0.0
        %1762 = vmatprep.subr.mxu0 0.0
        %1763 = vmatpush1.xpose.msra.mxu0 0.0
        %1764 = vmatprep.subr.mxu0 0.0
        %1765 = vmatpush1.xpose.msra.mxu0 0.0
        %1766 = vmatprep.subr.mxu0 0.0
        %1767 = vmatpush1.xpose.msra.mxu0 0.0
        %1768 = vmatprep.subr.mxu0 0.0
        %1769 = vmatpush1.xpose.msra.mxu0 0.0
        %1770 = vmatprep.subr.mxu0 0.0
        %1771 = vmatpush1.xpose.msra.mxu0 0.0
        %1772 = vmatprep.subr.mxu0 0.0
        %1773 = vmatpush1.xpose.msra.mxu0 0.0
        %1774 = vmatprep.subr.mxu0 0.0
        %1775 = vmatpush1.xpose.msra.mxu0 0.0
        %1776 = vmatprep.subr.mxu0 0.0
        %1777 = vmatpush1.xpose.msra.mxu0 0.0
        %1778 = vmatprep.subr.mxu0 0.0
        %1779 = vmatpush1.xpose.msra.mxu0 0.0
        %1780 = vmatprep.subr.mxu0 0.0
        %1781 = vmatpush1.xpose.msra.mxu0 0.0
        %1782 = vmatprep.subr.mxu0 0.0
        %1783 = vmatpush1.xpose.msra.mxu0 0.0
        %1784 = vmatprep.subr.mxu0 0.0
        %1785 = vmatpush1.xpose.msra.mxu0 0.0
        %1786 = vmatprep.subr.mxu0 0.0
        %1787 = vmatpush1.xpose.msra.mxu0 %v1754
        %1788 = vmatprep.subr.mxu0 0.0
        %1789 = vmatpush2.xpose.msra.mxu0 0.0
        %1790 = vmatprep.subr.mxu0 0.0
        %1791 = vmatpush2.xpose.msra.mxu0 0.0
        %1792 = vmatprep.subr.mxu0 0.0
        %1793 = vmatpush2.xpose.msra.mxu0 0.0
        %1794 = vmatprep.subr.mxu0 0.0
        %1795 = vmatpush2.xpose.msra.mxu0 0.0
        %1796 = vmatprep.subr.mxu0 0.0
        %1797 = vmatpush2.xpose.msra.mxu0 0.0
        %1798 = vmatprep.subr.mxu0 0.0
        %1799 = vmatpush2.xpose.msra.mxu0 0.0
        %1800 = vmatprep.subr.mxu0 0.0
        %1801 = vmatpush2.xpose.msra.mxu0 0.0
        %1802 = vmatprep.subr.mxu0 0.0
        %1803 = vmatpush2.xpose.msra.mxu0 0.0
        %1804 = vmatprep.subr.mxu0 0.0
        %1805 = vmatpush2.xpose.msra.mxu0 0.0
        %1806 = vmatprep.subr.mxu0 0.0
        %1807 = vmatpush2.xpose.msra.mxu0 0.0
        %1808 = vmatprep.subr.mxu0 0.0
        %1809 = vmatpush2.xpose.msra.mxu0 0.0
        %1810 = vmatprep.subr.mxu0 0.0
        %1811 = vmatpush2.xpose.msra.mxu0 0.0
        %1812 = vmatprep.subr.mxu0 0.0
        %1813 = vmatpush2.xpose.msra.mxu0 0.0
        %1814 = vmatprep.subr.mxu0 0.0
        %1815 = vmatpush2.xpose.msra.mxu0 0.0
        %1816 = vmatprep.subr.mxu0 0.0
        %1817 = vmatpush2.xpose.msra.mxu0 0.0
        %1818 = vmatprep.subr.mxu0 0.0
        %1819 = vmatpush2.xpose.msra.mxu0 0.0
        %1820 = vmatprep.mubr.f32.mxu0 0.0
        %1821 = vmatmul.mubr.f32.gmra.mxu0 %v1752
        %v1822 = vpop.f32.mrf.mxu0
        %v1823 = vadd.f32 0.0, %v1822
        %v1824 = vpop.f32.mrf.mxu0
        %1825 = vdwg.mxu0
        %v1826 = vmul.f32 %v1823, 0.25
        %v1827 = vadd.f32 %v1826, %v907
        %v1828 = vsel %vm910, %v1827, -inf
        %1829 = vmax.xlane.f32.xlu0 %v1828
        %v1830 = vpop.xlane.xlu0 %1829
        %v1831 = vsub.f32 %v1827, %v1830
        %v1832 = vmul.f32 %v1831, 1.442695
        %v1833 = vpow.pop %v1832
        %v1834 = vsel %vm910, %v1833, 0.0
        %1835 = vadd.xlane.f32.xlu0 %v1834
        %v1836 = vpop.xlane.xlu0 %1835
        %v1837 = vrcp.pop %v1836
        %v1838 = vmul.f32 %v1833, %v1837
        %1839 = vrot.lane.b32.xlu0 %v1579, 48
        %v1840 = vpop.permute.xlu0 %1839
        %v1843 = vsel %vm910, %v1838, 0
        %1845 = vmatprep.subr.mxu0 0.0
        %1846 = vmatpush1.msra.mxu0 0.0
        %1847 = vmatprep.subr.mxu0 0.0
        %1848 = vmatpush1.msra.mxu0 0.0
        %1849 = vmatprep.subr.mxu0 0.0
        %1850 = vmatpush1.msra.mxu0 0.0
        %1851 = vmatprep.subr.mxu0 0.0
        %1852 = vmatpush1.msra.mxu0 0.0
        %1853 = vmatprep.subr.mxu0 0.0
        %1854 = vmatpush1.msra.mxu0 0.0
        %1855 = vmatprep.subr.mxu0 0.0
        %1856 = vmatpush1.msra.mxu0 0.0
        %1857 = vmatprep.subr.mxu0 0.0
        %1858 = vmatpush1.msra.mxu0 0.0
        %1859 = vmatprep.subr.mxu0 0.0
        %1860 = vmatpush1.msra.mxu0 0.0
        %1861 = vmatprep.subr.mxu0 0.0
        %1862 = vmatpush1.msra.mxu0 0.0
        %1863 = vmatprep.subr.mxu0 0.0
        %1864 = vmatpush1.msra.mxu0 0.0
        %1865 = vmatprep.subr.mxu0 0.0
        %1866 = vmatpush1.msra.mxu0 0.0
        %1867 = vmatprep.subr.mxu0 0.0
        %1868 = vmatpush1.msra.mxu0 0.0
        %1869 = vmatprep.subr.mxu0 0.0
        %1870 = vmatpush1.msra.mxu0 0.0
        %1871 = vmatprep.subr.mxu0 0.0
        %1872 = vmatpush1.msra.mxu0 0.0
        %1873 = vmatprep.subr.mxu0 0.0
        %1874 = vmatpush1.msra.mxu0 0.0
        %1875 = vmatprep.subr.mxu0 0.0
        %1876 = vmatpush1.msra.mxu0 %v1840
        %1877 = vmatprep.subr.mxu0 0.0
        %1878 = vmatpush2.msra.mxu0 0.0
        %1879 = vmatprep.subr.mxu0 0.0
        %1880 = vmatpush2.msra.mxu0 0.0
        %1881 = vmatprep.subr.mxu0 0.0
        %1882 = vmatpush2.msra.mxu0 0.0
        %1883 = vmatprep.subr.mxu0 0.0
        %1884 = vmatpush2.msra.mxu0 0.0
        %1885 = vmatprep.subr.mxu0 0.0
        %1886 = vmatpush2.msra.mxu0 0.0
        %1887 = vmatprep.subr.mxu0 0.0
        %1888 = vmatpush2.msra.mxu0 0.0
        %1889 = vmatprep.subr.mxu0 0.0
        %1890 = vmatpush2.msra.mxu0 0.0
        %1891 = vmatprep.subr.mxu0 0.0
        %1892 = vmatpush2.msra.mxu0 0.0
        %1893 = vmatprep.subr.mxu0 0.0
        %1894 = vmatpush2.msra.mxu0 0.0
        %1895 = vmatprep.subr.mxu0 0.0
        %1896 = vmatpush2.msra.mxu0 0.0
        %1897 = vmatprep.subr.mxu0 0.0
        %1898 = vmatpush2.msra.mxu0 0.0
        %1899 = vmatprep.subr.mxu0 0.0
        %1900 = vmatpush2.msra.mxu0 0.0
        %1901 = vmatprep.subr.mxu0 0.0
        %1902 = vmatpush2.msra.mxu0 0.0
        %1903 = vmatprep.subr.mxu0 0.0
        %1904 = vmatpush2.msra.mxu0 0.0
        %1905 = vmatprep.subr.mxu0 0.0
        %1906 = vmatpush2.msra.mxu0 0.0
        %1907 = vmatprep.subr.mxu0 0.0
        %1908 = vmatpush2.msra.mxu0 0.0
        %1909 = vmatprep.mubr.f32.mxu0 0.0
        %1910 = vmatmul.mubr.f32.gmra.mxu0 %v1843
        %v1911 = vpop.f32.mrf.mxu0
        %v1912 = vadd.f32 0.0, %v1911
        %v1913 = vpop.f32.mrf.mxu0
        %1914 = vdwg.mxu0
        %1916 = vrot.lane.b32.xlu0 %v1912, 16
        %v1917 = vpop.permute.xlu0 %1916
        %v1919 = vsel %vm827, %v1745, %v1917
        %s1920 = scalar_lea.vmem %s6, 32
        %v1921 = vld [vmem:[%s1920] sm:$0xff]
        %v1922 = vld [vmem:[%s1920 + $0x8] sm:$0xff]
        %v1923 = vld [vmem:[%s1920 + $0x10] sm:$0xff]
        %v1924 = vld [vmem:[%s1920 + $0x18] sm:$0xff]
        %s1925 = scalar_lea.vmem %s7, 1
        %v1926 = vld [vmem:[%s1925] sm:$0x1]
        %v1928 = vlaneseq
        %v1929 = vshrl.u32 %v1928, 7
        %v1930 = vsub.s32 0, %v1929
        %v1931 = vrot.slane %v1926, %v1930
        %v1934 = vsel %vm711, %v1919, 0
        %1936 = vmatprep.subr.mxu0 0.0
        %1937 = vmatpush1.msra.mxu0 0.0
        %1938 = vmatprep.subr.mxu0 0.0
        %1939 = vmatpush1.msra.mxu0 0.0
        %1940 = vmatprep.subr.mxu0 0.0
        %1941 = vmatpush1.msra.mxu0 0.0
        %1942 = vmatprep.subr.mxu0 0.0
        %1943 = vmatpush1.msra.mxu0 0.0
        %1944 = vmatprep.subr.mxu0 0.0
        %1945 = vmatpush1.msra.mxu0 0.0
        %1946 = vmatprep.subr.mxu0 0.0
        %1947 = vmatpush1.msra.mxu0 0.0
        %1948 = vmatprep.subr.mxu0 0.0
        %1949 = vmatpush1.msra.mxu0 0.0
        %1950 = vmatprep.subr.mxu0 0.0
        %1951 = vmatpush1.msra.mxu0 0.0
        %1952 = vmatprep.subr.mxu0 0.0
        %1953 = vmatpush1.msra.mxu0 0.0
        %1954 = vmatprep.subr.mxu0 0.0
        %1955 = vmatpush1.msra.mxu0 0.0
        %1956 = vmatprep.subr.mxu0 0.0
        %1957 = vmatpush1.msra.mxu0 0.0
        %1958 = vmatprep.subr.mxu0 0.0
        %1959 = vmatpush1.msra.mxu0 0.0
        %1960 = vmatprep.subr.mxu0 0.0
        %1961 = vmatpush1.msra.mxu0 %v1924
        %1962 = vmatprep.subr.mxu0 0.0
        %1963 = vmatpush1.msra.mxu0 %v1923
        %1964 = vmatprep.subr.mxu0 0.0
        %1965 = vmatpush1.msra.mxu0 %v1922
        %1966 = vmatprep.subr.mxu0 0.0
        %1967 = vmatpush1.msra.mxu0 %v1921
        %1968 = vmatprep.subr.mxu0 0.0
        %1969 = vmatpush2.msra.mxu0 0.0
        %1970 = vmatprep.subr.mxu0 0.0
        %1971 = vmatpush2.msra.mxu0 0.0
        %1972 = vmatprep.subr.mxu0 0.0
        %1973 = vmatpush2.msra.mxu0 0.0
        %1974 = vmatprep.subr.mxu0 0.0
        %1975 = vmatpush2.msra.mxu0 0.0
        %1976 = vmatprep.subr.mxu0 0.0
        %1977 = vmatpush2.msra.mxu0 0.0
        %1978 = vmatprep.subr.mxu0 0.0
        %1979 = vmatpush2.msra.mxu0 0.0
        %1980 = vmatprep.subr.mxu0 0.0
        %1981 = vmatpush2.msra.mxu0 0.0
        %1982 = vmatprep.subr.mxu0 0.0
        %1983 = vmatpush2.msra.mxu0 0.0
        %1984 = vmatprep.subr.mxu0 0.0
        %1985 = vmatpush2.msra.mxu0 0.0
        %1986 = vmatprep.subr.mxu0 0.0
        %1987 = vmatpush2.msra.mxu0 0.0
        %1988 = vmatprep.subr.mxu0 0.0
        %1989 = vmatpush2.msra.mxu0 0.0
        %1990 = vmatprep.subr.mxu0 0.0
        %1991 = vmatpush2.msra.mxu0 0.0
        %1992 = vmatprep.subr.mxu0 0.0
        %1993 = vmatpush2.msra.mxu0 0.0
        %1994 = vmatprep.subr.mxu0 0.0
        %1995 = vmatpush2.msra.mxu0 0.0
        %1996 = vmatprep.subr.mxu0 0.0
        %1997 = vmatpush2.msra.mxu0 0.0
        %1998 = vmatprep.subr.mxu0 0.0
        %1999 = vmatpush2.msra.mxu0 0.0
        %2000 = vmatprep.mubr.f32.mxu0 0.0
        %2001 = vmatmul.mubr.f32.gmra.mxu0 %v1934
        %v2002 = vpop.f32.mrf.mxu0
        %v2003 = vadd.f32 %v1931, %v2002
        %v2004 = vpop.f32.mrf.mxu0
        %2005 = vdwg.mxu0
        %v2006 = vadd.f32 %v2003, %v1495
        %s2007 = scalar_lea.vmem %s8, 1
        %v2008 = vld [vmem:[%s2007] sm:$0x1]
        %s2009 = scalar_lea.vmem %s9, 1
        %v2010 = vld [vmem:[%s2009] sm:$0x1]
        %v2011 = vsel %vm711, %v2006, 0.0
        %2012 = vadd.xlane.f32.xlu0 %v2011
        %v2013 = vpop.xlane.xlu0 %2012
        %v2014 = vmul.f32 %v2013, %v715
        %v2015 = vsub.f32 %v2006, %v2014
        %v2016 = vmul.f32 %v2015, %v2015
        %v2017 = vsel %vm711, %v2016, 0.0
        %2018 = vadd.xlane.f32.xlu0 %v2017
        %v2019 = vpop.xlane.xlu0 %2018
        %v2020 = vmul.f32 %v2019, %v715
        %v2021 = vadd.f32 %v2020, 1e-05
        %v2022 = vrsqrt.pop %v2021
        %v2023 = vmul.f32 %v2015, %v2022
        %v2025 = vlaneseq
        %v2026 = vshrl.u32 %v2025, 7
        %v2027 = vsub.s32 0, %v2026
        %v2028 = vrot.slane %v2008, %v2027
        %v2030 = vmul.f32 %v2023, %v2028
        %v2032 = vlaneseq
        %v2033 = vshrl.u32 %v2032, 7
        %v2034 = vsub.s32 0, %v2033
        %v2035 = vrot.slane %v2010, %v2034
        %v2037 = vadd.f32 %v2030, %v2035
        %s2038 = scalar_lea.vmem %s10, 32
        %v2039 = vld [vmem:[%s2038] sm:$0xff]
        %v2040 = vld [vmem:[%s2038 + $0x8] sm:$0xff]
        %v2041 = vld [vmem:[%s2038 + $0x10] sm:$0xff]
        %v2042 = vld [vmem:[%s2038 + $0x18] sm:$0xff]
        %s2043 = scalar_lea.vmem %s11, 1
        %v2044 = vld [vmem:[%s2043] sm:$0x1]
        %v2046 = vlaneseq
        %v2047 = vshrl.u32 %v2046, 7
        %v2048 = vsub.s32 0, %v2047
        %v2049 = vrot.slane %v2044, %v2048
        %v2052 = vsel %vm711, %v2037, 0
        %2054 = vmatprep.subr.mxu0 0.0
        %2055 = vmatpush1.msra.mxu0 0.0
        %2056 = vmatprep.subr.mxu0 0.0
        %2057 = vmatpush1.msra.mxu0 0.0
        %2058 = vmatprep.subr.mxu0 0.0
        %2059 = vmatpush1.msra.mxu0 0.0
        %2060 = vmatprep.subr.mxu0 0.0
        %2061 = vmatpush1.msra.mxu0 0.0
        %2062 = vmatprep.subr.mxu0 0.0
        %2063 = vmatpush1.msra.mxu0 0.0
        %2064 = vmatprep.subr.mxu0 0.0
        %2065 = vmatpush1.msra.mxu0 0.0
        %2066 = vmatprep.subr.mxu0 0.0
        %2067 = vmatpush1.msra.mxu0 0.0
        %2068 = vmatprep.subr.mxu0 0.0
        %2069 = vmatpush1.msra.mxu0 0.0
        %2070 = vmatprep.subr.mxu0 0.0
        %2071 = vmatpush1.msra.mxu0 0.0
        %2072 = vmatprep.subr.mxu0 0.0
        %2073 = vmatpush1.msra.mxu0 0.0
        %2074 = vmatprep.subr.mxu0 0.0
        %2075 = vmatpush1.msra.mxu0 0.0
        %2076 = vmatprep.subr.mxu0 0.0
        %2077 = vmatpush1.msra.mxu0 0.0
        %2078 = vmatprep.subr.mxu0 0.0
        %2079 = vmatpush1.msra.mxu0 %v2042
        %2080 = vmatprep.subr.mxu0 0.0
        %2081 = vmatpush1.msra.mxu0 %v2041
        %2082 = vmatprep.subr.mxu0 0.0
        %2083 = vmatpush1.msra.mxu0 %v2040
        %2084 = vmatprep.subr.mxu0 0.0
        %2085 = vmatpush1.msra.mxu0 %v2039
        %2086 = vmatprep.subr.mxu0 0.0
        %2087 = vmatpush2.msra.mxu0 0.0
        %2088 = vmatprep.subr.mxu0 0.0
        %2089 = vmatpush2.msra.mxu0 0.0
        %2090 = vmatprep.subr.mxu0 0.0
        %2091 = vmatpush2.msra.mxu0 0.0
        %2092 = vmatprep.subr.mxu0 0.0
        %2093 = vmatpush2.msra.mxu0 0.0
        %2094 = vmatprep.subr.mxu0 0.0
        %2095 = vmatpush2.msra.mxu0 0.0
        %2096 = vmatprep.subr.mxu0 0.0
        %2097 = vmatpush2.msra.mxu0 0.0
        %2098 = vmatprep.subr.mxu0 0.0
        %2099 = vmatpush2.msra.mxu0 0.0
        %2100 = vmatprep.subr.mxu0 0.0
        %2101 = vmatpush2.msra.mxu0 0.0
        %2102 = vmatprep.subr.mxu0 0.0
        %2103 = vmatpush2.msra.mxu0 0.0
        %2104 = vmatprep.subr.mxu0 0.0
        %2105 = vmatpush2.msra.mxu0 0.0
        %2106 = vmatprep.subr.mxu0 0.0
        %2107 = vmatpush2.msra.mxu0 0.0
        %2108 = vmatprep.subr.mxu0 0.0
        %2109 = vmatpush2.msra.mxu0 0.0
        %2110 = vmatprep.subr.mxu0 0.0
        %2111 = vmatpush2.msra.mxu0 0.0
        %2112 = vmatprep.subr.mxu0 0.0
        %2113 = vmatpush2.msra.mxu0 0.0
        %2114 = vmatprep.subr.mxu0 0.0
        %2115 = vmatpush2.msra.mxu0 0.0
        %2116 = vmatprep.subr.mxu0 0.0
        %2117 = vmatpush2.msra.mxu0 0.0
        %2118 = vmatprep.mubr.f32.mxu0 0.0
        %2119 = vmatmul.mubr.f32.gmra.mxu0 %v2052
        %v2120 = vpop.f32.mrf.mxu0
        %v2121 = vadd.f32 %v2049, %v2120
        %v2122 = vpop.f32.mrf.mxu0
        %2123 = vdwg.mxu0
        %v2124 = vmul.f32 %v2121, 0.5
        %v2125 = vmul.f32 %v2121, 0.044715
        %v2126 = vmul.f32 %v2125, %v2121
        %v2127 = vmul.f32 %v2126, %v2121
        %v2128 = vadd.f32 %v2121, %v2127
        %v2129 = vmul.f32 %v2128, 0.7978846
        %v2130 = vtanh.pop %v2129
        %v2131 = vadd.f32 %v2130, 1.0
        %v2132 = vmul.f32 %v2124, %v2131
        %s2133 = scalar_lea.vmem %s12, 64
        %v2134 = vld [vmem:[%s2133] sm:$0xff]
        %v2135 = vld [vmem:[%s2133 + $0x8] sm:$0xff]
        %v2136 = vld [vmem:[%s2133 + $0x10] sm:$0xff]
        %v2137 = vld [vmem:[%s2133 + $0x18] sm:$0xff]
        %v2138 = vld [vmem:[%s2133 + $0x20] sm:$0xff]
        %v2139 = vld [vmem:[%s2133 + $0x28] sm:$0xff]
        %v2140 = vld [vmem:[%s2133 + $0x30] sm:$0xff]
        %v2141 = vld [vmem:[%s2133 + $0x38] sm:$0xff]
        %s2142 = scalar_lea.vmem %s13, 1
        %v2143 = vld [vmem:[%s2142] sm:$0x1]
        %v2145 = vlaneseq
        %v2146 = vshrl.u32 %v2145, 7
        %v2147 = vsub.s32 0, %v2146
        %v2148 = vrot.slane %v2143, %v2147
        %v2151 = vsel %vm1392, %v2132, 0
        %2153 = vmatprep.subr.mxu0 0.0
        %2154 = vmatpush1.msra.mxu0 0.0
        %2155 = vmatprep.subr.mxu0 0.0
        %2156 = vmatpush1.msra.mxu0 0.0
        %2157 = vmatprep.subr.mxu0 0.0
        %2158 = vmatpush1.msra.mxu0 0.0
        %2159 = vmatprep.subr.mxu0 0.0
        %2160 = vmatpush1.msra.mxu0 0.0
        %2161 = vmatprep.subr.mxu0 0.0
        %2162 = vmatpush1.msra.mxu0 0.0
        %2163 = vmatprep.subr.mxu0 0.0
        %2164 = vmatpush1.msra.mxu0 0.0
        %2165 = vmatprep.subr.mxu0 0.0
        %2166 = vmatpush1.msra.mxu0 0.0
        %2167 = vmatprep.subr.mxu0 0.0
        %2168 = vmatpush1.msra.mxu0 0.0
        %2169 = vmatprep.subr.mxu0 0.0
        %2170 = vmatpush1.msra.mxu0 %v2141
        %2171 = vmatprep.subr.mxu0 0.0
        %2172 = vmatpush1.msra.mxu0 %v2140
        %2173 = vmatprep.subr.mxu0 0.0
        %2174 = vmatpush1.msra.mxu0 %v2139
        %2175 = vmatprep.subr.mxu0 0.0
        %2176 = vmatpush1.msra.mxu0 %v2138
        %2177 = vmatprep.subr.mxu0 0.0
        %2178 = vmatpush1.msra.mxu0 %v2137
        %2179 = vmatprep.subr.mxu0 0.0
        %2180 = vmatpush1.msra.mxu0 %v2136
        %2181 = vmatprep.subr.mxu0 0.0
        %2182 = vmatpush1.msra.mxu0 %v2135
        %2183 = vmatprep.subr.mxu0 0.0
        %2184 = vmatpush1.msra.mxu0 %v2134
        %2185 = vmatprep.subr.mxu0 0.0
        %2186 = vmatpush2.msra.mxu0 0.0
        %2187 = vmatprep.subr.mxu0 0.0
        %2188 = vmatpush2.msra.mxu0 0.0
        %2189 = vmatprep.subr.mxu0 0.0
        %2190 = vmatpush2.msra.mxu0 0.0
        %2191 = vmatprep.subr.mxu0 0.0
        %2192 = vmatpush2.msra.mxu0 0.0
        %2193 = vmatprep.subr.mxu0 0.0
        %2194 = vmatpush2.msra.mxu0 0.0
        %2195 = vmatprep.subr.mxu0 0.0
        %2196 = vmatpush2.msra.mxu0 0.0
        %2197 = vmatprep.subr.mxu0 0.0
        %2198 = vmatpush2.msra.mxu0 0.0
        %2199 = vmatprep.subr.mxu0 0.0
        %2200 = vmatpush2.msra.mxu0 0.0
        %2201 = vmatprep.subr.mxu0 0.0
        %2202 = vmatpush2.msra.mxu0 0.0
        %2203 = vmatprep.subr.mxu0 0.0
        %2204 = vmatpush2.msra.mxu0 0.0
        %2205 = vmatprep.subr.mxu0 0.0
        %2206 = vmatpush2.msra.mxu0 0.0
        %2207 = vmatprep.subr.mxu0 0.0
        %2208 = vmatpush2.msra.mxu0 0.0
        %2209 = vmatprep.subr.mxu0 0.0
        %2210 = vmatpush2.msra.mxu0 0.0
        %2211 = vmatprep.subr.mxu0 0.0
        %2212 = vmatpush2.msra.mxu0 0.0
        %2213 = vmatprep.subr.mxu0 0.0
        %2214 = vmatpush2.msra.mxu0 0.0
        %2215 = vmatprep.subr.mxu0 0.0
        %2216 = vmatpush2.msra.mxu0 0.0
        %2217 = vmatprep.mubr.f32.mxu0 0.0
        %2218 = vmatmul.mubr.f32.gmra.mxu0 %v2151
        %v2219 = vpop.f32.mrf.mxu0
        %v2220 = vadd.f32 %v2148, %v2219
        %v2221 = vpop.f32.mrf.mxu0
        %2222 = vdwg.mxu0
        %v2223 = vadd.f32 %v2220, %v2037
        %s2224 = scalar_lea.vmem %s14, 1
        %v2225 = vld [vmem:[%s2224] sm:$0x1]
        %s2226 = scalar_lea.vmem %s15, 1
        %v2227 = vld [vmem:[%s2226] sm:$0x1]
        %v2228 = vsel %vm711, %v2223, 0.0
        %2229 = vadd.xlane.f32.xlu0 %v2228
        %v2230 = vpop.xlane.xlu0 %2229
        %v2231 = vmul.f32 %v2230, %v715
        %v2232 = vsub.f32 %v2223, %v2231
        %v2233 = vmul.f32 %v2232, %v2232
        %v2234 = vsel %vm711, %v2233, 0.0
        %2235 = vadd.xlane.f32.xlu0 %v2234
        %v2236 = vpop.xlane.xlu0 %2235
        %v2237 = vmul.f32 %v2236, %v715
        %v2238 = vadd.f32 %v2237, 1e-05
        %v2239 = vrsqrt.pop %v2238
        %v2240 = vmul.f32 %v2232, %v2239
        %v2242 = vlaneseq
        %v2243 = vshrl.u32 %v2242, 7
        %v2244 = vsub.s32 0, %v2243
        %v2245 = vrot.slane %v2225, %v2244
        %v2247 = vmul.f32 %v2240, %v2245
        %v2249 = vlaneseq
        %v2250 = vshrl.u32 %v2249, 7
        %v2251 = vsub.s32 0, %v2250
        %v2252 = vrot.slane %v2227, %v2251
        %v2254 = vadd.f32 %v2247, %v2252
        %v2255 = vld [vmem:[%s16] sm:$0xff]
        %v2256 = vld [vmem:[%s16 + $0x8] sm:$0xff]
        %v2257 = vld [vmem:[%s16 + $0x10] sm:$0xff]
        %v2258 = vld [vmem:[%s16 + $0x18] sm:$0xff]
        %v2259 = vld [vmem:[%s16 + $0x20] sm:$0xff]
        %v2260 = vld [vmem:[%s16 + $0x28] sm:$0xff]
        %v2261 = vld [vmem:[%s16 + $0x30] sm:$0xff]
        %v2262 = vld [vmem:[%s16 + $0x38] sm:$0xff]
        %v2263 = vld [vmem:[%s16 + $0x40] sm:$0xff]
        %v2264 = vld [vmem:[%s16 + $0x48] sm:$0xff]
        %v2265 = vld [vmem:[%s16 + $0x50] sm:$0xff]
        %v2266 = vld [vmem:[%s16 + $0x58] sm:$0xff]
        %v2267 = vld [vmem:[%s16 + $0x60] sm:$0xff]
        %v2268 = vld [vmem:[%s16 + $0x68] sm:$0xff]
        %v2269 = vld [vmem:[%s16 + $0x70] sm:$0xff]
        %v2270 = vld [vmem:[%s16 + $0x78] sm:$0xff]
        %v2271 = vld [vmem:[%s17] sm:$0xf]
        %v2273 = vlaneseq
        %v2274 = vshrl.u32 %v2273, 7
        %v2275 = vsub.s32 0, %v2274
        %v2276 = vrot.slane %v2271, %v2275
        %v2277 = vlaneseq
        %v2278 = vshrl.u32 %v2277, 7
        %v2279 = vsub.s32 1, %v2278
        %v2280 = vrot.slane %v2271, %v2279
        %v2281 = vlaneseq
        %v2282 = vshrl.u32 %v2281, 7
        %v2283 = vsub.s32 2, %v2282
        %v2284 = vrot.slane %v2271, %v2283
        %v2285 = vlaneseq
        %v2286 = vshrl.u32 %v2285, 7
        %v2287 = vsub.s32 3, %v2286
        %v2288 = vrot.slane %v2271, %v2287
        %v2294 = vsel %vm711, %v2254, 0
        %2296 = vmatprep.subr.mxu0 0.0
        %2297 = vmatpush1.msra.mxu0 0.0
        %2298 = vmatprep.subr.mxu0 0.0
        %2299 = vmatpush1.msra.mxu0 0.0
        %2300 = vmatprep.subr.mxu0 0.0
        %2301 = vmatpush1.msra.mxu0 0.0
        %2302 = vmatprep.subr.mxu0 0.0
        %2303 = vmatpush1.msra.mxu0 0.0
        %2304 = vmatprep.subr.mxu0 0.0
        %2305 = vmatpush1.msra.mxu0 0.0
        %2306 = vmatprep.subr.mxu0 0.0
        %2307 = vmatpush1.msra.mxu0 0.0
        %2308 = vmatprep.subr.mxu0 0.0
        %2309 = vmatpush1.msra.mxu0 0.0
        %2310 = vmatprep.subr.mxu0 0.0
        %2311 = vmatpush1.msra.mxu0 0.0
        %2312 = vmatprep.subr.mxu0 0.0
        %2313 = vmatpush1.msra.mxu0 0.0
        %2314 = vmatprep.subr.mxu0 0.0
        %2315 = vmatpush1.msra.mxu0 0.0
        %2316 = vmatprep.subr.mxu0 0.0
        %2317 = vmatpush1.msra.mxu0 0.0
        %2318 = vmatprep.subr.mxu0 0.0
        %2319 = vmatpush1.msra.mxu0 0.0
        %2320 = vmatprep.subr.mxu0 %v2268
        %2321 = vmatpush1.msra.mxu0 %v2267
        %2322 = vmatprep.subr.mxu0 %v2264
        %2323 = vmatpush1.msra.mxu0 %v2263
        %2324 = vmatprep.subr.mxu0 %v2260
        %2325 = vmatpush1.msra.mxu0 %v2259
        %2326 = vmatprep.subr.mxu0 %v2256
        %2327 = vmatpush1.msra.mxu0 %v2255
        %2328 = vmatprep.subr.mxu0 0.0
        %2329 = vmatpush2.msra.mxu0 0.0
        %2330 = vmatprep.subr.mxu0 0.0
        %2331 = vmatpush2.msra.mxu0 0.0
        %2332 = vmatprep.subr.mxu0 0.0
        %2333 = vmatpush2.msra.mxu0 0.0
        %2334 = vmatprep.subr.mxu0 0.0
        %2335 = vmatpush2.msra.mxu0 0.0
        %2336 = vmatprep.subr.mxu0 0.0
        %2337 = vmatpush2.msra.mxu0 0.0
        %2338 = vmatprep.subr.mxu0 0.0
        %2339 = vmatpush2.msra.mxu0 0.0
        %2340 = vmatprep.subr.mxu0 0.0
        %2341 = vmatpush2.msra.mxu0 0.0
        %2342 = vmatprep.subr.mxu0 0.0
        %2343 = vmatpush2.msra.mxu0 0.0
        %2344 = vmatprep.subr.mxu0 0.0
        %2345 = vmatpush2.msra.mxu0 0.0
        %2346 = vmatprep.subr.mxu0 0.0
        %2347 = vmatpush2.msra.mxu0 0.0
        %2348 = vmatprep.subr.mxu0 0.0
        %2349 = vmatpush2.msra.mxu0 0.0
        %2350 = vmatprep.subr.mxu0 0.0
        %2351 = vmatpush2.msra.mxu0 0.0
        %2352 = vmatprep.subr.mxu0 0.0
        %2353 = vmatpush2.msra.mxu0 0.0
        %2354 = vmatprep.subr.mxu0 0.0
        %2355 = vmatpush2.msra.mxu0 0.0
        %2356 = vmatprep.subr.mxu0 0.0
        %2357 = vmatpush2.msra.mxu0 0.0
        %2358 = vmatprep.subr.mxu0 0.0
        %2359 = vmatpush2.msra.mxu0 0.0
        %2360 = vmatprep.mubr.f32.mxu0 0.0
        %2361 = vmatmul.mubr.f32.gmra.mxu0 %v2294
        %v2362 = vpop.f32.mrf.mxu0
        %v2363 = vadd.f32 %v2276, %v2362
        %v2364 = vpop.f32.mrf.mxu0
        %v2365 = vadd.f32 %v2280, %v2364
        %2366 = vdwg.mxu0
        %2367 = vmatprep.subr.mxu0 0.0
        %2368 = vmatpush1.msra.mxu0 0.0
        %2369 = vmatprep.subr.mxu0 0.0
        %2370 = vmatpush1.msra.mxu0 0.0
        %2371 = vmatprep.subr.mxu0 0.0
        %2372 = vmatpush1.msra.mxu0 0.0
        %2373 = vmatprep.subr.mxu0 0.0
        %2374 = vmatpush1.msra.mxu0 0.0
        %2375 = vmatprep.subr.mxu0 0.0
        %2376 = vmatpush1.msra.mxu0 0.0
        %2377 = vmatprep.subr.mxu0 0.0
        %2378 = vmatpush1.msra.mxu0 0.0
        %2379 = vmatprep.subr.mxu0 0.0
        %2380 = vmatpush1.msra.mxu0 0.0
        %2381 = vmatprep.subr.mxu0 0.0
        %2382 = vmatpush1.msra.mxu0 0.0
        %2383 = vmatprep.subr.mxu0 0.0
        %2384 = vmatpush1.msra.mxu0 0.0
        %2385 = vmatprep.subr.mxu0 0.0
        %2386 = vmatpush1.msra.mxu0 0.0
        %2387 = vmatprep.subr.mxu0 0.0
        %2388 = vmatpush1.msra.mxu0 0.0
        %2389 = vmatprep.subr.mxu0 0.0
        %2390 = vmatpush1.msra.mxu0 0.0
        %2391 = vmatprep.subr.mxu0 %v2270
        %2392 = vmatpush1.msra.mxu0 %v2269
        %2393 = vmatprep.subr.mxu0 %v2266
        %2394 = vmatpush1.msra.mxu0 %v2265
        %2395 = vmatprep.subr.mxu0 %v2262
        %2396 = vmatpush1.msra.mxu0 %v2261
        %2397 = vmatprep.subr.mxu0 %v2258
        %2398 = vmatpush1.msra.mxu0 %v2257
        %2399 = vmatprep.subr.mxu0 0.0
        %2400 = vmatpush2.msra.mxu0 0.0
        %2401 = vmatprep.subr.mxu0 0.0
        %2402 = vmatpush2.msra.mxu0 0.0
        %2403 = vmatprep.subr.mxu0 0.0
        %2404 = vmatpush2.msra.mxu0 0.0
        %2405 = vmatprep.subr.mxu0 0.0
        %2406 = vmatpush2.msra.mxu0 0.0
        %2407 = vmatprep.subr.mxu0 0.0
        %2408 = vmatpush2.msra.mxu0 0.0
        %2409 = vmatprep.subr.mxu0 0.0
        %2410 = vmatpush2.msra.mxu0 0.0
        %2411 = vmatprep.subr.mxu0 0.0
        %2412 = vmatpush2.msra.mxu0 0.0
        %2413 = vmatprep.subr.mxu0 0.0
        %2414 = vmatpush2.msra.mxu0 0.0
        %2415 = vmatprep.subr.mxu0 0.0
        %2416 = vmatpush2.msra.mxu0 0.0
        %2417 = vmatprep.subr.mxu0 0.0
        %2418 = vmatpush2.msra.mxu0 0.0
        %2419 = vmatprep.subr.mxu0 0.0
        %2420 = vmatpush2.msra.mxu0 0.0
        %2421 = vmatprep.subr.mxu0 0.0
        %2422 = vmatpush2.msra.mxu0 0.0
        %2423 = vmatprep.subr.mxu0 0.0
        %2424 = vmatpush2.msra.mxu0 0.0
        %2425 = vmatprep.subr.mxu0 0.0
        %2426 = vmatpush2.msra.mxu0 0.0
        %2427 = vmatprep.subr.mxu0 0.0
        %2428 = vmatpush2.msra.mxu0 0.0
        %2429 = vmatprep.subr.mxu0 0.0
        %2430 = vmatpush2.msra.mxu0 0.0
        %2431 = vmatprep.mubr.f32.mxu0 0.0
        %2432 = vmatmul.mubr.f32.gmra.mxu0 %v2294
        %v2433 = vpop.f32.mrf.mxu0
        %v2434 = vadd.f32 %v2284, %v2433
        %v2435 = vpop.f32.mrf.mxu0
        %v2436 = vadd.f32 %v2288, %v2435
        %2437 = vdwg.mxu0
        %v2438 = vmax.f32 %v2363, 0.0
        %v2439 = vmax.f32 %v2365, 0.0
        %v2440 = vmax.f32 %v2434, 0.0
        %v2441 = vmax.f32 %v2436, 0.0
        %v2442 = vld [vmem:[#allocation2] sm:$0xff]
        %v2443 = vld [vmem:[#allocation2 + $0x8] sm:$0xff]
        %v2444 = vld [vmem:[#allocation2 + $0x10] sm:$0xff]
        %v2445 = vld [vmem:[#allocation2 + $0x18] sm:$0xff]
        %v2446 = vld [vmem:[#allocation2 + $0x20] sm:$0xff]
        %v2447 = vld [vmem:[#allocation2 + $0x28] sm:$0xff]
        %v2448 = vld [vmem:[#allocation2 + $0x30] sm:$0xff]
        %v2449 = vld [vmem:[#allocation2 + $0x38] sm:$0xff]
        %v2450 = vld [vmem:[#allocation2 + $0x40] sm:$0xff]
        %v2451 = vld [vmem:[#allocation2 + $0x48] sm:$0xff]
        %v2452 = vld [vmem:[#allocation2 + $0x50] sm:$0xff]
        %v2453 = vld [vmem:[#allocation2 + $0x58] sm:$0xff]
        %v2454 = vld [vmem:[#allocation2 + $0x60] sm:$0xff]
        %v2455 = vld [vmem:[#allocation2 + $0x68] sm:$0xff]
        %v2456 = vld [vmem:[#allocation2 + $0x70] sm:$0xff]
        %v2457 = vld [vmem:[#allocation2 + $0x78] sm:$0xff]
        %v2458 = vld [vmem:[#allocation2 + $0x80] sm:$0xff]
        %v2459 = vld [vmem:[#allocation2 + $0x88] sm:$0xff]
        %v2460 = vld [vmem:[#allocation2 + $0x90] sm:$0xff]
        %v2461 = vld [vmem:[#allocation2 + $0x98] sm:$0xff]
        %v2462 = vld [vmem:[#allocation2 + $0xa0] sm:$0xff]
        %v2463 = vld [vmem:[#allocation2 + $0xa8] sm:$0xff]
        %v2464 = vld [vmem:[#allocation2 + $0xb0] sm:$0xff]
        %v2465 = vld [vmem:[#allocation2 + $0xb8] sm:$0xff]
        %v2466 = vld [vmem:[#allocation2 + $0xc0] sm:$0xff]
        %v2467 = vld [vmem:[#allocation2 + $0xc8] sm:$0xff]
        %v2468 = vld [vmem:[#allocation2 + $0xd0] sm:$0xff]
        %v2469 = vld [vmem:[#allocation2 + $0xd8] sm:$0xff]
        %v2470 = vld [vmem:[#allocation2 + $0xe0] sm:$0xff]
        %v2471 = vld [vmem:[#allocation2 + $0xe8] sm:$0xff]
        %v2472 = vld [vmem:[#allocation2 + $0xf0] sm:$0xff]
        %v2473 = vld [vmem:[#allocation2 + $0xf8] sm:$0xff]
        %v2474 = vld [vmem:[#allocation2 + $0x100] sm:$0xff]
        %v2475 = vld [vmem:[#allocation2 + $0x108] sm:$0xff]
        %v2476 = vld [vmem:[#allocation2 + $0x110] sm:$0xff]
        %v2477 = vld [vmem:[#allocation2 + $0x118] sm:$0xff]
        %v2478 = vld [vmem:[#allocation2 + $0x120] sm:$0xff]
        %v2479 = vld [vmem:[#allocation2 + $0x128] sm:$0xff]
        %v2480 = vld [vmem:[#allocation2 + $0x130] sm:$0xff]
        %v2481 = vld [vmem:[#allocation2 + $0x138] sm:$0xff]
        %v2482 = vld [vmem:[#allocation2 + $0x140] sm:$0xff]
        %v2483 = vld [vmem:[#allocation2 + $0x148] sm:$0xff]
        %v2484 = vld [vmem:[#allocation2 + $0x150] sm:$0xff]
        %v2485 = vld [vmem:[#allocation2 + $0x158] sm:$0xff]
        %v2486 = vld [vmem:[#allocation2 + $0x160] sm:$0xff]
        %v2487 = vld [vmem:[#allocation2 + $0x168] sm:$0xff]
        %v2488 = vld [vmem:[#allocation2 + $0x170] sm:$0xff]
        %v2489 = vld [vmem:[#allocation2 + $0x178] sm:$0xff]
        %v2490 = vld [vmem:[#allocation2 + $0x180] sm:$0xff]
        %v2491 = vld [vmem:[#allocation2 + $0x188] sm:$0xff]
        %v2492 = vld [vmem:[#allocation2 + $0x190] sm:$0xff]
        %v2493 = vld [vmem:[#allocation2 + $0x198] sm:$0xff]
        %v2494 = vld [vmem:[#allocation2 + $0x1a0] sm:$0xff]
        %v2495 = vld [vmem:[#allocation2 + $0x1a8] sm:$0xff]
        %v2496 = vld [vmem:[#allocation2 + $0x1b0] sm:$0xff]
        %v2497 = vld [vmem:[#allocation2 + $0x1b8] sm:$0xff]
        %v2498 = vld [vmem:[#allocation2 + $0x1c0] sm:$0xff]
        %v2499 = vld [vmem:[#allocation2 + $0x1c8] sm:$0xff]
        %v2500 = vld [vmem:[#allocation2 + $0x1d0] sm:$0xff]
        %v2501 = vld [vmem:[#allocation2 + $0x1d8] sm:$0xff]
        %v2502 = vld [vmem:[#allocation2 + $0x1e0] sm:$0xff]
        %v2503 = vld [vmem:[#allocation2 + $0x1e8] sm:$0xff]
        %v2504 = vld [vmem:[#allocation2 + $0x1f0] sm:$0xff]
        %v2505 = vld [vmem:[#allocation2 + $0x1f8] sm:$0xff]
        %v2506 = vld [vmem:[#allocation2 + $0x200] sm:$0xff]
        %v2507 = vld [vmem:[#allocation2 + $0x208] sm:$0xff]
        %v2508 = vld [vmem:[#allocation2 + $0x210] sm:$0xff]
        %v2509 = vld [vmem:[#allocation2 + $0x218] sm:$0xff]
        %v2510 = vld [vmem:[#allocation2 + $0x220] sm:$0xff]
        %v2511 = vld [vmem:[#allocation2 + $0x228] sm:$0xff]
        %v2512 = vld [vmem:[#allocation2 + $0x230] sm:$0xff]
        %v2513 = vld [vmem:[#allocation2 + $0x238] sm:$0xff]
        %v2514 = vld [vmem:[#allocation2 + $0x240] sm:$0xff]
        %v2515 = vld [vmem:[#allocation2 + $0x248] sm:$0xff]
        %v2516 = vld [vmem:[#allocation2 + $0x250] sm:$0xff]
        %v2517 = vld [vmem:[#allocation2 + $0x258] sm:$0xff]
        %v2518 = vld [vmem:[#allocation2 + $0x260] sm:$0xff]
        %v2519 = vld [vmem:[#allocation2 + $0x268] sm:$0xff]
        %v2520 = vld [vmem:[#allocation2 + $0x270] sm:$0xff]
        %v2521 = vld [vmem:[#allocation2 + $0x278] sm:$0xff]
        %v2522 = vld [vmem:[#allocation2 + $0x280] sm:$0xff]
        %v2523 = vld [vmem:[#allocation2 + $0x288] sm:$0xff]
        %v2524 = vld [vmem:[#allocation2 + $0x290] sm:$0xff]
        %v2525 = vld [vmem:[#allocation2 + $0x298] sm:$0xff]
        %v2526 = vld [vmem:[#allocation2 + $0x2a0] sm:$0xff]
        %v2527 = vld [vmem:[#allocation2 + $0x2a8] sm:$0xff]
        %v2528 = vld [vmem:[#allocation2 + $0x2b0] sm:$0xff]
        %v2529 = vld [vmem:[#allocation2 + $0x2b8] sm:$0xff]
        %v2530 = vld [vmem:[#allocation2 + $0x2c0] sm:$0xff]
        %v2531 = vld [vmem:[#allocation2 + $0x2c8] sm:$0xff]
        %v2532 = vld [vmem:[#allocation2 + $0x2d0] sm:$0xff]
        %v2533 = vld [vmem:[#allocation2 + $0x2d8] sm:$0xff]
        %v2534 = vld [vmem:[#allocation2 + $0x2e0] sm:$0xff]
        %v2535 = vld [vmem:[#allocation2 + $0x2e8] sm:$0xff]
        %v2536 = vld [vmem:[#allocation2 + $0x2f0] sm:$0xff]
        %v2537 = vld [vmem:[#allocation2 + $0x2f8] sm:$0xff]
        %v2538 = vld [vmem:[#allocation2 + $0x300] sm:$0xff]
        %v2539 = vld [vmem:[#allocation2 + $0x308] sm:$0xff]
        %v2540 = vld [vmem:[#allocation2 + $0x310] sm:$0xff]
        %v2541 = vld [vmem:[#allocation2 + $0x318] sm:$0xff]
        %v2542 = vld [vmem:[#allocation2 + $0x320] sm:$0xff]
        %v2543 = vld [vmem:[#allocation2 + $0x328] sm:$0xff]
        %v2544 = vld [vmem:[#allocation2 + $0x330] sm:$0xff]
        %v2545 = vld [vmem:[#allocation2 + $0x338] sm:$0xff]
        %v2546 = vld [vmem:[#allocation2 + $0x340] sm:$0xff]
        %v2547 = vld [vmem:[#allocation2 + $0x348] sm:$0xff]
        %v2548 = vld [vmem:[#allocation2 + $0x350] sm:$0xff]
        %v2549 = vld [vmem:[#allocation2 + $0x358] sm:$0xff]
        %v2550 = vld [vmem:[#allocation2 + $0x360] sm:$0xff]
        %v2551 = vld [vmem:[#allocation2 + $0x368] sm:$0xff]
        %v2552 = vld [vmem:[#allocation2 + $0x370] sm:$0xff]
        %v2553 = vld [vmem:[#allocation2 + $0x378] sm:$0xff]
        %v2554 = vld [vmem:[#allocation2 + $0x380] sm:$0xff]
        %v2555 = vld [vmem:[#allocation2 + $0x388] sm:$0xff]
        %v2556 = vld [vmem:[#allocation2 + $0x390] sm:$0xff]
        %v2557 = vld [vmem:[#allocation2 + $0x398] sm:$0xff]
        %v2558 = vld [vmem:[#allocation2 + $0x3a0] sm:$0xff]
        %v2559 = vld [vmem:[#allocation2 + $0x3a8] sm:$0xff]
        %v2560 = vld [vmem:[#allocation2 + $0x3b0] sm:$0xff]
        %v2561 = vld [vmem:[#allocation2 + $0x3b8] sm:$0xff]
        %v2562 = vld [vmem:[#allocation2 + $0x3c0] sm:$0xff]
        %v2563 = vld [vmem:[#allocation2 + $0x3c8] sm:$0xff]
        %v2564 = vld [vmem:[#allocation2 + $0x3d0] sm:$0xff]
        %v2565 = vld [vmem:[#allocation2 + $0x3d8] sm:$0xff]
        %v2566 = vld [vmem:[#allocation2 + $0x3e0] sm:$0xff]
        %v2567 = vld [vmem:[#allocation2 + $0x3e8] sm:$0xff]
        %v2568 = vld [vmem:[#allocation2 + $0x3f0] sm:$0xff]
        %v2569 = vld [vmem:[#allocation2 + $0x3f8] sm:$0xff]
        %v2570 = vld [vmem:[%s19] sm:$0x3]
        %v2572 = vlaneseq
        %v2573 = vshrl.u32 %v2572, 7
        %v2574 = vsub.s32 0, %v2573
        %v2575 = vrot.slane %v2570, %v2574
        %v2576 = vlaneseq
        %v2577 = vshrl.u32 %v2576, 7
        %v2578 = vsub.s32 1, %v2577
        %v2579 = vrot.slane %v2570, %v2578
        %2582 = vmatprep.subr.mxu0 %v2473
        %2583 = vmatpush1.msra.mxu0 %v2472
        %2584 = vmatprep.subr.mxu0 %v2471
        %2585 = vmatpush1.msra.mxu0 %v2470
        %2586 = vmatprep.subr.mxu0 %v2469
        %2587 = vmatpush1.msra.mxu0 %v2468
        %2588 = vmatprep.subr.mxu0 %v2467
        %2589 = vmatpush1.msra.mxu0 %v2466
        %2590 = vmatprep.subr.mxu0 %v2465
        %2591 = vmatpush1.msra.mxu0 %v2464
        %2592 = vmatprep.subr.mxu0 %v2463
        %2593 = vmatpush1.msra.mxu0 %v2462
        %2594 = vmatprep.subr.mxu0 %v2461
        %2595 = vmatpush1.msra.mxu0 %v2460
        %2596 = vmatprep.subr.mxu0 %v2459
        %2597 = vmatpush1.msra.mxu0 %v2458
        %2598 = vmatprep.subr.mxu0 %v2457
        %2599 = vmatpush1.msra.mxu0 %v2456
        %2600 = vmatprep.subr.mxu0 %v2455
        %2601 = vmatpush1.msra.mxu0 %v2454
        %2602 = vmatprep.subr.mxu0 %v2453
        %2603 = vmatpush1.msra.mxu0 %v2452
        %2604 = vmatprep.subr.mxu0 %v2451
        %2605 = vmatpush1.msra.mxu0 %v2450
        %2606 = vmatprep.subr.mxu0 %v2449
        %2607 = vmatpush1.msra.mxu0 %v2448
        %2608 = vmatprep.subr.mxu0 %v2447
        %2609 = vmatpush1.msra.mxu0 %v2446
        %2610 = vmatprep.subr.mxu0 %v2445
        %2611 = vmatpush1.msra.mxu0 %v2444
        %2612 = vmatprep.subr.mxu0 %v2443
        %2613 = vmatpush1.msra.mxu0 %v2442
        %2614 = vmatprep.subr.mxu0 %v2505
        %2615 = vmatpush2.msra.mxu0 %v2504
        %2616 = vmatprep.subr.mxu0 %v2503
        %2617 = vmatpush2.msra.mxu0 %v2502
        %2618 = vmatprep.subr.mxu0 %v2501
        %2619 = vmatpush2.msra.mxu0 %v2500
        %2620 = vmatprep.subr.mxu0 %v2499
        %2621 = vmatpush2.msra.mxu0 %v2498
        %2622 = vmatprep.subr.mxu0 %v2497
        %2623 = vmatpush2.msra.mxu0 %v2496
        %2624 = vmatprep.subr.mxu0 %v2495
        %2625 = vmatpush2.msra.mxu0 %v2494
        %2626 = vmatprep.subr.mxu0 %v2493
        %2627 = vmatpush2.msra.mxu0 %v2492
        %2628 = vmatprep.subr.mxu0 %v2491
        %2629 = vmatpush2.msra.mxu0 %v2490
        %2630 = vmatprep.subr.mxu0 %v2489
        %2631 = vmatpush2.msra.mxu0 %v2488
        %2632 = vmatprep.subr.mxu0 %v2487
        %2633 = vmatpush2.msra.mxu0 %v2486
        %2634 = vmatprep.subr.mxu0 %v2485
        %2635 = vmatpush2.msra.mxu0 %v2484
        %2636 = vmatprep.subr.mxu0 %v2483
        %2637 = vmatpush2.msra.mxu0 %v2482
        %2638 = vmatprep.subr.mxu0 %v2481
        %2639 = vmatpush2.msra.mxu0 %v2480
        %2640 = vmatprep.subr.mxu0 %v2479
        %2641 = vmatpush2.msra.mxu0 %v2478
        %2642 = vmatprep.subr.mxu0 %v2477
        %2643 = vmatpush2.msra.mxu0 %v2476
        %2644 = vmatprep.subr.mxu0 %v2475
        %2645 = vmatpush2.msra.mxu0 %v2474
        %2646 = vmatprep.mubr.f32.mxu0 %v2439
        %2647 = vmatmul.mubr.f32.gmra.mxu0 %v2438
        %v2648 = vpop.f32.mrf.mxu0
        %v2649 = vadd.f32 %v2575, %v2648
        %v2650 = vpop.f32.mrf.mxu0
        %v2651 = vadd.f32 %v2579, %v2650
        %2652 = vdwg.mxu0
        %2653 = vmatprep.subr.mxu0 %v2537
        %2654 = vmatpush1.msra.mxu0 %v2536
        %2655 = vmatprep.subr.mxu0 %v2535
        %2656 = vmatpush1.msra.mxu0 %v2534
        %2657 = vmatprep.subr.mxu0 %v2533
        %2658 = vmatpush1.msra.mxu0 %v2532
        %2659 = vmatprep.subr.mxu0 %v2531
        %2660 = vmatpush1.msra.mxu0 %v2530
        %2661 = vmatprep.subr.mxu0 %v2529
        %2662 = vmatpush1.msra.mxu0 %v2528
        %2663 = vmatprep.subr.mxu0 %v2527
        %2664 = vmatpush1.msra.mxu0 %v2526
        %2665 = vmatprep.subr.mxu0 %v2525
        %2666 = vmatpush1.msra.mxu0 %v2524
        %2667 = vmatprep.subr.mxu0 %v2523
        %2668 = vmatpush1.msra.mxu0 %v2522
        %2669 = vmatprep.subr.mxu0 %v2521
        %2670 = vmatpush1.msra.mxu0 %v2520
        %2671 = vmatprep.subr.mxu0 %v2519
        %2672 = vmatpush1.msra.mxu0 %v2518
        %2673 = vmatprep.subr.mxu0 %v2517
        %2674 = vmatpush1.msra.mxu0 %v2516
        %2675 = vmatprep.subr.mxu0 %v2515
        %2676 = vmatpush1.msra.mxu0 %v2514
        %2677 = vmatprep.subr.mxu0 %v2513
        %2678 = vmatpush1.msra.mxu0 %v2512
        %2679 = vmatprep.subr.mxu0 %v2511
        %2680 = vmatpush1.msra.mxu0 %v2510
        %2681 = vmatprep.subr.mxu0 %v2509
        %2682 = vmatpush1.msra.mxu0 %v2508
        %2683 = vmatprep.subr.mxu0 %v2507
        %2684 = vmatpush1.msra.mxu0 %v2506
        %2685 = vmatprep.subr.mxu0 %v2569
        %2686 = vmatpush2.msra.mxu0 %v2568
        %2687 = vmatprep.subr.mxu0 %v2567
        %2688 = vmatpush2.msra.mxu0 %v2566
        %2689 = vmatprep.subr.mxu0 %v2565
        %2690 = vmatpush2.msra.mxu0 %v2564
        %2691 = vmatprep.subr.mxu0 %v2563
        %2692 = vmatpush2.msra.mxu0 %v2562
        %2693 = vmatprep.subr.mxu0 %v2561
        %2694 = vmatpush2.msra.mxu0 %v2560
        %2695 = vmatprep.subr.mxu0 %v2559
        %2696 = vmatpush2.msra.mxu0 %v2558
        %2697 = vmatprep.subr.mxu0 %v2557
        %2698 = vmatpush2.msra.mxu0 %v2556
        %2699 = vmatprep.subr.mxu0 %v2555
        %2700 = vmatpush2.msra.mxu0 %v2554
        %2701 = vmatprep.subr.mxu0 %v2553
        %2702 = vmatpush2.msra.mxu0 %v2552
        %2703 = vmatprep.subr.mxu0 %v2551
        %2704 = vmatpush2.msra.mxu0 %v2550
        %2705 = vmatprep.subr.mxu0 %v2549
        %2706 = vmatpush2.msra.mxu0 %v2548
        %2707 = vmatprep.subr.mxu0 %v2547
        %2708 = vmatpush2.msra.mxu0 %v2546
        %2709 = vmatprep.subr.mxu0 %v2545
        %2710 = vmatpush2.msra.mxu0 %v2544
        %2711 = vmatprep.subr.mxu0 %v2543
        %2712 = vmatpush2.msra.mxu0 %v2542
        %2713 = vmatprep.subr.mxu0 %v2541
        %2714 = vmatpush2.msra.mxu0 %v2540
        %2715 = vmatprep.subr.mxu0 %v2539
        %2716 = vmatpush2.msra.mxu0 %v2538
        %2717 = vmatprep.mubr.f32.mxu0 %v2441
        %2718 = vmatmul.mubr.f32.gmra.mxu0 %v2440
        %v2719 = vpop.f32.mrf.mxu0
        %v2720 = vadd.f32 %v2649, %v2719
        %v2721 = vpop.f32.mrf.mxu0
        %v2722 = vadd.f32 %v2651, %v2721
        %2723 = vdwg.mxu0
        %v2724 = vmax.f32 %v2720, 0.0
        %v2725 = vmax.f32 %v2722, 0.0
        %v2726 = vld [vmem:[%s20] sm:$0xff]
        %v2727 = vld [vmem:[%s20 + $0x8] sm:$0xff]
        %v2728 = vld [vmem:[%s20 + $0x10] sm:$0xff]
        %v2729 = vld [vmem:[%s20 + $0x18] sm:$0xff]
        %v2730 = vld [vmem:[%s20 + $0x20] sm:$0xff]
        %v2731 = vld [vmem:[%s20 + $0x28] sm:$0xff]
        %v2732 = vld [vmem:[%s20 + $0x30] sm:$0xff]
        %v2733 = vld [vmem:[%s20 + $0x38] sm:$0xff]
        %v2734 = vld [vmem:[%s20 + $0x40] sm:$0xff]
        %v2735 = vld [vmem:[%s20 + $0x48] sm:$0xff]
        %v2736 = vld [vmem:[%s20 + $0x50] sm:$0xff]
        %v2737 = vld [vmem:[%s20 + $0x58] sm:$0xff]
        %v2738 = vld [vmem:[%s20 + $0x60] sm:$0xff]
        %v2739 = vld [vmem:[%s20 + $0x68] sm:$0xff]
        %v2740 = vld [vmem:[%s20 + $0x70] sm:$0xff]
        %v2741 = vld [vmem:[%s20 + $0x78] sm:$0xff]
        %v2742 = vld [vmem:[%s20 + $0x80] sm:$0xff]
        %v2743 = vld [vmem:[%s20 + $0x88] sm:$0xff]
        %v2744 = vld [vmem:[%s20 + $0x90] sm:$0xff]
        %v2745 = vld [vmem:[%s20 + $0x98] sm:$0xff]
        %v2746 = vld [vmem:[%s20 + $0xa0] sm:$0xff]
        %v2747 = vld [vmem:[%s20 + $0xa8] sm:$0xff]
        %v2748 = vld [vmem:[%s20 + $0xb0] sm:$0xff]
        %v2749 = vld [vmem:[%s20 + $0xb8] sm:$0xff]
        %v2750 = vld [vmem:[%s20 + $0xc0] sm:$0xff]
        %v2751 = vld [vmem:[%s20 + $0xc8] sm:$0xff]
        %v2752 = vld [vmem:[%s20 + $0xd0] sm:$0xff]
        %v2753 = vld [vmem:[%s20 + $0xd8] sm:$0xff]
        %v2754 = vld [vmem:[%s20 + $0xe0] sm:$0xff]
        %v2755 = vld [vmem:[%s20 + $0xe8] sm:$0xff]
        %v2756 = vld [vmem:[%s20 + $0xf0] sm:$0xff]
        %v2757 = vld [vmem:[%s20 + $0xf8] sm:$0xff]
        %v2758 = vld [vmem:[%s21] sm:$0x1]
        %2759 = vmatprep.subr.mxu0 0.0
        %2760 = vmatpush1.msra.mxu0 %v2741
        %2761 = vmatprep.subr.mxu0 0.0
        %2762 = vmatpush1.msra.mxu0 %v2740
        %2763 = vmatprep.subr.mxu0 0.0
        %2764 = vmatpush1.msra.mxu0 %v2739
        %2765 = vmatprep.subr.mxu0 0.0
        %2766 = vmatpush1.msra.mxu0 %v2738
        %2767 = vmatprep.subr.mxu0 0.0
        %2768 = vmatpush1.msra.mxu0 %v2737
        %2769 = vmatprep.subr.mxu0 0.0
        %2770 = vmatpush1.msra.mxu0 %v2736
        %2771 = vmatprep.subr.mxu0 0.0
        %2772 = vmatpush1.msra.mxu0 %v2735
        %2773 = vmatprep.subr.mxu0 0.0
        %2774 = vmatpush1.msra.mxu0 %v2734
        %2775 = vmatprep.subr.mxu0 0.0
        %2776 = vmatpush1.msra.mxu0 %v2733
        %2777 = vmatprep.subr.mxu0 0.0
        %2778 = vmatpush1.msra.mxu0 %v2732
        %2779 = vmatprep.subr.mxu0 0.0
        %2780 = vmatpush1.msra.mxu0 %v2731
        %2781 = vmatprep.subr.mxu0 0.0
        %2782 = vmatpush1.msra.mxu0 %v2730
        %2783 = vmatprep.subr.mxu0 0.0
        %2784 = vmatpush1.msra.mxu0 %v2729
        %2785 = vmatprep.subr.mxu0 0.0
        %2786 = vmatpush1.msra.mxu0 %v2728
        %2787 = vmatprep.subr.mxu0 0.0
        %2788 = vmatpush1.msra.mxu0 %v2727
        %2789 = vmatprep.subr.mxu0 0.0
        %2790 = vmatpush1.msra.mxu0 %v2726
        %2791 = vmatprep.subr.mxu0 0.0
        %2792 = vmatpush2.msra.mxu0 %v2757
        %2793 = vmatprep.subr.mxu0 0.0
        %2794 = vmatpush2.msra.mxu0 %v2756
        %2795 = vmatprep.subr.mxu0 0.0
        %2796 = vmatpush2.msra.mxu0 %v2755
        %2797 = vmatprep.subr.mxu0 0.0
        %2798 = vmatpush2.msra.mxu0 %v2754
        %2799 = vmatprep.subr.mxu0 0.0
        %2800 = vmatpush2.msra.mxu0 %v2753
        %2801 = vmatprep.subr.mxu0 0.0
        %2802 = vmatpush2.msra.mxu0 %v2752
        %2803 = vmatprep.subr.mxu0 0.0
        %2804 = vmatpush2.msra.mxu0 %v2751
        %2805 = vmatprep.subr.mxu0 0.0
        %2806 = vmatpush2.msra.mxu0 %v2750
        %2807 = vmatprep.subr.mxu0 0.0
        %2808 = vmatpush2.msra.mxu0 %v2749
        %2809 = vmatprep.subr.mxu0 0.0
        %2810 = vmatpush2.msra.mxu0 %v2748
        %2811 = vmatprep.subr.mxu0 0.0
        %2812 = vmatpush2.msra.mxu0 %v2747
        %2813 = vmatprep.subr.mxu0 0.0
        %2814 = vmatpush2.msra.mxu0 %v2746
        %2815 = vmatprep.subr.mxu0 0.0
        %2816 = vmatpush2.msra.mxu0 %v2745
        %2817 = vmatprep.subr.mxu0 0.0
        %2818 = vmatpush2.msra.mxu0 %v2744
        %2819 = vmatprep.subr.mxu0 0.0
        %2820 = vmatpush2.msra.mxu0 %v2743
        %2821 = vmatprep.subr.mxu0 0.0
        %2822 = vmatpush2.msra.mxu0 %v2742
        %2823 = vmatprep.mubr.f32.mxu0 %v2725
        %2824 = vmatmul.mubr.f32.gmra.mxu0 %v2724
        %v2825 = vpop.f32.mrf.mxu0
        %v2826 = vadd.f32 %v2758, %v2825
        %v2827 = vpop.f32.mrf.mxu0
        %2828 = vdwg.mxu0
        %2829 = vst [vmem:[%s699] sm:$0x1] %v2826
        %s2830 = sand.u32 %s517, 1
        %s2831 = scalar_lea.sflag [#allocation4], %s2830
        %s2832 = sand.u32 %s517, 1
        %s2833 = scalar_lea.vmem [#allocation5], %s2832
        // Predicated region
        $region113: #{custom_roberta_forward.1} parent=107 // pred_check
          %p2834 = pneg %p527
        $region114: #{custom_roberta_forward.1} parent=107 // pred_check_branch
          %2836 = sbr.rel (%p2834) target = $region116
        $region115: #{custom_roberta_forward.1} parent=107 // pred_region
          %s2838 = ssub.s32 16, 16
          %2839 = vsyncadd %s2831, %s2838
          %s2840 = smul.addr %s37, 16
          %s2841 = scalar_lea.hbm %s22, %s2840
          %s2843 = sshll.u32 %s2833, 4
          %s2844 = int_to_ptr.vmem [resolvable:$true] %s2843
          %2846 = dma.vmem_to_hbm [thread:$0]  %s2844, 16, %s2841, %s2831
        $region116: #{custom_roberta_forward.1} parent=107 // pred_fallthru
          _
      $region108: #{custom_roberta_forward.1} parent=5 // pred_fallthru
        _
      %p2847 = scmp.le.s32.totalorder 2, %s32
      // Predicated region
      $region117: #{custom_roberta_forward.1} parent=5 // pred_check
        %p2848 = pneg %p2847
      $region118: #{custom_roberta_forward.1} parent=5 // pred_check_branch
        %2850 = sbr.rel (%p2848) target = $region120
      $region119: #{custom_roberta_forward.1} parent=5 // pred_region
        %s2851 = ssub.s32 %s32, 2
        // Predicated region
        $region121: #{custom_roberta_forward.1} parent=119 // pred_check
          %p2852 = pneg %p533
        $region122: #{custom_roberta_forward.1} parent=119 // pred_check_branch
          %2854 = sbr.rel (%p2852) target = $region124
        $region123: #{custom_roberta_forward.1} parent=119 // pred_region
          %s2855 = sand.u32 %s518, 1
          %s2856 = scalar_lea.sflag [#allocation4], %s2855
          %s2857 = sand.u32 %s518, 1
          %s2858 = scalar_lea.vmem [#allocation5], %s2857
          %2859 = dma.done %s2856, 16
        $region124: #{custom_roberta_forward.1} parent=119 // pred_fallthru
          _
      $region120: #{custom_roberta_forward.1} parent=5 // pred_fallthru
        _
    $region6: #{custom_roberta_forward.1} parent=1 // loop_footer
      %s36 = sadd.s32 1, %s32
    $region7: #{custom_roberta_forward.1} parent=1 // loop_footer_branch
      %31 = sbr.rel target = $region3
    $region8: #{custom_roberta_forward.1} parent=1 // loop_exit
      _
    %2860 = vsyncpa [#allocation3], 1
    %s2861 = scalar_lea.sflag [#allocation3], 1
    %2862 = vsyncpa %s2861, 1
    %2863 = vsyncpa [#allocation4], 1
    %s2864 = scalar_lea.sflag [#allocation4], 1
    %2865 = vsyncpa %s2864, 1

</llo_original>
